<compile_context>
chip_gen: v7x
topology: tpu7x:2x2x1
jax: 0.10.0
libtpu: 0.0.40
codegen_flags: <defaults>
</compile_context>

<pallas_src>
import functools

import jax
import jax.numpy as jnp
from jax import lax
from jax.experimental import pallas as pl
from jax.experimental.pallas import tpu as pltpu


def _inverted_residual_kernel(*refs, Nb, H, W, Ho, Wo, hid, stride,
                              identity, expand):
    if expand:
        (x_ref, w1_ref, b1_ref, wdw_ref, b2_ref, w3_ref, b3_ref,
         o_ref, pad_ref) = refs
    else:
        x_ref, wdw_ref, b2_ref, w3_ref, b3_ref, o_ref, pad_ref = refs

    x = x_ref[...].astype(jnp.float32)                 # (Nb, H, W, Cin)
    cin = x.shape[-1]

    # ---- 1x1 expansion conv (BN scale folded into w1) + bias + ReLU --------
    if expand:
        xf = x.reshape(Nb * H * W, cin)
        h = jnp.dot(xf.astype(jnp.bfloat16), w1_ref[...],
                    preferred_element_type=jnp.float32)
        h = jnp.maximum(h + b1_ref[...], 0.0)
        h4 = h.reshape(Nb, H, W, hid)
    else:
        h4 = x                                         # hid == cin

    # ---- depthwise 3x3, padding=1, stride, BN scale folded into wdw --------
    # Zero the 1-pixel halo every step (thin masked stores), write the interior.
    pad_ref[:, 0:1, :, :] = jnp.zeros((Nb, 1, W + 2, hid), jnp.float32)
    pad_ref[:, H + 1:H + 2, :, :] = jnp.zeros((Nb, 1, W + 2, hid), jnp.float32)
    pad_ref[:, :, 0:1, :] = jnp.zeros((Nb, H + 2, 1, hid), jnp.float32)
    pad_ref[:, :, W + 1:W + 2, :] = jnp.zeros((Nb, H + 2, 1, hid), jnp.float32)
    pad_ref[:, 1:H + 1, 1:W + 1, :] = h4

    acc = jnp.zeros((Nb, Ho, Wo, hid), jnp.float32)
    for t in range(9):                                 # tap loaded right before
        dy, dx = t // 3, t % 3                         # its FMA -> one tap live
        if stride == 1:
            tap = pad_ref[:, dy:dy + Ho, dx:dx + Wo, :]
        else:
            tap = pad_ref[:, pl.ds(dy, Ho, stride=stride),
                          pl.ds(dx, Wo, stride=stride), :]
        acc = acc + tap * wdw_ref[t]
    h2 = jnp.maximum(acc + b2_ref[...], 0.0)

    # ---- 1x1 projection conv (BN scale folded into w3) + bias --------------
    h2f = h2.reshape(Nb * Ho * Wo, hid).astype(jnp.bfloat16)
    out = jnp.dot(h2f, w3_ref[...], preferred_element_type=jnp.float32)
    out = out + b3_ref[...]

    if identity:                                       # stride==1, in_ch==out_ch
        out = out + x.reshape(Nb * H * W, cin)

    o_ref[...] = out.astype(o_ref.dtype)


def fold_params(w1, wdw, w3, bn1, bn2, bn3, *, expand):
    """Fold inference-mode BN scales into the conv weights; 1x1 weights -> bf16."""
    s2, b2 = bn2
    s3, b3 = bn3
    hid = wdw.shape[-1]
    wdwf = (wdw * s2).reshape(9, hid)                       # f32 (9, hid)
    b2f = b2.reshape(1, hid)
    w3f = (w3 * s3[None, :]).astype(jnp.bfloat16)           # bf16 (hid, out)
    b3f = b3.reshape(1, -1)
    if expand:
        s1, b1 = bn1
        w1f = (w1 * s1[None, :]).astype(jnp.bfloat16)       # bf16 (cin, hid)
        b1f = b1.reshape(1, hid)
        return (w1f, b1f, wdwf, b2f, w3f, b3f)
    return (wdwf, b2f, w3f, b3f)


def inverted_residual(x_nhwc, folded, *, stride, in_ch, out_ch, expand,
                      block_n=2):
    N, H, W, C = x_nhwc.shape
    assert C == in_ch and N % block_n == 0
    identity = (stride == 1 and in_ch == out_ch)
    Ho = (H + 2 - 3) // stride + 1
    Wo = (W + 2 - 3) // stride + 1
    Nb = block_n
    if expand:
        wdwf = folded[2]
    else:
        wdwf = folded[0]
    hid = wdwf.shape[-1]

    kernel = functools.partial(
        _inverted_residual_kernel, Nb=Nb, H=H, W=W, Ho=Ho, Wo=Wo, hid=hid,
        stride=stride, identity=identity, expand=expand)

    def full(a):   # small constant operand, fully resident, same block each step
        return pl.BlockSpec(a.shape, lambda n, _nd=a.ndim: (0,) * _nd)

    operands = [x_nhwc] + list(folded)
    in_specs = ([pl.BlockSpec((Nb, H, W, C), lambda n: (n, 0, 0, 0))]
                + [full(a) for a in folded])

    out2d = pl.pallas_call(
        kernel,
        out_shape=jax.ShapeDtypeStruct((N * Ho * Wo, out_ch), x_nhwc.dtype),
        grid=(N // Nb,),
        in_specs=in_specs,
        out_specs=pl.BlockSpec((Nb * Ho * Wo, out_ch), lambda n: (n, 0)),
        scratch_shapes=[pltpu.VMEM((Nb, H + 2, W + 2, hid), jnp.float32)],
        compiler_params=pltpu.CompilerParams(
            dimension_semantics=("parallel",)),
    )(*operands)
    # Free (metadata-only) reshape of the contiguous NHWC slab.
    return out2d.reshape(N, Ho, Wo, out_ch)


def reference(x_nhwc, w1, bn1, wdw, bn2, w3, bn3, *, stride, expand, identity):
    """Pure-JAX reference (lax convs), mirrors the PyTorch forward."""
    dn = ('NHWC', 'HWIO', 'NHWC')
    h = x_nhwc
    if expand:
        cin, hid = w1.shape
        h = lax.conv_general_dilated(h, w1.reshape(1, 1, cin, hid), (1, 1),
                                     'VALID', dimension_numbers=dn)
        h = jnp.maximum(h * bn1[0] + bn1[1], 0.0)
    hid = wdw.shape[-1]
    h = lax.conv_general_dilated(h, wdw.reshape(3, 3, 1, hid),
                                 (stride, stride), ((1, 1), (1, 1)),
                                 dimension_numbers=dn, feature_group_count=hid)
    h = jnp.maximum(h * bn2[0] + bn2[1], 0.0)
    out_ch = w3.shape[-1]
    h = lax.conv_general_dilated(h, w3.reshape(1, 1, hid, out_ch), (1, 1),
                                 'VALID', dimension_numbers=dn)
    h = h * bn3[0] + bn3[1]
    if identity:
        h = h + x_nhwc
    return h


def make_bn(key, c):
    kg, kb, km, kv = jax.random.split(key, 4)
    gamma = 1.0 + 0.1 * jax.random.normal(kg, (c,), jnp.float32)
    beta = 0.1 * jax.random.normal(kb, (c,), jnp.float32)
    mean = 0.1 * jax.random.normal(km, (c,), jnp.float32)
    var = jax.random.uniform(kv, (c,), jnp.float32, 0.5, 1.5)
    scale = gamma / jnp.sqrt(var + 1e-5)
    bias = beta - mean * scale
    return scale, bias


def run_case(key, *, N, H, W, in_ch, out_ch, stride, expand_ratio, block_n):
    hid = round(in_ch * expand_ratio)
    expand = expand_ratio != 1
    identity = stride == 1 and in_ch == out_ch

    keys = jax.random.split(key, 7)
    # Conv weights generated directly in matmul-friendly orientation
    # (PyTorch shapes would be (hid,in,1,1) / (hid,1,3,3) / (out,hid,1,1)).
    w1 = 0.2 * jax.random.normal(keys[0], (in_ch, hid), jnp.float32)
    wdw = 0.2 * jax.random.normal(keys[1], (3, 3, hid), jnp.float32)
    w3 = 0.2 * jax.random.normal(keys[2], (hid, out_ch), jnp.float32)
    bn1 = make_bn(keys[3], hid)
    bn2 = make_bn(keys[4], hid)
    bn3 = make_bn(keys[5], out_ch)

    # PyTorch-layout input (NCHW), converted to kernel layout (NHWC) as glue.
    x_nchw = jax.random.normal(keys[6], (N, in_ch, H, W), jnp.float32)
    x = jnp.transpose(x_nchw, (0, 2, 3, 1))

    folded = fold_params(w1, wdw, w3, bn1, bn2, bn3, expand=expand)
    y = inverted_residual(x, folded, stride=stride, in_ch=in_ch,
                          out_ch=out_ch, expand=expand, block_n=block_n)
    y = jax.block_until_ready(y)

    ones = lambda c: jnp.ones((c,), jnp.float32)

    # (a) True module math (f32, unfolded BN).
    ref_true = reference(x, w1, bn1, wdw, bn2, w3, bn3,
                         stride=stride, expand=expand, identity=identity)
    assert y.shape == ref_true.shape, (y.shape, ref_true.shape)

    # (b) Fold check: f32-folded weights reproduce the unfolded math.
    ref_fold = reference(x, (w1 * bn1[0][None, :]) if expand else None,
                         (ones(hid), bn1[1]),
                         wdw * bn2[0], (ones(hid), bn2[1]),
                         w3 * bn3[0][None, :], (ones(out_ch), bn3[1]),
                         stride=stride, expand=expand, identity=identity)
    err_fold = float(jnp.max(jnp.abs(ref_fold - ref_true)))
    assert jnp.allclose(ref_fold, ref_true, atol=1e-4, rtol=1e-4), err_fold

    # (c) Tight kernel check against the exact bf16-rounded folded weights the
    #     kernel consumed (only in-kernel bf16 activation casts differ).
    if expand:
        w1f, _, wdwf, _, w3f, _ = folded
        w1bf = w1f.astype(jnp.float32)
    else:
        wdwf, _, w3f, _ = folded
        w1bf = None
    ref_bf16 = reference(x, w1bf, (ones(hid), bn1[1]),
                         wdwf.reshape(3, 3, hid), (ones(hid), bn2[1]),
                         w3f.astype(jnp.float32), (ones(out_ch), bn3[1]),
                         stride=stride, expand=expand, identity=identity)
    err = float(jnp.max(jnp.abs(y - ref_bf16)))
    assert jnp.allclose(y, ref_bf16, atol=4e-2, rtol=4e-2), err

    # (d) Loose end-to-end check vs. the true module math (bf16 weight rounding
    #     is the only extra error source).
    err_true = float(jnp.max(jnp.abs(y - ref_true)))
    assert jnp.allclose(y, ref_true, atol=1e-1, rtol=5e-2), err_true


if __name__ == "__main__":
    key = jax.random.PRNGKey(0)
    k1, k2 = jax.random.split(key)
    # Config A: expansion + identity residual (stride=1, expand_ratio=4).
    run_case(k1, N=4, H=16, W=16, in_ch=16, out_ch=16,
             stride=1, expand_ratio=4, block_n=2)
    # Config B: expand_ratio=1 branch (no expansion conv), no identity.
    run_case(k2, N=4, H=16, W=16, in_ch=16, out_ch=24,
             stride=1, expand_ratio=1, block_n=2)
    print("KERNEL_OK")
</pallas_src>

<mosaic_0001>
module attributes {stable_mosaic.version = 11 : i64} {
  func.func @_inverted_residual_kernel(%arg0: i32, %arg1: memref<2x16x16x16xf32, #tpu.memory_space<vmem>>, %arg2: memref<16x64xbf16, #tpu.memory_space<vmem>>, %arg3: memref<1x64xf32, #tpu.memory_space<vmem>>, %arg4: memref<9x64xf32, #tpu.memory_space<vmem>>, %arg5: memref<1x64xf32, #tpu.memory_space<vmem>>, %arg6: memref<64x16xbf16, #tpu.memory_space<vmem>>, %arg7: memref<1x16xf32, #tpu.memory_space<vmem>>, %arg8: memref<512x16xf32, #tpu.memory_space<vmem>>, %arg9: memref<2x18x18x64xf32, #tpu.memory_space<vmem>>) attributes {dimension_semantics = [#tpu.dimension_semantics<parallel>], iteration_bounds = array<i64: 2>, scalar_prefetch = 0 : i64, scratch_operands = 1 : i64, tpu.core_type = #tpu.core_type<tc>, window_params = [{transform_indices = @transform_0, window_bounds = array<i64: 2, 16, 16, 16>}, {pipeline_mode = #tpu.pipeline_mode<synchronous>, transform_indices = @transform_1, window_bounds = array<i64: 16, 64>}, {pipeline_mode = #tpu.pipeline_mode<synchronous>, transform_indices = @transform_2, window_bounds = array<i64: 1, 64>}, {pipeline_mode = #tpu.pipeline_mode<synchronous>, transform_indices = @transform_3, window_bounds = array<i64: 9, 64>}, {pipeline_mode = #tpu.pipeline_mode<synchronous>, transform_indices = @transform_4, window_bounds = array<i64: 1, 64>}, {pipeline_mode = #tpu.pipeline_mode<synchronous>, transform_indices = @transform_5, window_bounds = array<i64: 64, 16>}, {pipeline_mode = #tpu.pipeline_mode<synchronous>, transform_indices = @transform_6, window_bounds = array<i64: 1, 16>}, {transform_indices = @transform_7, window_bounds = array<i64: 512, 16>}]} {
    %c0 = arith.constant 0 : index
    %c0_0 = arith.constant 0 : index
    %c0_1 = arith.constant 0 : index
    %c0_2 = arith.constant 0 : index
    %0 = vector.load %arg1[%c0, %c0_0, %c0_1, %c0_2] : memref<2x16x16x16xf32, #tpu.memory_space<vmem>>, vector<2x16x16x16xf32>
    %1 = vector.shape_cast %0 : vector<2x16x16x16xf32> to vector<512x16xf32>
    %2 = arith.truncf %1 : vector<512x16xf32> to vector<512x16xbf16>
    %c0_3 = arith.constant 0 : index
    %c0_4 = arith.constant 0 : index
    %3 = vector.load %arg2[%c0_3, %c0_4] : memref<16x64xbf16, #tpu.memory_space<vmem>>, vector<16x64xbf16>
    %cst = arith.constant dense<0.000000e+00> : vector<512x64xf32>
    %4 = tpu.matmul %2, %3, %cst {dimension_numbers = #tpu.dot_dimension_numbers<[1], [0], [0], [1], [0, 0, 1, 1], [], []>} : vector<512x16xbf16>, vector<16x64xbf16>, vector<512x64xf32> -> vector<512x64xf32>
    %c0_5 = arith.constant 0 : index
    %c0_6 = arith.constant 0 : index
    %5 = vector.load %arg3[%c0_5, %c0_6] : memref<1x64xf32, #tpu.memory_space<vmem>>, vector<1x64xf32>
    %6 = vector.broadcast %5 : vector<1x64xf32> to vector<512x64xf32>
    %7 = arith.addf %4, %6 : vector<512x64xf32>
    %cst_7 = arith.constant 0.000000e+00 : f32
    %8 = vector.broadcast %cst_7 : f32 to vector<512x64xf32>
    %9 = arith.maximumf %7, %8 : vector<512x64xf32>
    %10 = vector.shape_cast %9 : vector<512x64xf32> to vector<2x16x16x64xf32>
    %cst_8 = arith.constant 0.000000e+00 : f32
    %11 = vector.broadcast %cst_8 : f32 to vector<2x1x18x64xf32>
    %c0_9 = arith.constant 0 : index
    %c0_10 = arith.constant 0 : index
    %c0_11 = arith.constant 0 : index
    %c0_12 = arith.constant 0 : index
    %12 = vector.load %arg9[%c0_9, %c0_10, %c0_11, %c0_12] : memref<2x18x18x64xf32, #tpu.memory_space<vmem>>, vector<2x1x18x64xf32>
    tpu.vector_store %arg9[%c0_9, %c0_10, %c0_11, %c0_12], %11 {strides = array<i32>} : memref<2x18x18x64xf32, #tpu.memory_space<vmem>>, vector<2x1x18x64xf32>,
    %cst_13 = arith.constant 0.000000e+00 : f32
    %13 = vector.broadcast %cst_13 : f32 to vector<2x1x18x64xf32>
    %c0_14 = arith.constant 0 : index
    %c17 = arith.constant 17 : index
    %c0_15 = arith.constant 0 : index
    %c0_16 = arith.constant 0 : index
    %14 = vector.load %arg9[%c0_14, %c17, %c0_15, %c0_16] : memref<2x18x18x64xf32, #tpu.memory_space<vmem>>, vector<2x1x18x64xf32>
    tpu.vector_store %arg9[%c0_14, %c17, %c0_15, %c0_16], %13 {strides = array<i32>} : memref<2x18x18x64xf32, #tpu.memory_space<vmem>>, vector<2x1x18x64xf32>,
    %cst_17 = arith.constant 0.000000e+00 : f32
    %15 = vector.broadcast %cst_17 : f32 to vector<2x18x1x64xf32>
    %c0_18 = arith.constant 0 : index
    %c0_19 = arith.constant 0 : index
    %c0_20 = arith.constant 0 : index
    %c0_21 = arith.constant 0 : index
    %16 = vector.load %arg9[%c0_18, %c0_19, %c0_20, %c0_21] : memref<2x18x18x64xf32, #tpu.memory_space<vmem>>, vector<2x18x1x64xf32>
    tpu.vector_store %arg9[%c0_18, %c0_19, %c0_20, %c0_21], %15 {strides = array<i32>} : memref<2x18x18x64xf32, #tpu.memory_space<vmem>>, vector<2x18x1x64xf32>,
    %cst_22 = arith.constant 0.000000e+00 : f32
    %17 = vector.broadcast %cst_22 : f32 to vector<2x18x1x64xf32>
    %c0_23 = arith.constant 0 : index
    %c0_24 = arith.constant 0 : index
    %c17_25 = arith.constant 17 : index
    %c0_26 = arith.constant 0 : index
    %18 = vector.load %arg9[%c0_23, %c0_24, %c17_25, %c0_26] : memref<2x18x18x64xf32, #tpu.memory_space<vmem>>, vector<2x18x1x64xf32>
    tpu.vector_store %arg9[%c0_23, %c0_24, %c17_25, %c0_26], %17 {strides = array<i32>} : memref<2x18x18x64xf32, #tpu.memory_space<vmem>>, vector<2x18x1x64xf32>,
    %c0_27 = arith.constant 0 : index
    %c1 = arith.constant 1 : index
    %c1_28 = arith.constant 1 : index
    %c0_29 = arith.constant 0 : index
    %19 = vector.load %arg9[%c0_27, %c1, %c1_28, %c0_29] : memref<2x18x18x64xf32, #tpu.memory_space<vmem>>, vector<2x16x16x64xf32>
    tpu.vector_store %arg9[%c0_27, %c1, %c1_28, %c0_29], %10 {strides = array<i32>} : memref<2x18x18x64xf32, #tpu.memory_space<vmem>>, vector<2x16x16x64xf32>,
    %cst_30 = arith.constant 0.000000e+00 : f32
    %20 = vector.broadcast %cst_30 : f32 to vector<2x16x16x64xf32>
    %c0_31 = arith.constant 0 : index
    %c0_32 = arith.constant 0 : index
    %c0_33 = arith.constant 0 : index
    %c0_34 = arith.constant 0 : index
    %21 = vector.load %arg9[%c0_31, %c0_32, %c0_33, %c0_34] : memref<2x18x18x64xf32, #tpu.memory_space<vmem>>, vector<2x16x16x64xf32>
    %c0_35 = arith.constant 0 : index
    %c0_36 = arith.constant 0 : index
    %22 = vector.load %arg4[%c0_35, %c0_36] : memref<9x64xf32, #tpu.memory_space<vmem>>, vector<1x64xf32>
    %23 = vector.shape_cast %22 : vector<1x64xf32> to vector<64xf32>
    %24 = vector.shape_cast %23 : vector<64xf32> to vector<1x1x1x64xf32>
    %25 = vector.broadcast %24 : vector<1x1x1x64xf32> to vector<2x16x16x64xf32>
    %26 = arith.mulf %21, %25 : vector<2x16x16x64xf32>
    %27 = arith.addf %20, %26 : vector<2x16x16x64xf32>
    %c0_37 = arith.constant 0 : index
    %c0_38 = arith.constant 0 : index
    %c1_39 = arith.constant 1 : index
    %c0_40 = arith.constant 0 : index
    %28 = vector.load %arg9[%c0_37, %c0_38, %c1_39, %c0_40] : memref<2x18x18x64xf32, #tpu.memory_space<vmem>>, vector<2x16x16x64xf32>
    %c1_41 = arith.constant 1 : index
    %c0_42 = arith.constant 0 : index
    %29 = vector.load %arg4[%c1_41, %c0_42] : memref<9x64xf32, #tpu.memory_space<vmem>>, vector<1x64xf32>
    %30 = vector.shape_cast %29 : vector<1x64xf32> to vector<64xf32>
    %31 = vector.shape_cast %30 : vector<64xf32> to vector<1x1x1x64xf32>
    %32 = vector.broadcast %31 : vector<1x1x1x64xf32> to vector<2x16x16x64xf32>
    %33 = arith.mulf %28, %32 : vector<2x16x16x64xf32>
    %34 = arith.addf %27, %33 : vector<2x16x16x64xf32>
    %c0_43 = arith.constant 0 : index
    %c0_44 = arith.constant 0 : index
    %c2 = arith.constant 2 : index
    %c0_45 = arith.constant 0 : index
    %35 = vector.load %arg9[%c0_43, %c0_44, %c2, %c0_45] : memref<2x18x18x64xf32, #tpu.memory_space<vmem>>, vector<2x16x16x64xf32>
    %c2_46 = arith.constant 2 : index
    %c0_47 = arith.constant 0 : index
    %36 = vector.load %arg4[%c2_46, %c0_47] : memref<9x64xf32, #tpu.memory_space<vmem>>, vector<1x64xf32>
    %37 = vector.shape_cast %36 : vector<1x64xf32> to vector<64xf32>
    %38 = vector.shape_cast %37 : vector<64xf32> to vector<1x1x1x64xf32>
    %39 = vector.broadcast %38 : vector<1x1x1x64xf32> to vector<2x16x16x64xf32>
    %40 = arith.mulf %35, %39 : vector<2x16x16x64xf32>
    %41 = arith.addf %34, %40 : vector<2x16x16x64xf32>
    %c0_48 = arith.constant 0 : index
    %c1_49 = arith.constant 1 : index
    %c0_50 = arith.constant 0 : index
    %c0_51 = arith.constant 0 : index
    %42 = vector.load %arg9[%c0_48, %c1_49, %c0_50, %c0_51] : memref<2x18x18x64xf32, #tpu.memory_space<vmem>>, vector<2x16x16x64xf32>
    %c3 = arith.constant 3 : index
    %c0_52 = arith.constant 0 : index
    %43 = vector.load %arg4[%c3, %c0_52] : memref<9x64xf32, #tpu.memory_space<vmem>>, vector<1x64xf32>
    %44 = vector.shape_cast %43 : vector<1x64xf32> to vector<64xf32>
    %45 = vector.shape_cast %44 : vector<64xf32> to vector<1x1x1x64xf32>
    %46 = vector.broadcast %45 : vector<1x1x1x64xf32> to vector<2x16x16x64xf32>
    %47 = arith.mulf %42, %46 : vector<2x16x16x64xf32>
    %48 = arith.addf %41, %47 : vector<2x16x16x64xf32>
    %c0_53 = arith.constant 0 : index
    %c1_54 = arith.constant 1 : index
    %c1_55 = arith.constant 1 : index
    %c0_56 = arith.constant 0 : index
    %49 = vector.load %arg9[%c0_53, %c1_54, %c1_55, %c0_56] : memref<2x18x18x64xf32, #tpu.memory_space<vmem>>, vector<2x16x16x64xf32>
    %c4 = arith.constant 4 : index
    %c0_57 = arith.constant 0 : index
    %50 = vector.load %arg4[%c4, %c0_57] : memref<9x64xf32, #tpu.memory_space<vmem>>, vector<1x64xf32>
    %51 = vector.shape_cast %50 : vector<1x64xf32> to vector<64xf32>
    %52 = vector.shape_cast %51 : vector<64xf32> to vector<1x1x1x64xf32>
    %53 = vector.broadcast %52 : vector<1x1x1x64xf32> to vector<2x16x16x64xf32>
    %54 = arith.mulf %49, %53 : vector<2x16x16x64xf32>
    %55 = arith.addf %48, %54 : vector<2x16x16x64xf32>
    %c0_58 = arith.constant 0 : index
    %c1_59 = arith.constant 1 : index
    %c2_60 = arith.constant 2 : index
    %c0_61 = arith.constant 0 : index
    %56 = vector.load %arg9[%c0_58, %c1_59, %c2_60, %c0_61] : memref<2x18x18x64xf32, #tpu.memory_space<vmem>>, vector<2x16x16x64xf32>
    %c5 = arith.constant 5 : index
    %c0_62 = arith.constant 0 : index
    %57 = vector.load %arg4[%c5, %c0_62] : memref<9x64xf32, #tpu.memory_space<vmem>>, vector<1x64xf32>
    %58 = vector.shape_cast %57 : vector<1x64xf32> to vector<64xf32>
    %59 = vector.shape_cast %58 : vector<64xf32> to vector<1x1x1x64xf32>
    %60 = vector.broadcast %59 : vector<1x1x1x64xf32> to vector<2x16x16x64xf32>
    %61 = arith.mulf %56, %60 : vector<2x16x16x64xf32>
    %62 = arith.addf %55, %61 : vector<2x16x16x64xf32>
    %c0_63 = arith.constant 0 : index
    %c2_64 = arith.constant 2 : index
    %c0_65 = arith.constant 0 : index
    %c0_66 = arith.constant 0 : index
    %63 = vector.load %arg9[%c0_63, %c2_64, %c0_65, %c0_66] : memref<2x18x18x64xf32, #tpu.memory_space<vmem>>, vector<2x16x16x64xf32>
    %c6 = arith.constant 6 : index
    %c0_67 = arith.constant 0 : index
    %64 = vector.load %arg4[%c6, %c0_67] : memref<9x64xf32, #tpu.memory_space<vmem>>, vector<1x64xf32>
    %65 = vector.shape_cast %64 : vector<1x64xf32> to vector<64xf32>
    %66 = vector.shape_cast %65 : vector<64xf32> to vector<1x1x1x64xf32>
    %67 = vector.broadcast %66 : vector<1x1x1x64xf32> to vector<2x16x16x64xf32>
    %68 = arith.mulf %63, %67 : vector<2x16x16x64xf32>
    %69 = arith.addf %62, %68 : vector<2x16x16x64xf32>
    %c0_68 = arith.constant 0 : index
    %c2_69 = arith.constant 2 : index
    %c1_70 = arith.constant 1 : index
    %c0_71 = arith.constant 0 : index
    %70 = vector.load %arg9[%c0_68, %c2_69, %c1_70, %c0_71] : memref<2x18x18x64xf32, #tpu.memory_space<vmem>>, vector<2x16x16x64xf32>
    %c7 = arith.constant 7 : index
    %c0_72 = arith.constant 0 : index
    %71 = vector.load %arg4[%c7, %c0_72] : memref<9x64xf32, #tpu.memory_space<vmem>>, vector<1x64xf32>
    %72 = vector.shape_cast %71 : vector<1x64xf32> to vector<64xf32>
    %73 = vector.shape_cast %72 : vector<64xf32> to vector<1x1x1x64xf32>
    %74 = vector.broadcast %73 : vector<1x1x1x64xf32> to vector<2x16x16x64xf32>
    %75 = arith.mulf %70, %74 : vector<2x16x16x64xf32>
    %76 = arith.addf %69, %75 : vector<2x16x16x64xf32>
    %c0_73 = arith.constant 0 : index
    %c2_74 = arith.constant 2 : index
    %c2_75 = arith.constant 2 : index
    %c0_76 = arith.constant 0 : index
    %77 = vector.load %arg9[%c0_73, %c2_74, %c2_75, %c0_76] : memref<2x18x18x64xf32, #tpu.memory_space<vmem>>, vector<2x16x16x64xf32>
    %c8 = arith.constant 8 : index
    %c0_77 = arith.constant 0 : index
    %78 = vector.load %arg4[%c8, %c0_77] : memref<9x64xf32, #tpu.memory_space<vmem>>, vector<1x64xf32>
    %79 = vector.shape_cast %78 : vector<1x64xf32> to vector<64xf32>
    %80 = vector.shape_cast %79 : vector<64xf32> to vector<1x1x1x64xf32>
    %81 = vector.broadcast %80 : vector<1x1x1x64xf32> to vector<2x16x16x64xf32>
    %82 = arith.mulf %77, %81 : vector<2x16x16x64xf32>
    %83 = arith.addf %76, %82 : vector<2x16x16x64xf32>
    %c0_78 = arith.constant 0 : index
    %c0_79 = arith.constant 0 : index
    %84 = vector.load %arg5[%c0_78, %c0_79] : memref<1x64xf32, #tpu.memory_space<vmem>>, vector<1x64xf32>
    %85 = vector.shape_cast %84 : vector<1x64xf32> to vector<1x1x1x64xf32>
    %86 = vector.broadcast %85 : vector<1x1x1x64xf32> to vector<2x16x16x64xf32>
    %87 = arith.addf %83, %86 : vector<2x16x16x64xf32>
    %cst_80 = arith.constant 0.000000e+00 : f32
    %88 = vector.broadcast %cst_80 : f32 to vector<2x16x16x64xf32>
    %89 = arith.maximumf %87, %88 : vector<2x16x16x64xf32>
    %90 = vector.shape_cast %89 : vector<2x16x16x64xf32> to vector<512x64xf32>
    %91 = arith.truncf %90 : vector<512x64xf32> to vector<512x64xbf16>
    %c0_81 = arith.constant 0 : index
    %c0_82 = arith.constant 0 : index
    %92 = vector.load %arg6[%c0_81, %c0_82] : memref<64x16xbf16, #tpu.memory_space<vmem>>, vector<64x16xbf16>
    %cst_83 = arith.constant dense<0.000000e+00> : vector<512x16xf32>
    %93 = tpu.matmul %91, %92, %cst_83 {dimension_numbers = #tpu.dot_dimension_numbers<[1], [0], [0], [1], [0, 0, 1, 1], [], []>} : vector<512x64xbf16>, vector<64x16xbf16>, vector<512x16xf32> -> vector<512x16xf32>
    %c0_84 = arith.constant 0 : index
    %c0_85 = arith.constant 0 : index
    %94 = vector.load %arg7[%c0_84, %c0_85] : memref<1x16xf32, #tpu.memory_space<vmem>>, vector<1x16xf32>
    %95 = vector.broadcast %94 : vector<1x16xf32> to vector<512x16xf32>
    %96 = arith.addf %93, %95 : vector<512x16xf32>
    %97 = vector.shape_cast %0 : vector<2x16x16x16xf32> to vector<512x16xf32>
    %98 = arith.addf %96, %97 : vector<512x16xf32>
    %c0_86 = arith.constant 0 : index
    %c0_87 = arith.constant 0 : index
    %99 = vector.load %arg8[%c0_86, %c0_87] : memref<512x16xf32, #tpu.memory_space<vmem>>, vector<512x16xf32>
    tpu.vector_store %arg8[%c0_86, %c0_87], %98 {strides = array<i32>} : memref<512x16xf32, #tpu.memory_space<vmem>>, vector<512x16xf32>,
    return
  }
  func.func @transform_0(%arg0: i32) -> (i32, i32, i32, i32) {
    %c0_i32 = arith.constant 0 : i32
    %c0_i32_0 = arith.constant 0 : i32
    %c0_i32_1 = arith.constant 0 : i32
    %c0_i32_2 = arith.constant 0 : i32
    return %arg0, %c0_i32, %c0_i32_0, %c0_i32_1 : i32, i32, i32, i32
  }
  func.func @transform_1(%arg0: i32) -> (i32, i32) {
    %c0_i32 = arith.constant 0 : i32
    %c0_i32_0 = arith.constant 0 : i32
    %c0_i32_1 = arith.constant 0 : i32
    return %c0_i32, %c0_i32_0 : i32, i32
  }
  func.func @transform_2(%arg0: i32) -> (i32, i32) {
    %c0_i32 = arith.constant 0 : i32
    %c0_i32_0 = arith.constant 0 : i32
    %c0_i32_1 = arith.constant 0 : i32
    return %c0_i32, %c0_i32_0 : i32, i32
  }
  func.func @transform_3(%arg0: i32) -> (i32, i32) {
    %c0_i32 = arith.constant 0 : i32
    %c0_i32_0 = arith.constant 0 : i32
    %c0_i32_1 = arith.constant 0 : i32
    return %c0_i32, %c0_i32_0 : i32, i32
  }
  func.func @transform_4(%arg0: i32) -> (i32, i32) {
    %c0_i32 = arith.constant 0 : i32
    %c0_i32_0 = arith.constant 0 : i32
    %c0_i32_1 = arith.constant 0 : i32
    return %c0_i32, %c0_i32_0 : i32, i32
  }
  func.func @transform_5(%arg0: i32) -> (i32, i32) {
    %c0_i32 = arith.constant 0 : i32
    %c0_i32_0 = arith.constant 0 : i32
    %c0_i32_1 = arith.constant 0 : i32
    return %c0_i32, %c0_i32_0 : i32, i32
  }
  func.func @transform_6(%arg0: i32) -> (i32, i32) {
    %c0_i32 = arith.constant 0 : i32
    %c0_i32_0 = arith.constant 0 : i32
    %c0_i32_1 = arith.constant 0 : i32
    return %c0_i32, %c0_i32_0 : i32, i32
  }
  func.func @transform_7(%arg0: i32) -> (i32, i32) {
    %c0_i32 = arith.constant 0 : i32
    %c0_i32_0 = arith.constant 0 : i32
    return %arg0, %c0_i32 : i32, i32
  }
}

</mosaic_0001>

<llo_original>
// kernel: tpu_custom_call.1
$region0: #{tpu_custom_call.1}
  #allocation0 [shape = 'u32[]', space=smem, size = 0x4, offset = 0x4, fixed_abs, tag = 'smem constant byte address 0x4 - core index']
  #allocation1 [shape = 'u32[144,128]{1,0:T(1,128)}', space=vmem, size = 0x12000, scoped, tag = 'internal scratch']
  #allocation2 [shape = 'f32[2,18,18,64]{3,2,1,0:T(8,128)}', space=vmem, size = 0x6c000, scoped, tag = 'scratch operand']
  %s0 = inlined_call_operand.hbm [shape: f32[4,16,16,16], index: 0, kind: input, shape index: {}]
  %s1 = inlined_call_operand.vmem [shape: bf16[16,64], index: 1, kind: input, shape index: {}]
  %s2 = inlined_call_operand.vmem [shape: f32[1,64], index: 2, kind: input, shape index: {}]
  %s3 = inlined_call_operand.vmem [shape: f32[9,64], index: 3, kind: input, shape index: {}]
  %s4 = inlined_call_operand.vmem [shape: f32[1,64], index: 4, kind: input, shape index: {}]
  %s5 = inlined_call_operand.vmem [shape: bf16[64,16], index: 5, kind: input, shape index: {}]
  %s6 = inlined_call_operand.vmem [shape: f32[1,16], index: 6, kind: input, shape index: {}]
  %s7 = inlined_call_operand.vmem [shape: f32[1024,16], index: 7, kind: output, shape index: {}]
  %s8 = sld [smem:[#allocation0]]
  $region65: #{tpu_custom_call.1} parent=0
    _
  %s10 = ssub.s32 1, %s8
  %s11 = scalar_select 0, %s10, %s8
  $region1: #{tpu_custom_call.1} parent=0
    #allocation3 [shape = 'u8[524288]{0}', space=vmem, size = 0x80000, scoped, tag = 'input window, operand 0']
    #allocation4 [shape = 's32[2]{0}', space=sflag, size = 0x8, scoped, tag = 'scoped memory for tpu_custom_call.1']
    %12 = vsyncpa [#allocation4], 0
    %s13 = scalar_lea.sflag [#allocation4], 1
    %14 = vsyncpa %s13, 0
    loop: start=0, step=1, limit=4
    $region2: #{tpu_custom_call.1} parent=1 // loop_pre_header
      _
    $region3: #{tpu_custom_call.1} parent=1 // loop_header
      %s16 = sphi 0, %s20
      %p17 = scmp.ge.s32.totalorder %s16, 4
      %s26 = sphi 0, %s28
      %s29 = sphi 0, %s26
      %s30 = sphi 0, %s29
      %s46 = sphi 0, %s30
      %s50 = sphi 0, %s50
      %s52 = sphi 0, %s50
      %s53 = sphi 0, %s52
      %s67 = sphi 0, %s53
      %s71 = sphi 0, %s71
      %s73 = sphi 0, %s71
      %s74 = sphi 0, %s73
      %s88 = sphi 0, %s74
      %s92 = sphi 0, %s92
      %s94 = sphi 0, %s92
      %s95 = sphi 0, %s94
      %s109 = sphi 0, %s95
      %s113 = sphi 0, %s113
      %s115 = sphi 0, %s113
      %s116 = sphi 0, %s115
      %s130 = sphi 0, %s116
      %s134 = sphi 0, %s134
      %s136 = sphi 0, %s134
      %s137 = sphi 0, %s136
      %s151 = sphi 0, %s137
      %s155 = sphi 0, %s155
      %s157 = sphi 0, %s155
      %s158 = sphi 0, %s157
      %s172 = sphi 0, %s158
      %s178 = sphi 0, %s180
      %s181 = sphi 0, %s178
      %s182 = sphi 0, %s181
      %s198 = sphi 0, %s182
    $region4: #{tpu_custom_call.1} parent=1 // loop_header_branch
      %19 = sbr.rel (%p17) target = $region8
    $region5: #{tpu_custom_call.1} parent=1 // loop_body
      %s21 = ssub.s32 %s16, 1
      %s22 = ssub.s32 %s16, 2
      %s23 = sadd.s32 %s16, 1
      %s24 = ssub.s32 %s16, %s23
      %p25 = scmp.eq.s32.totalorder %s24, 0
      %s27 = sadd.s32 %s26, 1
      %s28 = scalar_select %p25, %s26, %s27
      %p31 = pneg %p25
      %p32 = scmp.eq.s32.totalorder %s16, 1
      %p33 = por %p31, %p32
      %p34 = scmp.ne.s32.totalorder %s26, %s29
      %p35 = scmp.eq.s32.totalorder %s16, 0
      %p36 = por %p34, %p35
      %p37 = scmp.ne.s32.totalorder %s26, %s29
      %p38 = scmp.eq.s32.totalorder %s21, 1
      %p39 = por %p37, %p38
      %p40 = scmp.ne.s32.totalorder %s29, %s30
      %p41 = scmp.eq.s32.totalorder %s21, 0
      %p42 = por %p40, %p41
      %p43 = scmp.ne.s32.totalorder %s29, %s30
      %p44 = scmp.eq.s32.totalorder %s22, 1
      %p45 = por %p43, %p44
      %p47 = scmp.ne.s32.totalorder %s30, %s46
      %p48 = scmp.eq.s32.totalorder %s22, 0
      %p49 = por %p47, %p48
      %s51 = sadd.s32 %s50, 1
      %p54 = scmp.eq.s32.totalorder %s16, 1
      %p55 = scmp.ne.s32.totalorder %s50, %s52
      %p56 = scmp.eq.s32.totalorder %s16, 0
      %p57 = por %p55, %p56
      %p58 = scmp.ne.s32.totalorder %s50, %s52
      %p59 = scmp.eq.s32.totalorder %s21, 1
      %p60 = por %p58, %p59
      %p61 = scmp.ne.s32.totalorder %s52, %s53
      %p62 = scmp.eq.s32.totalorder %s21, 0
      %p63 = por %p61, %p62
      %p64 = scmp.ne.s32.totalorder %s52, %s53
      %p65 = scmp.eq.s32.totalorder %s22, 1
      %p66 = por %p64, %p65
      %p68 = scmp.ne.s32.totalorder %s53, %s67
      %p69 = scmp.eq.s32.totalorder %s22, 0
      %p70 = por %p68, %p69
      %s72 = sadd.s32 %s71, 1
      %p75 = scmp.eq.s32.totalorder %s16, 1
      %p76 = scmp.ne.s32.totalorder %s71, %s73
      %p77 = scmp.eq.s32.totalorder %s16, 0
      %p78 = por %p76, %p77
      %p79 = scmp.ne.s32.totalorder %s71, %s73
      %p80 = scmp.eq.s32.totalorder %s21, 1
      %p81 = por %p79, %p80
      %p82 = scmp.ne.s32.totalorder %s73, %s74
      %p83 = scmp.eq.s32.totalorder %s21, 0
      %p84 = por %p82, %p83
      %p85 = scmp.ne.s32.totalorder %s73, %s74
      %p86 = scmp.eq.s32.totalorder %s22, 1
      %p87 = por %p85, %p86
      %p89 = scmp.ne.s32.totalorder %s74, %s88
      %p90 = scmp.eq.s32.totalorder %s22, 0
      %p91 = por %p89, %p90
      %s93 = sadd.s32 %s92, 1
      %p96 = scmp.eq.s32.totalorder %s16, 1
      %p97 = scmp.ne.s32.totalorder %s92, %s94
      %p98 = scmp.eq.s32.totalorder %s16, 0
      %p99 = por %p97, %p98
      %p100 = scmp.ne.s32.totalorder %s92, %s94
      %p101 = scmp.eq.s32.totalorder %s21, 1
      %p102 = por %p100, %p101
      %p103 = scmp.ne.s32.totalorder %s94, %s95
      %p104 = scmp.eq.s32.totalorder %s21, 0
      %p105 = por %p103, %p104
      %p106 = scmp.ne.s32.totalorder %s94, %s95
      %p107 = scmp.eq.s32.totalorder %s22, 1
      %p108 = por %p106, %p107
      %p110 = scmp.ne.s32.totalorder %s95, %s109
      %p111 = scmp.eq.s32.totalorder %s22, 0
      %p112 = por %p110, %p111
      %s114 = sadd.s32 %s113, 1
      %p117 = scmp.eq.s32.totalorder %s16, 1
      %p118 = scmp.ne.s32.totalorder %s113, %s115
      %p119 = scmp.eq.s32.totalorder %s16, 0
      %p120 = por %p118, %p119
      %p121 = scmp.ne.s32.totalorder %s113, %s115
      %p122 = scmp.eq.s32.totalorder %s21, 1
      %p123 = por %p121, %p122
      %p124 = scmp.ne.s32.totalorder %s115, %s116
      %p125 = scmp.eq.s32.totalorder %s21, 0
      %p126 = por %p124, %p125
      %p127 = scmp.ne.s32.totalorder %s115, %s116
      %p128 = scmp.eq.s32.totalorder %s22, 1
      %p129 = por %p127, %p128
      %p131 = scmp.ne.s32.totalorder %s116, %s130
      %p132 = scmp.eq.s32.totalorder %s22, 0
      %p133 = por %p131, %p132
      %s135 = sadd.s32 %s134, 1
      %p138 = scmp.eq.s32.totalorder %s16, 1
      %p139 = scmp.ne.s32.totalorder %s134, %s136
      %p140 = scmp.eq.s32.totalorder %s16, 0
      %p141 = por %p139, %p140
      %p142 = scmp.ne.s32.totalorder %s134, %s136
      %p143 = scmp.eq.s32.totalorder %s21, 1
      %p144 = por %p142, %p143
      %p145 = scmp.ne.s32.totalorder %s136, %s137
      %p146 = scmp.eq.s32.totalorder %s21, 0
      %p147 = por %p145, %p146
      %p148 = scmp.ne.s32.totalorder %s136, %s137
      %p149 = scmp.eq.s32.totalorder %s22, 1
      %p150 = por %p148, %p149
      %p152 = scmp.ne.s32.totalorder %s137, %s151
      %p153 = scmp.eq.s32.totalorder %s22, 0
      %p154 = por %p152, %p153
      %s156 = sadd.s32 %s155, 1
      %p159 = scmp.eq.s32.totalorder %s16, 1
      %p160 = scmp.ne.s32.totalorder %s155, %s157
      %p161 = scmp.eq.s32.totalorder %s16, 0
      %p162 = por %p160, %p161
      %p163 = scmp.ne.s32.totalorder %s155, %s157
      %p164 = scmp.eq.s32.totalorder %s21, 1
      %p165 = por %p163, %p164
      %p166 = scmp.ne.s32.totalorder %s157, %s158
      %p167 = scmp.eq.s32.totalorder %s21, 0
      %p168 = por %p166, %p167
      %p169 = scmp.ne.s32.totalorder %s157, %s158
      %p170 = scmp.eq.s32.totalorder %s22, 1
      %p171 = por %p169, %p170
      %p173 = scmp.ne.s32.totalorder %s158, %s172
      %p174 = scmp.eq.s32.totalorder %s22, 0
      %p175 = por %p173, %p174
      %s176 = ssub.s32 %s16, %s23
      %p177 = scmp.eq.s32.totalorder %s176, 0
      %s179 = sadd.s32 %s178, 1
      %s180 = scalar_select %p177, %s178, %s179
      %p183 = pneg %p177
      %p184 = scmp.eq.s32.totalorder %s16, 1
      %p185 = por %p183, %p184
      %p186 = scmp.ne.s32.totalorder %s178, %s181
      %p187 = scmp.eq.s32.totalorder %s16, 0
      %p188 = por %p186, %p187
      %p189 = scmp.ne.s32.totalorder %s178, %s181
      %p190 = scmp.eq.s32.totalorder %s21, 1
      %p191 = por %p189, %p190
      %p192 = scmp.ne.s32.totalorder %s181, %s182
      %p193 = scmp.eq.s32.totalorder %s21, 0
      %p194 = por %p192, %p193
      %p195 = scmp.ne.s32.totalorder %s181, %s182
      %p196 = scmp.eq.s32.totalorder %s22, 1
      %p197 = por %p195, %p196
      %p199 = scmp.ne.s32.totalorder %s182, %s198
      %p200 = scmp.eq.s32.totalorder %s22, 0
      %p201 = por %p199, %p200
      %p202 = scmp.le.s32.totalorder 1, %s16
      %p203 = scmp.lt.s32.totalorder %s16, 3
      %p204 = pnand %p202, %p203
      %p205 = pneg %p204
      // Predicated region
      $region9: #{tpu_custom_call.1} parent=5 // pred_check
        _
      $region10: #{tpu_custom_call.1} parent=5 // pred_check_branch
        %207 = sbr.rel (%p204) target = $region12
      $region11: #{tpu_custom_call.1} parent=5 // pred_region
        %s208 = ssub.s32 %s16, 1
        // Predicated region
        $region13: #{tpu_custom_call.1} parent=11 // pred_check
          %p209 = pneg %p63
        $region14: #{tpu_custom_call.1} parent=11 // pred_check_branch
          %211 = sbr.rel (%p209) target = $region16
        $region15: #{tpu_custom_call.1} parent=11 // pred_region
          _
        $region16: #{tpu_custom_call.1} parent=11 // pred_fallthru
          _
        // Predicated region
        $region17: #{tpu_custom_call.1} parent=11 // pred_check
          %p212 = pneg %p84
        $region18: #{tpu_custom_call.1} parent=11 // pred_check_branch
          %214 = sbr.rel (%p212) target = $region20
        $region19: #{tpu_custom_call.1} parent=11 // pred_region
          _
        $region20: #{tpu_custom_call.1} parent=11 // pred_fallthru
          _
        // Predicated region
        $region21: #{tpu_custom_call.1} parent=11 // pred_check
          %p215 = pneg %p105
        $region22: #{tpu_custom_call.1} parent=11 // pred_check_branch
          %217 = sbr.rel (%p215) target = $region24
        $region23: #{tpu_custom_call.1} parent=11 // pred_region
          _
        $region24: #{tpu_custom_call.1} parent=11 // pred_fallthru
          _
        // Predicated region
        $region25: #{tpu_custom_call.1} parent=11 // pred_check
          %p218 = pneg %p126
        $region26: #{tpu_custom_call.1} parent=11 // pred_check_branch
          %220 = sbr.rel (%p218) target = $region28
        $region27: #{tpu_custom_call.1} parent=11 // pred_region
          _
        $region28: #{tpu_custom_call.1} parent=11 // pred_fallthru
          _
        // Predicated region
        $region29: #{tpu_custom_call.1} parent=11 // pred_check
          %p221 = pneg %p147
        $region30: #{tpu_custom_call.1} parent=11 // pred_check_branch
          %223 = sbr.rel (%p221) target = $region32
        $region31: #{tpu_custom_call.1} parent=11 // pred_region
          _
        $region32: #{tpu_custom_call.1} parent=11 // pred_fallthru
          _
        // Predicated region
        $region33: #{tpu_custom_call.1} parent=11 // pred_check
          %p224 = pneg %p168
        $region34: #{tpu_custom_call.1} parent=11 // pred_check_branch
          %226 = sbr.rel (%p224) target = $region36
        $region35: #{tpu_custom_call.1} parent=11 // pred_region
          _
        $region36: #{tpu_custom_call.1} parent=11 // pred_fallthru
          _
      $region12: #{tpu_custom_call.1} parent=5 // pred_fallthru
        _
      %p227 = scmp.lt.s32.totalorder %s16, 2
      // Predicated region
      $region37: #{tpu_custom_call.1} parent=5 // pred_check
        %p228 = pneg %p227
      $region38: #{tpu_custom_call.1} parent=5 // pred_check_branch
        %230 = sbr.rel (%p228) target = $region40
      $region39: #{tpu_custom_call.1} parent=5 // pred_region
        // Predicated region
        $region41: #{tpu_custom_call.1} parent=39 // pred_check
          %p231 = pneg %p36
        $region42: #{tpu_custom_call.1} parent=39 // pred_check_branch
          %233 = sbr.rel (%p231) target = $region44
        $region43: #{tpu_custom_call.1} parent=39 // pred_region
          %s234 = sand.u32 %s26, 1
          %s235 = scalar_lea.sflag [#allocation4], %s234
          %s236 = sand.u32 %s26, 1
          %s237 = smul.addr %s236, 512
          %s238 = scalar_lea.vmem [#allocation3], %s237
          %s239 = smul.u32 2, %s16
          %s241 = ssub.s32 8192, 8192
          %242 = vsyncadd %s235, %s241
          %s243 = smul.addr %s239, 32
          %s244 = smul.addr %s243, 128
          %s245 = scalar_lea.hbm %s0, %s244
          %s246 = sshll.u32 %s238, 4
          %s247 = int_to_ptr.vmem [resolvable:$true] %s246
          %252 = dma.hbm_to_vmem [thread:$0]  %s245, 8192, %s247, %s235, 128, 128, 8
        $region44: #{tpu_custom_call.1} parent=39 // pred_fallthru
          _
      $region40: #{tpu_custom_call.1} parent=5 // pred_fallthru
        _
      %p253 = scmp.le.s32.totalorder 1, %s16
      %p254 = scmp.lt.s32.totalorder %s16, 3
      %p255 = pnand %p253, %p254
      %p256 = pneg %p255
      // Predicated region
      $region45: #{tpu_custom_call.1} parent=5 // pred_check
        _
      $region46: #{tpu_custom_call.1} parent=5 // pred_check_branch
        %258 = sbr.rel (%p255) target = $region48
      $region47: #{tpu_custom_call.1} parent=5 // pred_region
        %s259 = ssub.s32 %s16, 1
        %s260 = sand.u32 %s29, 1
        %s261 = scalar_lea.sflag [#allocation4], %s260
        %s262 = sand.u32 %s29, 1
        %s263 = smul.addr %s262, 512
        %s264 = scalar_lea.vmem [#allocation3], %s263
        // Predicated region
        $region49: #{tpu_custom_call.1} parent=47 // pred_check
          %p265 = pneg %p42
        $region50: #{tpu_custom_call.1} parent=47 // pred_check_branch
          %267 = sbr.rel (%p265) target = $region52
        $region51: #{tpu_custom_call.1} parent=47 // pred_region
          %268 = dma.done %s261, 8192
        $region52: #{tpu_custom_call.1} parent=47 // pred_fallthru
          _
        %s269 = sand.u32 %s29, 1
        %s270 = scalar_lea.sflag [#allocation4], %s269
        %s271 = sand.u32 %s29, 1
        %s272 = smul.addr %s271, 512
        %s273 = scalar_lea.vmem [#allocation3], %s272
        %p274 = pneg %p42
        %p275 = pneg %p39
        %p276 = pneg %p63
        %p277 = pneg %p60
        %p278 = pneg %p84
        %p279 = pneg %p81
        %p280 = pneg %p105
        %p281 = pneg %p102
        %p282 = pneg %p126
        %p283 = pneg %p123
        %p284 = pneg %p147
        %p285 = pneg %p144
        %p286 = pneg %p168
        %p287 = pneg %p165
        %p288 = pneg %p194
        %p289 = pneg %p191
        %s290 = smul.u32 64, %s21
        %p291 = scmp.lt.s32.totalorder %s290, 127
        %s292 = scalar_select %p291, %s290, 127
        %s293 = smul.addr %s292, 8
        %s294 = scalar_lea.vmem %s7, %s293
        %s295 = smul.u32 2, %s21
        %s296 = smul.u32 64, %s21
        %p297 = scmp.lt.s32.totalorder %s296, 127
        %s298 = scalar_select %p297, %s296, 127
        %s299 = smul.addr %s298, 8
        %s300 = scalar_lea.vmem %s7, %s299
        %s301 = smul.u32 64, %s21
        %v303 = vld [vmem:[%s264] sm:$0xff]
        %v304 = vld [vmem:[%s264 + $0x8] sm:$0xff]
        %v305 = vld [vmem:[%s264 + $0x10] sm:$0xff]
        %v306 = vld [vmem:[%s264 + $0x18] sm:$0xff]
        %v307 = vld [vmem:[%s264 + $0x20] sm:$0xff]
        %v308 = vld [vmem:[%s264 + $0x28] sm:$0xff]
        %v309 = vld [vmem:[%s264 + $0x30] sm:$0xff]
        %v310 = vld [vmem:[%s264 + $0x38] sm:$0xff]
        %v311 = vld [vmem:[%s264 + $0x40] sm:$0xff]
        %v312 = vld [vmem:[%s264 + $0x48] sm:$0xff]
        %v313 = vld [vmem:[%s264 + $0x50] sm:$0xff]
        %v314 = vld [vmem:[%s264 + $0x58] sm:$0xff]
        %v315 = vld [vmem:[%s264 + $0x60] sm:$0xff]
        %v316 = vld [vmem:[%s264 + $0x68] sm:$0xff]
        %v317 = vld [vmem:[%s264 + $0x70] sm:$0xff]
        %v318 = vld [vmem:[%s264 + $0x78] sm:$0xff]
        %v319 = vld [vmem:[%s264 + $0x80] sm:$0xff]
        %v320 = vld [vmem:[%s264 + $0x88] sm:$0xff]
        %v321 = vld [vmem:[%s264 + $0x90] sm:$0xff]
        %v322 = vld [vmem:[%s264 + $0x98] sm:$0xff]
        %v323 = vld [vmem:[%s264 + $0xa0] sm:$0xff]
        %v324 = vld [vmem:[%s264 + $0xa8] sm:$0xff]
        %v325 = vld [vmem:[%s264 + $0xb0] sm:$0xff]
        %v326 = vld [vmem:[%s264 + $0xb8] sm:$0xff]
        %v327 = vld [vmem:[%s264 + $0xc0] sm:$0xff]
        %v328 = vld [vmem:[%s264 + $0xc8] sm:$0xff]
        %v329 = vld [vmem:[%s264 + $0xd0] sm:$0xff]
        %v330 = vld [vmem:[%s264 + $0xd8] sm:$0xff]
        %v331 = vld [vmem:[%s264 + $0xe0] sm:$0xff]
        %v332 = vld [vmem:[%s264 + $0xe8] sm:$0xff]
        %v333 = vld [vmem:[%s264 + $0xf0] sm:$0xff]
        %v334 = vld [vmem:[%s264 + $0xf8] sm:$0xff]
        %v335 = vld [vmem:[%s264 + $0x100] sm:$0xff]
        %v336 = vld [vmem:[%s264 + $0x108] sm:$0xff]
        %v337 = vld [vmem:[%s264 + $0x110] sm:$0xff]
        %v338 = vld [vmem:[%s264 + $0x118] sm:$0xff]
        %v339 = vld [vmem:[%s264 + $0x120] sm:$0xff]
        %v340 = vld [vmem:[%s264 + $0x128] sm:$0xff]
        %v341 = vld [vmem:[%s264 + $0x130] sm:$0xff]
        %v342 = vld [vmem:[%s264 + $0x138] sm:$0xff]
        %v343 = vld [vmem:[%s264 + $0x140] sm:$0xff]
        %v344 = vld [vmem:[%s264 + $0x148] sm:$0xff]
        %v345 = vld [vmem:[%s264 + $0x150] sm:$0xff]
        %v346 = vld [vmem:[%s264 + $0x158] sm:$0xff]
        %v347 = vld [vmem:[%s264 + $0x160] sm:$0xff]
        %v348 = vld [vmem:[%s264 + $0x168] sm:$0xff]
        %v349 = vld [vmem:[%s264 + $0x170] sm:$0xff]
        %v350 = vld [vmem:[%s264 + $0x178] sm:$0xff]
        %v351 = vld [vmem:[%s264 + $0x180] sm:$0xff]
        %v352 = vld [vmem:[%s264 + $0x188] sm:$0xff]
        %v353 = vld [vmem:[%s264 + $0x190] sm:$0xff]
        %v354 = vld [vmem:[%s264 + $0x198] sm:$0xff]
        %v355 = vld [vmem:[%s264 + $0x1a0] sm:$0xff]
        %v356 = vld [vmem:[%s264 + $0x1a8] sm:$0xff]
        %v357 = vld [vmem:[%s264 + $0x1b0] sm:$0xff]
        %v358 = vld [vmem:[%s264 + $0x1b8] sm:$0xff]
        %v359 = vld [vmem:[%s264 + $0x1c0] sm:$0xff]
        %v360 = vld [vmem:[%s264 + $0x1c8] sm:$0xff]
        %v361 = vld [vmem:[%s264 + $0x1d0] sm:$0xff]
        %v362 = vld [vmem:[%s264 + $0x1d8] sm:$0xff]
        %v363 = vld [vmem:[%s264 + $0x1e0] sm:$0xff]
        %v364 = vld [vmem:[%s264 + $0x1e8] sm:$0xff]
        %v365 = vld [vmem:[%s264 + $0x1f0] sm:$0xff]
        %v366 = vld [vmem:[%s264 + $0x1f8] sm:$0xff]
        %v367 = vpack.c.bf16 %v304, %v303
        %v368 = vpack.c.bf16 %v306, %v305
        %v369 = vpack.c.bf16 %v308, %v307
        %v370 = vpack.c.bf16 %v310, %v309
        %v371 = vpack.c.bf16 %v312, %v311
        %v372 = vpack.c.bf16 %v314, %v313
        %v373 = vpack.c.bf16 %v316, %v315
        %v374 = vpack.c.bf16 %v318, %v317
        %v375 = vpack.c.bf16 %v320, %v319
        %v376 = vpack.c.bf16 %v322, %v321
        %v377 = vpack.c.bf16 %v324, %v323
        %v378 = vpack.c.bf16 %v326, %v325
        %v379 = vpack.c.bf16 %v328, %v327
        %v380 = vpack.c.bf16 %v330, %v329
        %v381 = vpack.c.bf16 %v332, %v331
        %v382 = vpack.c.bf16 %v334, %v333
        %v383 = vpack.c.bf16 %v336, %v335
        %v384 = vpack.c.bf16 %v338, %v337
        %v385 = vpack.c.bf16 %v340, %v339
        %v386 = vpack.c.bf16 %v342, %v341
        %v387 = vpack.c.bf16 %v344, %v343
        %v388 = vpack.c.bf16 %v346, %v345
        %v389 = vpack.c.bf16 %v348, %v347
        %v390 = vpack.c.bf16 %v350, %v349
        %v391 = vpack.c.bf16 %v352, %v351
        %v392 = vpack.c.bf16 %v354, %v353
        %v393 = vpack.c.bf16 %v356, %v355
        %v394 = vpack.c.bf16 %v358, %v357
        %v395 = vpack.c.bf16 %v360, %v359
        %v396 = vpack.c.bf16 %v362, %v361
        %v397 = vpack.c.bf16 %v364, %v363
        %v398 = vpack.c.bf16 %v366, %v365
        %v399 = vld [vmem:[%s1] sm:$0xf]
        %v400 = vld [vmem:[%s1 + $0x4] sm:$0xf]
        %v401 = vld [vmem:[%s2] sm:$0x1]
        %v403 = vlaneseq
        %v404 = vshrl.u32 %v403, 7
        %v405 = vsub.s32 0, %v404
        %v406 = vrot.slane %v401, %v405
        %v410 = vunpack.c.l.b16 %v399
        %v411 = vunpack.c.l.b16 %v400
        %v412 = vpack.c.b16 %v411, %v410
        %vm414 = vcmask 130048
        %v416 = vsel %vm414, %v367, 0
        %v419 = vsel %vm414, %v368, 0
        %v422 = vsel %vm414, %v369, 0
        %v425 = vsel %vm414, %v370, 0
        %v428 = vsel %vm414, %v371, 0
        %v431 = vsel %vm414, %v372, 0
        %v434 = vsel %vm414, %v373, 0
        %v437 = vsel %vm414, %v374, 0
        %v440 = vsel %vm414, %v375, 0
        %v443 = vsel %vm414, %v376, 0
        %v446 = vsel %vm414, %v377, 0
        %v449 = vsel %vm414, %v378, 0
        %v452 = vsel %vm414, %v379, 0
        %v455 = vsel %vm414, %v380, 0
        %v458 = vsel %vm414, %v381, 0
        %v461 = vsel %vm414, %v382, 0
        %v464 = vsel %vm414, %v383, 0
        %v467 = vsel %vm414, %v384, 0
        %v470 = vsel %vm414, %v385, 0
        %v473 = vsel %vm414, %v386, 0
        %v476 = vsel %vm414, %v387, 0
        %v479 = vsel %vm414, %v388, 0
        %v482 = vsel %vm414, %v389, 0
        %v485 = vsel %vm414, %v390, 0
        %v488 = vsel %vm414, %v391, 0
        %v491 = vsel %vm414, %v392, 0
        %v494 = vsel %vm414, %v393, 0
        %v497 = vsel %vm414, %v394, 0
        %v500 = vsel %vm414, %v395, 0
        %v503 = vsel %vm414, %v396, 0
        %v506 = vsel %vm414, %v397, 0
        %v509 = vsel %vm414, %v398, 0
        %511 = vmatprep.subr.bf16.mxu0 0
        %512 = vmatpush1.bf16.msra.mxu0 %v412
        %513 = vmatprep.subr.bf16.mxu0 0
        %514 = vmatpush1.bf16.msra.mxu0 0
        %515 = vmatprep.subr.bf16.mxu0 0
        %516 = vmatpush1.bf16.msra.mxu0 0
        %517 = vmatprep.subr.bf16.mxu0 0
        %518 = vmatpush1.bf16.msra.mxu0 0
        %519 = vmatprep.subr.bf16.mxu0 0
        %520 = vmatpush1.bf16.msra.mxu0 0
        %521 = vmatprep.subr.bf16.mxu0 0
        %522 = vmatpush1.bf16.msra.mxu0 0
        %523 = vmatprep.subr.bf16.mxu0 0
        %524 = vmatpush1.bf16.msra.mxu0 0
        %525 = vmatprep.subr.bf16.mxu0 0
        %526 = vmatpush1.bf16.msra.mxu0 0
        %527 = vmatprep.subr.bf16.mxu0 0
        %528 = vmatpush1.bf16.msra.mxu0 0
        %529 = vmatprep.subr.bf16.mxu0 0
        %530 = vmatpush1.bf16.msra.mxu0 0
        %531 = vmatprep.subr.bf16.mxu0 0
        %532 = vmatpush1.bf16.msra.mxu0 0
        %533 = vmatprep.subr.bf16.mxu0 0
        %534 = vmatpush1.bf16.msra.mxu0 0
        %535 = vmatprep.subr.bf16.mxu0 0
        %536 = vmatpush1.bf16.msra.mxu0 0
        %537 = vmatprep.subr.bf16.mxu0 0
        %538 = vmatpush1.bf16.msra.mxu0 0
        %539 = vmatprep.subr.bf16.mxu0 0
        %540 = vmatpush1.bf16.msra.mxu0 0
        %541 = vmatprep.subr.bf16.mxu0 0
        %542 = vmatpush1.bf16.msra.mxu0 0
        %543 = vmatprep.mubr.bf16.mxu0 0
        %544 = vmatmul.mubr.bf16.gmra.mrb[0].mxu0 %v416
        %v545 = vpop.f32.mrb[0].mxu0
        %v546 = vadd.f32 %v406, %v545
        %v547 = vpop.f32.mrb[0].mxu0
        %v548 = vpop.f32.mrb[0].mxu0
        %v549 = vadd.f32 %v406, %v548
        %v550 = vpop.f32.mrb[0].mxu0
        %551 = vmatprep.mubr.bf16.mxu0 0
        %552 = vmatmul.mubr.bf16.gmra.mrb[0].mxu0 %v419
        %v553 = vpop.f32.mrb[0].mxu0
        %v554 = vadd.f32 %v406, %v553
        %v555 = vpop.f32.mrb[0].mxu0
        %v556 = vpop.f32.mrb[0].mxu0
        %v557 = vadd.f32 %v406, %v556
        %v558 = vpop.f32.mrb[0].mxu0
        %559 = vmatprep.mubr.bf16.mxu0 0
        %560 = vmatmul.mubr.bf16.gmra.mrb[0].mxu0 %v422
        %v561 = vpop.f32.mrb[0].mxu0
        %v562 = vadd.f32 %v406, %v561
        %v563 = vpop.f32.mrb[0].mxu0
        %v564 = vpop.f32.mrb[0].mxu0
        %v565 = vadd.f32 %v406, %v564
        %v566 = vpop.f32.mrb[0].mxu0
        %567 = vmatprep.mubr.bf16.mxu0 0
        %568 = vmatmul.mubr.bf16.gmra.mrb[0].mxu0 %v425
        %v569 = vpop.f32.mrb[0].mxu0
        %v570 = vadd.f32 %v406, %v569
        %v571 = vpop.f32.mrb[0].mxu0
        %v572 = vpop.f32.mrb[0].mxu0
        %v573 = vadd.f32 %v406, %v572
        %v574 = vpop.f32.mrb[0].mxu0
        %575 = vmatprep.mubr.bf16.mxu0 0
        %576 = vmatmul.mubr.bf16.gmra.mrb[0].mxu0 %v428
        %v577 = vpop.f32.mrb[0].mxu0
        %v578 = vadd.f32 %v406, %v577
        %v579 = vpop.f32.mrb[0].mxu0
        %v580 = vpop.f32.mrb[0].mxu0
        %v581 = vadd.f32 %v406, %v580
        %v582 = vpop.f32.mrb[0].mxu0
        %583 = vmatprep.mubr.bf16.mxu0 0
        %584 = vmatmul.mubr.bf16.gmra.mrb[0].mxu0 %v431
        %v585 = vpop.f32.mrb[0].mxu0
        %v586 = vadd.f32 %v406, %v585
        %v587 = vpop.f32.mrb[0].mxu0
        %v588 = vpop.f32.mrb[0].mxu0
        %v589 = vadd.f32 %v406, %v588
        %v590 = vpop.f32.mrb[0].mxu0
        %591 = vmatprep.mubr.bf16.mxu0 0
        %592 = vmatmul.mubr.bf16.gmra.mrb[0].mxu0 %v434
        %v593 = vpop.f32.mrb[0].mxu0
        %v594 = vadd.f32 %v406, %v593
        %v595 = vpop.f32.mrb[0].mxu0
        %v596 = vpop.f32.mrb[0].mxu0
        %v597 = vadd.f32 %v406, %v596
        %v598 = vpop.f32.mrb[0].mxu0
        %599 = vmatprep.mubr.bf16.mxu0 0
        %600 = vmatmul.mubr.bf16.gmra.mrb[0].mxu0 %v437
        %v601 = vpop.f32.mrb[0].mxu0
        %v602 = vadd.f32 %v406, %v601
        %v603 = vpop.f32.mrb[0].mxu0
        %v604 = vpop.f32.mrb[0].mxu0
        %v605 = vadd.f32 %v406, %v604
        %v606 = vpop.f32.mrb[0].mxu0
        %607 = vmatprep.mubr.bf16.mxu0 0
        %608 = vmatmul.mubr.bf16.gmra.mrb[0].mxu0 %v440
        %v609 = vpop.f32.mrb[0].mxu0
        %v610 = vadd.f32 %v406, %v609
        %v611 = vpop.f32.mrb[0].mxu0
        %v612 = vpop.f32.mrb[0].mxu0
        %v613 = vadd.f32 %v406, %v612
        %v614 = vpop.f32.mrb[0].mxu0
        %615 = vmatprep.mubr.bf16.mxu0 0
        %616 = vmatmul.mubr.bf16.gmra.mrb[0].mxu0 %v443
        %v617 = vpop.f32.mrb[0].mxu0
        %v618 = vadd.f32 %v406, %v617
        %v619 = vpop.f32.mrb[0].mxu0
        %v620 = vpop.f32.mrb[0].mxu0
        %v621 = vadd.f32 %v406, %v620
        %v622 = vpop.f32.mrb[0].mxu0
        %623 = vmatprep.mubr.bf16.mxu0 0
        %624 = vmatmul.mubr.bf16.gmra.mrb[0].mxu0 %v446
        %v625 = vpop.f32.mrb[0].mxu0
        %v626 = vadd.f32 %v406, %v625
        %v627 = vpop.f32.mrb[0].mxu0
        %v628 = vpop.f32.mrb[0].mxu0
        %v629 = vadd.f32 %v406, %v628
        %v630 = vpop.f32.mrb[0].mxu0
        %631 = vmatprep.mubr.bf16.mxu0 0
        %632 = vmatmul.mubr.bf16.gmra.mrb[0].mxu0 %v449
        %v633 = vpop.f32.mrb[0].mxu0
        %v634 = vadd.f32 %v406, %v633
        %v635 = vpop.f32.mrb[0].mxu0
        %v636 = vpop.f32.mrb[0].mxu0
        %v637 = vadd.f32 %v406, %v636
        %v638 = vpop.f32.mrb[0].mxu0
        %639 = vmatprep.mubr.bf16.mxu0 0
        %640 = vmatmul.mubr.bf16.gmra.mrb[0].mxu0 %v452
        %v641 = vpop.f32.mrb[0].mxu0
        %v642 = vadd.f32 %v406, %v641
        %v643 = vpop.f32.mrb[0].mxu0
        %v644 = vpop.f32.mrb[0].mxu0
        %v645 = vadd.f32 %v406, %v644
        %v646 = vpop.f32.mrb[0].mxu0
        %647 = vmatprep.mubr.bf16.mxu0 0
        %648 = vmatmul.mubr.bf16.gmra.mrb[0].mxu0 %v455
        %v649 = vpop.f32.mrb[0].mxu0
        %v650 = vadd.f32 %v406, %v649
        %v651 = vpop.f32.mrb[0].mxu0
        %v652 = vpop.f32.mrb[0].mxu0
        %v653 = vadd.f32 %v406, %v652
        %v654 = vpop.f32.mrb[0].mxu0
        %655 = vmatprep.mubr.bf16.mxu0 0
        %656 = vmatmul.mubr.bf16.gmra.mrb[0].mxu0 %v458
        %v657 = vpop.f32.mrb[0].mxu0
        %v658 = vadd.f32 %v406, %v657
        %v659 = vpop.f32.mrb[0].mxu0
        %v660 = vpop.f32.mrb[0].mxu0
        %v661 = vadd.f32 %v406, %v660
        %v662 = vpop.f32.mrb[0].mxu0
        %663 = vmatprep.mubr.bf16.mxu0 0
        %664 = vmatmul.mubr.bf16.gmra.mrb[0].mxu0 %v461
        %v665 = vpop.f32.mrb[0].mxu0
        %v666 = vadd.f32 %v406, %v665
        %v667 = vpop.f32.mrb[0].mxu0
        %v668 = vpop.f32.mrb[0].mxu0
        %v669 = vadd.f32 %v406, %v668
        %v670 = vpop.f32.mrb[0].mxu0
        %671 = vmatprep.mubr.bf16.mxu0 0
        %672 = vmatmul.mubr.bf16.gmra.mrb[0].mxu0 %v464
        %v673 = vpop.f32.mrb[0].mxu0
        %v674 = vadd.f32 %v406, %v673
        %v675 = vpop.f32.mrb[0].mxu0
        %v676 = vpop.f32.mrb[0].mxu0
        %v677 = vadd.f32 %v406, %v676
        %v678 = vpop.f32.mrb[0].mxu0
        %679 = vmatprep.mubr.bf16.mxu0 0
        %680 = vmatmul.mubr.bf16.gmra.mrb[0].mxu0 %v467
        %v681 = vpop.f32.mrb[0].mxu0
        %v682 = vadd.f32 %v406, %v681
        %v683 = vpop.f32.mrb[0].mxu0
        %v684 = vpop.f32.mrb[0].mxu0
        %v685 = vadd.f32 %v406, %v684
        %v686 = vpop.f32.mrb[0].mxu0
        %687 = vmatprep.mubr.bf16.mxu0 0
        %688 = vmatmul.mubr.bf16.gmra.mrb[0].mxu0 %v470
        %v689 = vpop.f32.mrb[0].mxu0
        %v690 = vadd.f32 %v406, %v689
        %v691 = vpop.f32.mrb[0].mxu0
        %v692 = vpop.f32.mrb[0].mxu0
        %v693 = vadd.f32 %v406, %v692
        %v694 = vpop.f32.mrb[0].mxu0
        %695 = vmatprep.mubr.bf16.mxu0 0
        %696 = vmatmul.mubr.bf16.gmra.mrb[0].mxu0 %v473
        %v697 = vpop.f32.mrb[0].mxu0
        %v698 = vadd.f32 %v406, %v697
        %v699 = vpop.f32.mrb[0].mxu0
        %v700 = vpop.f32.mrb[0].mxu0
        %v701 = vadd.f32 %v406, %v700
        %v702 = vpop.f32.mrb[0].mxu0
        %703 = vmatprep.mubr.bf16.mxu0 0
        %704 = vmatmul.mubr.bf16.gmra.mrb[0].mxu0 %v476
        %v705 = vpop.f32.mrb[0].mxu0
        %v706 = vadd.f32 %v406, %v705
        %v707 = vpop.f32.mrb[0].mxu0
        %v708 = vpop.f32.mrb[0].mxu0
        %v709 = vadd.f32 %v406, %v708
        %v710 = vpop.f32.mrb[0].mxu0
        %711 = vmatprep.mubr.bf16.mxu0 0
        %712 = vmatmul.mubr.bf16.gmra.mrb[0].mxu0 %v479
        %v713 = vpop.f32.mrb[0].mxu0
        %v714 = vadd.f32 %v406, %v713
        %v715 = vpop.f32.mrb[0].mxu0
        %v716 = vpop.f32.mrb[0].mxu0
        %v717 = vadd.f32 %v406, %v716
        %v718 = vpop.f32.mrb[0].mxu0
        %719 = vmatprep.mubr.bf16.mxu0 0
        %720 = vmatmul.mubr.bf16.gmra.mrb[0].mxu0 %v482
        %v721 = vpop.f32.mrb[0].mxu0
        %v722 = vadd.f32 %v406, %v721
        %v723 = vpop.f32.mrb[0].mxu0
        %v724 = vpop.f32.mrb[0].mxu0
        %v725 = vadd.f32 %v406, %v724
        %v726 = vpop.f32.mrb[0].mxu0
        %727 = vmatprep.mubr.bf16.mxu0 0
        %728 = vmatmul.mubr.bf16.gmra.mrb[0].mxu0 %v485
        %v729 = vpop.f32.mrb[0].mxu0
        %v730 = vadd.f32 %v406, %v729
        %v731 = vpop.f32.mrb[0].mxu0
        %v732 = vpop.f32.mrb[0].mxu0
        %v733 = vadd.f32 %v406, %v732
        %v734 = vpop.f32.mrb[0].mxu0
        %735 = vmatprep.mubr.bf16.mxu0 0
        %736 = vmatmul.mubr.bf16.gmra.mrb[0].mxu0 %v488
        %v737 = vpop.f32.mrb[0].mxu0
        %v738 = vadd.f32 %v406, %v737
        %v739 = vpop.f32.mrb[0].mxu0
        %v740 = vpop.f32.mrb[0].mxu0
        %v741 = vadd.f32 %v406, %v740
        %v742 = vpop.f32.mrb[0].mxu0
        %743 = vmatprep.mubr.bf16.mxu0 0
        %744 = vmatmul.mubr.bf16.gmra.mrb[0].mxu0 %v491
        %v745 = vpop.f32.mrb[0].mxu0
        %v746 = vadd.f32 %v406, %v745
        %v747 = vpop.f32.mrb[0].mxu0
        %v748 = vpop.f32.mrb[0].mxu0
        %v749 = vadd.f32 %v406, %v748
        %v750 = vpop.f32.mrb[0].mxu0
        %751 = vmatprep.mubr.bf16.mxu0 0
        %752 = vmatmul.mubr.bf16.gmra.mrb[0].mxu0 %v494
        %v753 = vpop.f32.mrb[0].mxu0
        %v754 = vadd.f32 %v406, %v753
        %v755 = vpop.f32.mrb[0].mxu0
        %v756 = vpop.f32.mrb[0].mxu0
        %v757 = vadd.f32 %v406, %v756
        %v758 = vpop.f32.mrb[0].mxu0
        %759 = vmatprep.mubr.bf16.mxu0 0
        %760 = vmatmul.mubr.bf16.gmra.mrb[0].mxu0 %v497
        %v761 = vpop.f32.mrb[0].mxu0
        %v762 = vadd.f32 %v406, %v761
        %v763 = vpop.f32.mrb[0].mxu0
        %v764 = vpop.f32.mrb[0].mxu0
        %v765 = vadd.f32 %v406, %v764
        %v766 = vpop.f32.mrb[0].mxu0
        %767 = vmatprep.mubr.bf16.mxu0 0
        %768 = vmatmul.mubr.bf16.gmra.mrb[0].mxu0 %v500
        %v769 = vpop.f32.mrb[0].mxu0
        %v770 = vadd.f32 %v406, %v769
        %v771 = vpop.f32.mrb[0].mxu0
        %v772 = vpop.f32.mrb[0].mxu0
        %v773 = vadd.f32 %v406, %v772
        %v774 = vpop.f32.mrb[0].mxu0
        %775 = vmatprep.mubr.bf16.mxu0 0
        %776 = vmatmul.mubr.bf16.gmra.mrb[0].mxu0 %v503
        %v777 = vpop.f32.mrb[0].mxu0
        %v778 = vadd.f32 %v406, %v777
        %v779 = vpop.f32.mrb[0].mxu0
        %v780 = vpop.f32.mrb[0].mxu0
        %v781 = vadd.f32 %v406, %v780
        %v782 = vpop.f32.mrb[0].mxu0
        %783 = vmatprep.mubr.bf16.mxu0 0
        %784 = vmatmul.mubr.bf16.gmra.mrb[0].mxu0 %v506
        %v785 = vpop.f32.mrb[0].mxu0
        %v786 = vadd.f32 %v406, %v785
        %v787 = vpop.f32.mrb[0].mxu0
        %v788 = vpop.f32.mrb[0].mxu0
        %v789 = vadd.f32 %v406, %v788
        %v790 = vpop.f32.mrb[0].mxu0
        %791 = vmatprep.mubr.bf16.mxu0 0
        %792 = vmatmul.mubr.bf16.gmra.mrb[0].mxu0 %v509
        %v793 = vpop.f32.mrb[0].mxu0
        %v794 = vadd.f32 %v406, %v793
        %v795 = vpop.f32.mrb[0].mxu0
        %v796 = vpop.f32.mrb[0].mxu0
        %v797 = vadd.f32 %v406, %v796
        %v798 = vpop.f32.mrb[0].mxu0
        %799 = vdwg.mxu0
        %v800 = vmax.f32 %v546, 0.0
        %v801 = vmax.f32 %v549, 0.0
        %v802 = vmax.f32 %v554, 0.0
        %v803 = vmax.f32 %v557, 0.0
        %v804 = vmax.f32 %v562, 0.0
        %v805 = vmax.f32 %v565, 0.0
        %v806 = vmax.f32 %v570, 0.0
        %v807 = vmax.f32 %v573, 0.0
        %v808 = vmax.f32 %v578, 0.0
        %v809 = vmax.f32 %v581, 0.0
        %v810 = vmax.f32 %v586, 0.0
        %v811 = vmax.f32 %v589, 0.0
        %v812 = vmax.f32 %v594, 0.0
        %v813 = vmax.f32 %v597, 0.0
        %v814 = vmax.f32 %v602, 0.0
        %v815 = vmax.f32 %v605, 0.0
        %v816 = vmax.f32 %v610, 0.0
        %v817 = vmax.f32 %v613, 0.0
        %v818 = vmax.f32 %v618, 0.0
        %v819 = vmax.f32 %v621, 0.0
        %v820 = vmax.f32 %v626, 0.0
        %v821 = vmax.f32 %v629, 0.0
        %v822 = vmax.f32 %v634, 0.0
        %v823 = vmax.f32 %v637, 0.0
        %v824 = vmax.f32 %v642, 0.0
        %v825 = vmax.f32 %v645, 0.0
        %v826 = vmax.f32 %v650, 0.0
        %v827 = vmax.f32 %v653, 0.0
        %v828 = vmax.f32 %v658, 0.0
        %v829 = vmax.f32 %v661, 0.0
        %v830 = vmax.f32 %v666, 0.0
        %v831 = vmax.f32 %v669, 0.0
        %v832 = vmax.f32 %v674, 0.0
        %v833 = vmax.f32 %v677, 0.0
        %v834 = vmax.f32 %v682, 0.0
        %v835 = vmax.f32 %v685, 0.0
        %v836 = vmax.f32 %v690, 0.0
        %v837 = vmax.f32 %v693, 0.0
        %v838 = vmax.f32 %v698, 0.0
        %v839 = vmax.f32 %v701, 0.0
        %v840 = vmax.f32 %v706, 0.0
        %v841 = vmax.f32 %v709, 0.0
        %v842 = vmax.f32 %v714, 0.0
        %v843 = vmax.f32 %v717, 0.0
        %v844 = vmax.f32 %v722, 0.0
        %v845 = vmax.f32 %v725, 0.0
        %v846 = vmax.f32 %v730, 0.0
        %v847 = vmax.f32 %v733, 0.0
        %v848 = vmax.f32 %v738, 0.0
        %v849 = vmax.f32 %v741, 0.0
        %v850 = vmax.f32 %v746, 0.0
        %v851 = vmax.f32 %v749, 0.0
        %v852 = vmax.f32 %v754, 0.0
        %v853 = vmax.f32 %v757, 0.0
        %v854 = vmax.f32 %v762, 0.0
        %v855 = vmax.f32 %v765, 0.0
        %v856 = vmax.f32 %v770, 0.0
        %v857 = vmax.f32 %v773, 0.0
        %v858 = vmax.f32 %v778, 0.0
        %v859 = vmax.f32 %v781, 0.0
        %v860 = vmax.f32 %v786, 0.0
        %v861 = vmax.f32 %v789, 0.0
        %v862 = vmax.f32 %v794, 0.0
        %v863 = vmax.f32 %v797, 0.0
        %vm864 = vcmask 523264
        %865 = vst.msk [vmem:[#allocation2] sm:$0xff] %vm864, 0.0
        %866 = vst.msk [vmem:[#allocation2 + $0x8] sm:$0xff] %vm864, 0.0
        %vm867 = vcmask 517120
        %868 = vst.msk [vmem:[#allocation2 + $0x10] sm:$0x3] %vm867, 0.0
        %869 = vst.msk [vmem:[#allocation2 + $0x1b0] sm:$0xff] %vm864, 0.0
        %870 = vst.msk [vmem:[#allocation2 + $0x1b8] sm:$0xff] %vm864, 0.0
        %871 = vst.msk [vmem:[#allocation2 + $0x1c0] sm:$0x3] %vm867, 0.0
        %s872 = scalar_lea.vmem [#allocation2], 408
        %873 = vst.msk [vmem:[%s872] sm:$0xff] %vm864, 0.0
        %874 = vst.msk [vmem:[%s872 + $0x8] sm:$0xff] %vm864, 0.0
        %875 = vst.msk [vmem:[%s872 + $0x10] sm:$0x3] %vm867, 0.0
        %876 = vst.msk [vmem:[%s872 + $0x1b0] sm:$0xff] %vm864, 0.0
        %877 = vst.msk [vmem:[%s872 + $0x1b8] sm:$0xff] %vm864, 0.0
        %878 = vst.msk [vmem:[%s872 + $0x1c0] sm:$0x3] %vm867, 0.0
        %vm879 = vcmask 516096
        %880 = vst.msk [vmem:[#allocation2] sm:$0x1] %vm879, 0.0
        %881 = vst.msk [vmem:[#allocation2 + $0x18] sm:$0x1] %vm879, 0.0
        %882 = vst.msk [vmem:[#allocation2 + $0x30] sm:$0x1] %vm879, 0.0
        %883 = vst.msk [vmem:[#allocation2 + $0x48] sm:$0x1] %vm879, 0.0
        %884 = vst.msk [vmem:[#allocation2 + $0x60] sm:$0x1] %vm879, 0.0
        %885 = vst.msk [vmem:[#allocation2 + $0x78] sm:$0x1] %vm879, 0.0
        %886 = vst.msk [vmem:[#allocation2 + $0x90] sm:$0x1] %vm879, 0.0
        %887 = vst.msk [vmem:[#allocation2 + $0xa8] sm:$0x1] %vm879, 0.0
        %888 = vst.msk [vmem:[#allocation2 + $0xc0] sm:$0x1] %vm879, 0.0
        %889 = vst.msk [vmem:[#allocation2 + $0xd8] sm:$0x1] %vm879, 0.0
        %890 = vst.msk [vmem:[#allocation2 + $0xf0] sm:$0x1] %vm879, 0.0
        %891 = vst.msk [vmem:[#allocation2 + $0x108] sm:$0x1] %vm879, 0.0
        %892 = vst.msk [vmem:[#allocation2 + $0x120] sm:$0x1] %vm879, 0.0
        %893 = vst.msk [vmem:[#allocation2 + $0x138] sm:$0x1] %vm879, 0.0
        %894 = vst.msk [vmem:[#allocation2 + $0x150] sm:$0x1] %vm879, 0.0
        %895 = vst.msk [vmem:[#allocation2 + $0x168] sm:$0x1] %vm879, 0.0
        %896 = vst.msk [vmem:[#allocation2 + $0x180] sm:$0x1] %vm879, 0.0
        %897 = vst.msk [vmem:[#allocation2 + $0x198] sm:$0x1] %vm879, 0.0
        %898 = vst.msk [vmem:[#allocation2 + $0x1b0] sm:$0x1] %vm879, 0.0
        %899 = vst.msk [vmem:[#allocation2 + $0x1c8] sm:$0x1] %vm879, 0.0
        %900 = vst.msk [vmem:[#allocation2 + $0x1e0] sm:$0x1] %vm879, 0.0
        %901 = vst.msk [vmem:[#allocation2 + $0x1f8] sm:$0x1] %vm879, 0.0
        %902 = vst.msk [vmem:[#allocation2 + $0x210] sm:$0x1] %vm879, 0.0
        %903 = vst.msk [vmem:[#allocation2 + $0x228] sm:$0x1] %vm879, 0.0
        %904 = vst.msk [vmem:[#allocation2 + $0x240] sm:$0x1] %vm879, 0.0
        %905 = vst.msk [vmem:[#allocation2 + $0x258] sm:$0x1] %vm879, 0.0
        %906 = vst.msk [vmem:[#allocation2 + $0x270] sm:$0x1] %vm879, 0.0
        %907 = vst.msk [vmem:[#allocation2 + $0x288] sm:$0x1] %vm879, 0.0
        %908 = vst.msk [vmem:[#allocation2 + $0x2a0] sm:$0x1] %vm879, 0.0
        %909 = vst.msk [vmem:[#allocation2 + $0x2b8] sm:$0x1] %vm879, 0.0
        %910 = vst.msk [vmem:[#allocation2 + $0x2d0] sm:$0x1] %vm879, 0.0
        %911 = vst.msk [vmem:[#allocation2 + $0x2e8] sm:$0x1] %vm879, 0.0
        %912 = vst.msk [vmem:[#allocation2 + $0x300] sm:$0x1] %vm879, 0.0
        %913 = vst.msk [vmem:[#allocation2 + $0x318] sm:$0x1] %vm879, 0.0
        %914 = vst.msk [vmem:[#allocation2 + $0x330] sm:$0x1] %vm879, 0.0
        %915 = vst.msk [vmem:[#allocation2 + $0x348] sm:$0x1] %vm879, 0.0
        %916 = vst.msk [vmem:[#allocation2 + $0x11] sm:$0x1] %vm879, 0.0
        %917 = vst.msk [vmem:[#allocation2 + $0x29] sm:$0x1] %vm879, 0.0
        %918 = vst.msk [vmem:[#allocation2 + $0x41] sm:$0x1] %vm879, 0.0
        %919 = vst.msk [vmem:[#allocation2 + $0x59] sm:$0x1] %vm879, 0.0
        %920 = vst.msk [vmem:[#allocation2 + $0x71] sm:$0x1] %vm879, 0.0
        %921 = vst.msk [vmem:[#allocation2 + $0x89] sm:$0x1] %vm879, 0.0
        %922 = vst.msk [vmem:[#allocation2 + $0xa1] sm:$0x1] %vm879, 0.0
        %923 = vst.msk [vmem:[#allocation2 + $0xb9] sm:$0x1] %vm879, 0.0
        %924 = vst.msk [vmem:[#allocation2 + $0xd1] sm:$0x1] %vm879, 0.0
        %925 = vst.msk [vmem:[#allocation2 + $0xe9] sm:$0x1] %vm879, 0.0
        %926 = vst.msk [vmem:[#allocation2 + $0x101] sm:$0x1] %vm879, 0.0
        %927 = vst.msk [vmem:[#allocation2 + $0x119] sm:$0x1] %vm879, 0.0
        %928 = vst.msk [vmem:[#allocation2 + $0x131] sm:$0x1] %vm879, 0.0
        %929 = vst.msk [vmem:[#allocation2 + $0x149] sm:$0x1] %vm879, 0.0
        %930 = vst.msk [vmem:[#allocation2 + $0x161] sm:$0x1] %vm879, 0.0
        %931 = vst.msk [vmem:[#allocation2 + $0x179] sm:$0x1] %vm879, 0.0
        %932 = vst.msk [vmem:[#allocation2 + $0x191] sm:$0x1] %vm879, 0.0
        %933 = vst.msk [vmem:[#allocation2 + $0x1a9] sm:$0x1] %vm879, 0.0
        %934 = vst.msk [vmem:[#allocation2 + $0x1c1] sm:$0x1] %vm879, 0.0
        %935 = vst.msk [vmem:[#allocation2 + $0x1d9] sm:$0x1] %vm879, 0.0
        %936 = vst.msk [vmem:[#allocation2 + $0x1f1] sm:$0x1] %vm879, 0.0
        %937 = vst.msk [vmem:[#allocation2 + $0x209] sm:$0x1] %vm879, 0.0
        %938 = vst.msk [vmem:[#allocation2 + $0x221] sm:$0x1] %vm879, 0.0
        %939 = vst.msk [vmem:[#allocation2 + $0x239] sm:$0x1] %vm879, 0.0
        %940 = vst.msk [vmem:[#allocation2 + $0x251] sm:$0x1] %vm879, 0.0
        %941 = vst.msk [vmem:[#allocation2 + $0x269] sm:$0x1] %vm879, 0.0
        %942 = vst.msk [vmem:[#allocation2 + $0x281] sm:$0x1] %vm879, 0.0
        %943 = vst.msk [vmem:[#allocation2 + $0x299] sm:$0x1] %vm879, 0.0
        %944 = vst.msk [vmem:[#allocation2 + $0x2b1] sm:$0x1] %vm879, 0.0
        %945 = vst.msk [vmem:[#allocation2 + $0x2c9] sm:$0x1] %vm879, 0.0
        %946 = vst.msk [vmem:[#allocation2 + $0x2e1] sm:$0x1] %vm879, 0.0
        %947 = vst.msk [vmem:[#allocation2 + $0x2f9] sm:$0x1] %vm879, 0.0
        %948 = vst.msk [vmem:[#allocation2 + $0x311] sm:$0x1] %vm879, 0.0
        %949 = vst.msk [vmem:[#allocation2 + $0x329] sm:$0x1] %vm879, 0.0
        %950 = vst.msk [vmem:[#allocation2 + $0x341] sm:$0x1] %vm879, 0.0
        %951 = vst.msk [vmem:[#allocation2 + $0x359] sm:$0x1] %vm879, 0.0
        %s952 = scalar_lea.vmem [#allocation2], 24
        %953 = vst.msk [vmem:[%s952 + $0x1] sm:$0xff] %vm864, %v800
        %954 = vst.msk [vmem:[%s952 + $0x9] sm:$0xff] %vm864, %v801
        %955 = vst.msk [vmem:[%s952 + $0x19] sm:$0xff] %vm864, %v802
        %956 = vst.msk [vmem:[%s952 + $0x21] sm:$0xff] %vm864, %v803
        %957 = vst.msk [vmem:[%s952 + $0x31] sm:$0xff] %vm864, %v804
        %958 = vst.msk [vmem:[%s952 + $0x39] sm:$0xff] %vm864, %v805
        %959 = vst.msk [vmem:[%s952 + $0x49] sm:$0xff] %vm864, %v806
        %960 = vst.msk [vmem:[%s952 + $0x51] sm:$0xff] %vm864, %v807
        %961 = vst.msk [vmem:[%s952 + $0x61] sm:$0xff] %vm864, %v808
        %962 = vst.msk [vmem:[%s952 + $0x69] sm:$0xff] %vm864, %v809
        %963 = vst.msk [vmem:[%s952 + $0x79] sm:$0xff] %vm864, %v810
        %964 = vst.msk [vmem:[%s952 + $0x81] sm:$0xff] %vm864, %v811
        %965 = vst.msk [vmem:[%s952 + $0x91] sm:$0xff] %vm864, %v812
        %966 = vst.msk [vmem:[%s952 + $0x99] sm:$0xff] %vm864, %v813
        %967 = vst.msk [vmem:[%s952 + $0xa9] sm:$0xff] %vm864, %v814
        %968 = vst.msk [vmem:[%s952 + $0xb1] sm:$0xff] %vm864, %v815
        %969 = vst.msk [vmem:[%s952 + $0xc1] sm:$0xff] %vm864, %v816
        %970 = vst.msk [vmem:[%s952 + $0xc9] sm:$0xff] %vm864, %v817
        %971 = vst.msk [vmem:[%s952 + $0xd9] sm:$0xff] %vm864, %v818
        %972 = vst.msk [vmem:[%s952 + $0xe1] sm:$0xff] %vm864, %v819
        %973 = vst.msk [vmem:[%s952 + $0xf1] sm:$0xff] %vm864, %v820
        %974 = vst.msk [vmem:[%s952 + $0xf9] sm:$0xff] %vm864, %v821
        %975 = vst.msk [vmem:[%s952 + $0x109] sm:$0xff] %vm864, %v822
        %976 = vst.msk [vmem:[%s952 + $0x111] sm:$0xff] %vm864, %v823
        %977 = vst.msk [vmem:[%s952 + $0x121] sm:$0xff] %vm864, %v824
        %978 = vst.msk [vmem:[%s952 + $0x129] sm:$0xff] %vm864, %v825
        %979 = vst.msk [vmem:[%s952 + $0x139] sm:$0xff] %vm864, %v826
        %980 = vst.msk [vmem:[%s952 + $0x141] sm:$0xff] %vm864, %v827
        %981 = vst.msk [vmem:[%s952 + $0x151] sm:$0xff] %vm864, %v828
        %982 = vst.msk [vmem:[%s952 + $0x159] sm:$0xff] %vm864, %v829
        %983 = vst.msk [vmem:[%s952 + $0x169] sm:$0xff] %vm864, %v830
        %984 = vst.msk [vmem:[%s952 + $0x171] sm:$0xff] %vm864, %v831
        %985 = vst.msk [vmem:[%s952 + $0x1b1] sm:$0xff] %vm864, %v832
        %986 = vst.msk [vmem:[%s952 + $0x1b9] sm:$0xff] %vm864, %v833
        %987 = vst.msk [vmem:[%s952 + $0x1c9] sm:$0xff] %vm864, %v834
        %988 = vst.msk [vmem:[%s952 + $0x1d1] sm:$0xff] %vm864, %v835
        %989 = vst.msk [vmem:[%s952 + $0x1e1] sm:$0xff] %vm864, %v836
        %990 = vst.msk [vmem:[%s952 + $0x1e9] sm:$0xff] %vm864, %v837
        %991 = vst.msk [vmem:[%s952 + $0x1f9] sm:$0xff] %vm864, %v838
        %992 = vst.msk [vmem:[%s952 + $0x201] sm:$0xff] %vm864, %v839
        %993 = vst.msk [vmem:[%s952 + $0x211] sm:$0xff] %vm864, %v840
        %994 = vst.msk [vmem:[%s952 + $0x219] sm:$0xff] %vm864, %v841
        %995 = vst.msk [vmem:[%s952 + $0x229] sm:$0xff] %vm864, %v842
        %996 = vst.msk [vmem:[%s952 + $0x231] sm:$0xff] %vm864, %v843
        %997 = vst.msk [vmem:[%s952 + $0x241] sm:$0xff] %vm864, %v844
        %998 = vst.msk [vmem:[%s952 + $0x249] sm:$0xff] %vm864, %v845
        %999 = vst.msk [vmem:[%s952 + $0x259] sm:$0xff] %vm864, %v846
        %1000 = vst.msk [vmem:[%s952 + $0x261] sm:$0xff] %vm864, %v847
        %1001 = vst.msk [vmem:[%s952 + $0x271] sm:$0xff] %vm864, %v848
        %1002 = vst.msk [vmem:[%s952 + $0x279] sm:$0xff] %vm864, %v849
        %1003 = vst.msk [vmem:[%s952 + $0x289] sm:$0xff] %vm864, %v850
        %1004 = vst.msk [vmem:[%s952 + $0x291] sm:$0xff] %vm864, %v851
        %1005 = vst.msk [vmem:[%s952 + $0x2a1] sm:$0xff] %vm864, %v852
        %1006 = vst.msk [vmem:[%s952 + $0x2a9] sm:$0xff] %vm864, %v853
        %1007 = vst.msk [vmem:[%s952 + $0x2b9] sm:$0xff] %vm864, %v854
        %1008 = vst.msk [vmem:[%s952 + $0x2c1] sm:$0xff] %vm864, %v855
        %1009 = vst.msk [vmem:[%s952 + $0x2d1] sm:$0xff] %vm864, %v856
        %1010 = vst.msk [vmem:[%s952 + $0x2d9] sm:$0xff] %vm864, %v857
        %1011 = vst.msk [vmem:[%s952 + $0x2e9] sm:$0xff] %vm864, %v858
        %1012 = vst.msk [vmem:[%s952 + $0x2f1] sm:$0xff] %vm864, %v859
        %1013 = vst.msk [vmem:[%s952 + $0x301] sm:$0xff] %vm864, %v860
        %1014 = vst.msk [vmem:[%s952 + $0x309] sm:$0xff] %vm864, %v861
        %1015 = vst.msk [vmem:[%s952 + $0x319] sm:$0xff] %vm864, %v862
        %1016 = vst.msk [vmem:[%s952 + $0x321] sm:$0xff] %vm864, %v863
        %v1017 = vld [vmem:[#allocation2] sm:$0xff]
        %v1018 = vld [vmem:[#allocation2 + $0x8] sm:$0xff]
        %v1019 = vld [vmem:[#allocation2 + $0x18] sm:$0xff]
        %v1020 = vld [vmem:[#allocation2 + $0x20] sm:$0xff]
        %v1021 = vld [vmem:[#allocation2 + $0x30] sm:$0xff]
        %v1022 = vld [vmem:[#allocation2 + $0x38] sm:$0xff]
        %v1023 = vld [vmem:[#allocation2 + $0x48] sm:$0xff]
        %v1024 = vld [vmem:[#allocation2 + $0x50] sm:$0xff]
        %v1025 = vld [vmem:[#allocation2 + $0x60] sm:$0xff]
        %v1026 = vld [vmem:[#allocation2 + $0x68] sm:$0xff]
        %v1027 = vld [vmem:[#allocation2 + $0x78] sm:$0xff]
        %v1028 = vld [vmem:[#allocation2 + $0x80] sm:$0xff]
        %v1029 = vld [vmem:[#allocation2 + $0x90] sm:$0xff]
        %v1030 = vld [vmem:[#allocation2 + $0x98] sm:$0xff]
        %v1031 = vld [vmem:[#allocation2 + $0xa8] sm:$0xff]
        %v1032 = vld [vmem:[#allocation2 + $0xb0] sm:$0xff]
        %v1033 = vld [vmem:[#allocation2 + $0xc0] sm:$0xff]
        %v1034 = vld [vmem:[#allocation2 + $0xc8] sm:$0xff]
        %v1035 = vld [vmem:[#allocation2 + $0xd8] sm:$0xff]
        %v1036 = vld [vmem:[#allocation2 + $0xe0] sm:$0xff]
        %v1037 = vld [vmem:[#allocation2 + $0xf0] sm:$0xff]
        %v1038 = vld [vmem:[#allocation2 + $0xf8] sm:$0xff]
        %v1039 = vld [vmem:[#allocation2 + $0x108] sm:$0xff]
        %v1040 = vld [vmem:[#allocation2 + $0x110] sm:$0xff]
        %v1041 = vld [vmem:[#allocation2 + $0x120] sm:$0xff]
        %v1042 = vld [vmem:[#allocation2 + $0x128] sm:$0xff]
        %v1043 = vld [vmem:[#allocation2 + $0x138] sm:$0xff]
        %v1044 = vld [vmem:[#allocation2 + $0x140] sm:$0xff]
        %v1045 = vld [vmem:[#allocation2 + $0x150] sm:$0xff]
        %v1046 = vld [vmem:[#allocation2 + $0x158] sm:$0xff]
        %v1047 = vld [vmem:[#allocation2 + $0x168] sm:$0xff]
        %v1048 = vld [vmem:[#allocation2 + $0x170] sm:$0xff]
        %v1049 = vld [vmem:[#allocation2 + $0x1b0] sm:$0xff]
        %v1050 = vld [vmem:[#allocation2 + $0x1b8] sm:$0xff]
        %v1051 = vld [vmem:[#allocation2 + $0x1c8] sm:$0xff]
        %v1052 = vld [vmem:[#allocation2 + $0x1d0] sm:$0xff]
        %v1053 = vld [vmem:[#allocation2 + $0x1e0] sm:$0xff]
        %v1054 = vld [vmem:[#allocation2 + $0x1e8] sm:$0xff]
        %v1055 = vld [vmem:[#allocation2 + $0x1f8] sm:$0xff]
        %v1056 = vld [vmem:[#allocation2 + $0x200] sm:$0xff]
        %v1057 = vld [vmem:[#allocation2 + $0x210] sm:$0xff]
        %v1058 = vld [vmem:[#allocation2 + $0x218] sm:$0xff]
        %v1059 = vld [vmem:[#allocation2 + $0x228] sm:$0xff]
        %v1060 = vld [vmem:[#allocation2 + $0x230] sm:$0xff]
        %v1061 = vld [vmem:[#allocation2 + $0x240] sm:$0xff]
        %v1062 = vld [vmem:[#allocation2 + $0x248] sm:$0xff]
        %v1063 = vld [vmem:[#allocation2 + $0x258] sm:$0xff]
        %v1064 = vld [vmem:[#allocation2 + $0x260] sm:$0xff]
        %v1065 = vld [vmem:[#allocation2 + $0x270] sm:$0xff]
        %v1066 = vld [vmem:[#allocation2 + $0x278] sm:$0xff]
        %v1067 = vld [vmem:[#allocation2 + $0x288] sm:$0xff]
        %v1068 = vld [vmem:[#allocation2 + $0x290] sm:$0xff]
        %v1069 = vld [vmem:[#allocation2 + $0x2a0] sm:$0xff]
        %v1070 = vld [vmem:[#allocation2 + $0x2a8] sm:$0xff]
        %v1071 = vld [vmem:[#allocation2 + $0x2b8] sm:$0xff]
        %v1072 = vld [vmem:[#allocation2 + $0x2c0] sm:$0xff]
        %v1073 = vld [vmem:[#allocation2 + $0x2d0] sm:$0xff]
        %v1074 = vld [vmem:[#allocation2 + $0x2d8] sm:$0xff]
        %v1075 = vld [vmem:[#allocation2 + $0x2e8] sm:$0xff]
        %v1076 = vld [vmem:[#allocation2 + $0x2f0] sm:$0xff]
        %v1077 = vld [vmem:[#allocation2 + $0x300] sm:$0xff]
        %v1078 = vld [vmem:[#allocation2 + $0x308] sm:$0xff]
        %v1079 = vld [vmem:[#allocation2 + $0x318] sm:$0xff]
        %v1080 = vld [vmem:[#allocation2 + $0x320] sm:$0xff]
        %v1081 = vld [vmem:[%s3] sm:$0x1]
        %v1082 = vlaneseq
        %v1083 = vshrl.u32 %v1082, 7
        %v1084 = vsub.s32 0, %v1083
        %v1085 = vrot.slane %v1081, %v1084
        %v1086 = vmul.f32 %v1017, %v1085
        %v1087 = vmul.f32 %v1018, %v1085
        %v1088 = vmul.f32 %v1019, %v1085
        %v1089 = vmul.f32 %v1020, %v1085
        %v1090 = vmul.f32 %v1021, %v1085
        %v1091 = vmul.f32 %v1022, %v1085
        %v1092 = vmul.f32 %v1023, %v1085
        %v1093 = vmul.f32 %v1024, %v1085
        %v1094 = vmul.f32 %v1025, %v1085
        %v1095 = vmul.f32 %v1026, %v1085
        %v1096 = vmul.f32 %v1027, %v1085
        %v1097 = vmul.f32 %v1028, %v1085
        %v1098 = vmul.f32 %v1029, %v1085
        %v1099 = vmul.f32 %v1030, %v1085
        %v1100 = vmul.f32 %v1031, %v1085
        %v1101 = vmul.f32 %v1032, %v1085
        %v1102 = vmul.f32 %v1033, %v1085
        %v1103 = vmul.f32 %v1034, %v1085
        %v1104 = vmul.f32 %v1035, %v1085
        %v1105 = vmul.f32 %v1036, %v1085
        %v1106 = vmul.f32 %v1037, %v1085
        %v1107 = vmul.f32 %v1038, %v1085
        %v1108 = vmul.f32 %v1039, %v1085
        %v1109 = vmul.f32 %v1040, %v1085
        %v1110 = vmul.f32 %v1041, %v1085
        %v1111 = vmul.f32 %v1042, %v1085
        %v1112 = vmul.f32 %v1043, %v1085
        %v1113 = vmul.f32 %v1044, %v1085
        %v1114 = vmul.f32 %v1045, %v1085
        %v1115 = vmul.f32 %v1046, %v1085
        %v1116 = vmul.f32 %v1047, %v1085
        %v1117 = vmul.f32 %v1048, %v1085
        %v1118 = vmul.f32 %v1049, %v1085
        %v1119 = vmul.f32 %v1050, %v1085
        %v1120 = vmul.f32 %v1051, %v1085
        %v1121 = vmul.f32 %v1052, %v1085
        %v1122 = vmul.f32 %v1053, %v1085
        %v1123 = vmul.f32 %v1054, %v1085
        %v1124 = vmul.f32 %v1055, %v1085
        %v1125 = vmul.f32 %v1056, %v1085
        %v1126 = vmul.f32 %v1057, %v1085
        %v1127 = vmul.f32 %v1058, %v1085
        %v1128 = vmul.f32 %v1059, %v1085
        %v1129 = vmul.f32 %v1060, %v1085
        %v1130 = vmul.f32 %v1061, %v1085
        %v1131 = vmul.f32 %v1062, %v1085
        %v1132 = vmul.f32 %v1063, %v1085
        %v1133 = vmul.f32 %v1064, %v1085
        %v1134 = vmul.f32 %v1065, %v1085
        %v1135 = vmul.f32 %v1066, %v1085
        %v1136 = vmul.f32 %v1067, %v1085
        %v1137 = vmul.f32 %v1068, %v1085
        %v1138 = vmul.f32 %v1069, %v1085
        %v1139 = vmul.f32 %v1070, %v1085
        %v1140 = vmul.f32 %v1071, %v1085
        %v1141 = vmul.f32 %v1072, %v1085
        %v1142 = vmul.f32 %v1073, %v1085
        %v1143 = vmul.f32 %v1074, %v1085
        %v1144 = vmul.f32 %v1075, %v1085
        %v1145 = vmul.f32 %v1076, %v1085
        %v1146 = vmul.f32 %v1077, %v1085
        %v1147 = vmul.f32 %v1078, %v1085
        %v1148 = vmul.f32 %v1079, %v1085
        %v1149 = vmul.f32 %v1080, %v1085
        %v1150 = vadd.f32 %v1086, 0.0
        %v1151 = vadd.f32 %v1087, 0.0
        %v1152 = vadd.f32 %v1088, 0.0
        %v1153 = vadd.f32 %v1089, 0.0
        %v1154 = vadd.f32 %v1090, 0.0
        %v1155 = vadd.f32 %v1091, 0.0
        %v1156 = vadd.f32 %v1092, 0.0
        %v1157 = vadd.f32 %v1093, 0.0
        %v1158 = vadd.f32 %v1094, 0.0
        %v1159 = vadd.f32 %v1095, 0.0
        %v1160 = vadd.f32 %v1096, 0.0
        %v1161 = vadd.f32 %v1097, 0.0
        %v1162 = vadd.f32 %v1098, 0.0
        %v1163 = vadd.f32 %v1099, 0.0
        %v1164 = vadd.f32 %v1100, 0.0
        %v1165 = vadd.f32 %v1101, 0.0
        %v1166 = vadd.f32 %v1102, 0.0
        %v1167 = vadd.f32 %v1103, 0.0
        %v1168 = vadd.f32 %v1104, 0.0
        %v1169 = vadd.f32 %v1105, 0.0
        %v1170 = vadd.f32 %v1106, 0.0
        %v1171 = vadd.f32 %v1107, 0.0
        %v1172 = vadd.f32 %v1108, 0.0
        %v1173 = vadd.f32 %v1109, 0.0
        %v1174 = vadd.f32 %v1110, 0.0
        %v1175 = vadd.f32 %v1111, 0.0
        %v1176 = vadd.f32 %v1112, 0.0
        %v1177 = vadd.f32 %v1113, 0.0
        %v1178 = vadd.f32 %v1114, 0.0
        %v1179 = vadd.f32 %v1115, 0.0
        %v1180 = vadd.f32 %v1116, 0.0
        %v1181 = vadd.f32 %v1117, 0.0
        %v1182 = vadd.f32 %v1118, 0.0
        %v1183 = vadd.f32 %v1119, 0.0
        %v1184 = vadd.f32 %v1120, 0.0
        %v1185 = vadd.f32 %v1121, 0.0
        %v1186 = vadd.f32 %v1122, 0.0
        %v1187 = vadd.f32 %v1123, 0.0
        %v1188 = vadd.f32 %v1124, 0.0
        %v1189 = vadd.f32 %v1125, 0.0
        %v1190 = vadd.f32 %v1126, 0.0
        %v1191 = vadd.f32 %v1127, 0.0
        %v1192 = vadd.f32 %v1128, 0.0
        %v1193 = vadd.f32 %v1129, 0.0
        %v1194 = vadd.f32 %v1130, 0.0
        %v1195 = vadd.f32 %v1131, 0.0
        %v1196 = vadd.f32 %v1132, 0.0
        %v1197 = vadd.f32 %v1133, 0.0
        %v1198 = vadd.f32 %v1134, 0.0
        %v1199 = vadd.f32 %v1135, 0.0
        %v1200 = vadd.f32 %v1136, 0.0
        %v1201 = vadd.f32 %v1137, 0.0
        %v1202 = vadd.f32 %v1138, 0.0
        %v1203 = vadd.f32 %v1139, 0.0
        %v1204 = vadd.f32 %v1140, 0.0
        %v1205 = vadd.f32 %v1141, 0.0
        %v1206 = vadd.f32 %v1142, 0.0
        %v1207 = vadd.f32 %v1143, 0.0
        %v1208 = vadd.f32 %v1144, 0.0
        %v1209 = vadd.f32 %v1145, 0.0
        %v1210 = vadd.f32 %v1146, 0.0
        %v1211 = vadd.f32 %v1147, 0.0
        %v1212 = vadd.f32 %v1148, 0.0
        %v1213 = vadd.f32 %v1149, 0.0
        %v1214 = vld [vmem:[#allocation2 + $0x1] sm:$0xff]
        %v1215 = vld [vmem:[#allocation2 + $0x9] sm:$0xff]
        %v1216 = vld [vmem:[#allocation2 + $0x19] sm:$0xff]
        %v1217 = vld [vmem:[#allocation2 + $0x21] sm:$0xff]
        %v1218 = vld [vmem:[#allocation2 + $0x31] sm:$0xff]
        %v1219 = vld [vmem:[#allocation2 + $0x39] sm:$0xff]
        %v1220 = vld [vmem:[#allocation2 + $0x49] sm:$0xff]
        %v1221 = vld [vmem:[#allocation2 + $0x51] sm:$0xff]
        %v1222 = vld [vmem:[#allocation2 + $0x61] sm:$0xff]
        %v1223 = vld [vmem:[#allocation2 + $0x69] sm:$0xff]
        %v1224 = vld [vmem:[#allocation2 + $0x79] sm:$0xff]
        %v1225 = vld [vmem:[#allocation2 + $0x81] sm:$0xff]
        %v1226 = vld [vmem:[#allocation2 + $0x91] sm:$0xff]
        %v1227 = vld [vmem:[#allocation2 + $0x99] sm:$0xff]
        %v1228 = vld [vmem:[#allocation2 + $0xa9] sm:$0xff]
        %v1229 = vld [vmem:[#allocation2 + $0xb1] sm:$0xff]
        %v1230 = vld [vmem:[#allocation2 + $0xc1] sm:$0xff]
        %v1231 = vld [vmem:[#allocation2 + $0xc9] sm:$0xff]
        %v1232 = vld [vmem:[#allocation2 + $0xd9] sm:$0xff]
        %v1233 = vld [vmem:[#allocation2 + $0xe1] sm:$0xff]
        %v1234 = vld [vmem:[#allocation2 + $0xf1] sm:$0xff]
        %v1235 = vld [vmem:[#allocation2 + $0xf9] sm:$0xff]
        %v1236 = vld [vmem:[#allocation2 + $0x109] sm:$0xff]
        %v1237 = vld [vmem:[#allocation2 + $0x111] sm:$0xff]
        %v1238 = vld [vmem:[#allocation2 + $0x121] sm:$0xff]
        %v1239 = vld [vmem:[#allocation2 + $0x129] sm:$0xff]
        %v1240 = vld [vmem:[#allocation2 + $0x139] sm:$0xff]
        %v1241 = vld [vmem:[#allocation2 + $0x141] sm:$0xff]
        %v1242 = vld [vmem:[#allocation2 + $0x151] sm:$0xff]
        %v1243 = vld [vmem:[#allocation2 + $0x159] sm:$0xff]
        %v1244 = vld [vmem:[#allocation2 + $0x169] sm:$0xff]
        %v1245 = vld [vmem:[#allocation2 + $0x171] sm:$0xff]
        %v1246 = vld [vmem:[#allocation2 + $0x1b1] sm:$0xff]
        %v1247 = vld [vmem:[#allocation2 + $0x1b9] sm:$0xff]
        %v1248 = vld [vmem:[#allocation2 + $0x1c9] sm:$0xff]
        %v1249 = vld [vmem:[#allocation2 + $0x1d1] sm:$0xff]
        %v1250 = vld [vmem:[#allocation2 + $0x1e1] sm:$0xff]
        %v1251 = vld [vmem:[#allocation2 + $0x1e9] sm:$0xff]
        %v1252 = vld [vmem:[#allocation2 + $0x1f9] sm:$0xff]
        %v1253 = vld [vmem:[#allocation2 + $0x201] sm:$0xff]
        %v1254 = vld [vmem:[#allocation2 + $0x211] sm:$0xff]
        %v1255 = vld [vmem:[#allocation2 + $0x219] sm:$0xff]
        %v1256 = vld [vmem:[#allocation2 + $0x229] sm:$0xff]
        %v1257 = vld [vmem:[#allocation2 + $0x231] sm:$0xff]
        %v1258 = vld [vmem:[#allocation2 + $0x241] sm:$0xff]
        %v1259 = vld [vmem:[#allocation2 + $0x249] sm:$0xff]
        %v1260 = vld [vmem:[#allocation2 + $0x259] sm:$0xff]
        %v1261 = vld [vmem:[#allocation2 + $0x261] sm:$0xff]
        %v1262 = vld [vmem:[#allocation2 + $0x271] sm:$0xff]
        %v1263 = vld [vmem:[#allocation2 + $0x279] sm:$0xff]
        %v1264 = vld [vmem:[#allocation2 + $0x289] sm:$0xff]
        %v1265 = vld [vmem:[#allocation2 + $0x291] sm:$0xff]
        %v1266 = vld [vmem:[#allocation2 + $0x2a1] sm:$0xff]
        %v1267 = vld [vmem:[#allocation2 + $0x2a9] sm:$0xff]
        %v1268 = vld [vmem:[#allocation2 + $0x2b9] sm:$0xff]
        %v1269 = vld [vmem:[#allocation2 + $0x2c1] sm:$0xff]
        %v1270 = vld [vmem:[#allocation2 + $0x2d1] sm:$0xff]
        %v1271 = vld [vmem:[#allocation2 + $0x2d9] sm:$0xff]
        %v1272 = vld [vmem:[#allocation2 + $0x2e9] sm:$0xff]
        %v1273 = vld [vmem:[#allocation2 + $0x2f1] sm:$0xff]
        %v1274 = vld [vmem:[#allocation2 + $0x301] sm:$0xff]
        %v1275 = vld [vmem:[#allocation2 + $0x309] sm:$0xff]
        %v1276 = vld [vmem:[#allocation2 + $0x319] sm:$0xff]
        %v1277 = vld [vmem:[#allocation2 + $0x321] sm:$0xff]
        %v1278 = vld [vmem:[%s3 + $0x1] sm:$0x1]
        %v1279 = vlaneseq
        %v1280 = vshrl.u32 %v1279, 7
        %v1281 = vsub.s32 0, %v1280
        %v1282 = vrot.slane %v1278, %v1281
        %v1283 = vmul.f32 %v1214, %v1282
        %v1284 = vmul.f32 %v1215, %v1282
        %v1285 = vmul.f32 %v1216, %v1282
        %v1286 = vmul.f32 %v1217, %v1282
        %v1287 = vmul.f32 %v1218, %v1282
        %v1288 = vmul.f32 %v1219, %v1282
        %v1289 = vmul.f32 %v1220, %v1282
        %v1290 = vmul.f32 %v1221, %v1282
        %v1291 = vmul.f32 %v1222, %v1282
        %v1292 = vmul.f32 %v1223, %v1282
        %v1293 = vmul.f32 %v1224, %v1282
        %v1294 = vmul.f32 %v1225, %v1282
        %v1295 = vmul.f32 %v1226, %v1282
        %v1296 = vmul.f32 %v1227, %v1282
        %v1297 = vmul.f32 %v1228, %v1282
        %v1298 = vmul.f32 %v1229, %v1282
        %v1299 = vmul.f32 %v1230, %v1282
        %v1300 = vmul.f32 %v1231, %v1282
        %v1301 = vmul.f32 %v1232, %v1282
        %v1302 = vmul.f32 %v1233, %v1282
        %v1303 = vmul.f32 %v1234, %v1282
        %v1304 = vmul.f32 %v1235, %v1282
        %v1305 = vmul.f32 %v1236, %v1282
        %v1306 = vmul.f32 %v1237, %v1282
        %v1307 = vmul.f32 %v1238, %v1282
        %v1308 = vmul.f32 %v1239, %v1282
        %v1309 = vmul.f32 %v1240, %v1282
        %v1310 = vmul.f32 %v1241, %v1282
        %v1311 = vmul.f32 %v1242, %v1282
        %v1312 = vmul.f32 %v1243, %v1282
        %v1313 = vmul.f32 %v1244, %v1282
        %v1314 = vmul.f32 %v1245, %v1282
        %v1315 = vmul.f32 %v1246, %v1282
        %v1316 = vmul.f32 %v1247, %v1282
        %v1317 = vmul.f32 %v1248, %v1282
        %v1318 = vmul.f32 %v1249, %v1282
        %v1319 = vmul.f32 %v1250, %v1282
        %v1320 = vmul.f32 %v1251, %v1282
        %v1321 = vmul.f32 %v1252, %v1282
        %v1322 = vmul.f32 %v1253, %v1282
        %v1323 = vmul.f32 %v1254, %v1282
        %v1324 = vmul.f32 %v1255, %v1282
        %v1325 = vmul.f32 %v1256, %v1282
        %v1326 = vmul.f32 %v1257, %v1282
        %v1327 = vmul.f32 %v1258, %v1282
        %v1328 = vmul.f32 %v1259, %v1282
        %v1329 = vmul.f32 %v1260, %v1282
        %v1330 = vmul.f32 %v1261, %v1282
        %v1331 = vmul.f32 %v1262, %v1282
        %v1332 = vmul.f32 %v1263, %v1282
        %v1333 = vmul.f32 %v1264, %v1282
        %v1334 = vmul.f32 %v1265, %v1282
        %v1335 = vmul.f32 %v1266, %v1282
        %v1336 = vmul.f32 %v1267, %v1282
        %v1337 = vmul.f32 %v1268, %v1282
        %v1338 = vmul.f32 %v1269, %v1282
        %v1339 = vmul.f32 %v1270, %v1282
        %v1340 = vmul.f32 %v1271, %v1282
        %v1341 = vmul.f32 %v1272, %v1282
        %v1342 = vmul.f32 %v1273, %v1282
        %v1343 = vmul.f32 %v1274, %v1282
        %v1344 = vmul.f32 %v1275, %v1282
        %v1345 = vmul.f32 %v1276, %v1282
        %v1346 = vmul.f32 %v1277, %v1282
        %v1347 = vadd.f32 %v1150, %v1283
        %v1348 = vadd.f32 %v1151, %v1284
        %v1349 = vadd.f32 %v1152, %v1285
        %v1350 = vadd.f32 %v1153, %v1286
        %v1351 = vadd.f32 %v1154, %v1287
        %v1352 = vadd.f32 %v1155, %v1288
        %v1353 = vadd.f32 %v1156, %v1289
        %v1354 = vadd.f32 %v1157, %v1290
        %v1355 = vadd.f32 %v1158, %v1291
        %v1356 = vadd.f32 %v1159, %v1292
        %v1357 = vadd.f32 %v1160, %v1293
        %v1358 = vadd.f32 %v1161, %v1294
        %v1359 = vadd.f32 %v1162, %v1295
        %v1360 = vadd.f32 %v1163, %v1296
        %v1361 = vadd.f32 %v1164, %v1297
        %v1362 = vadd.f32 %v1165, %v1298
        %v1363 = vadd.f32 %v1166, %v1299
        %v1364 = vadd.f32 %v1167, %v1300
        %v1365 = vadd.f32 %v1168, %v1301
        %v1366 = vadd.f32 %v1169, %v1302
        %v1367 = vadd.f32 %v1170, %v1303
        %v1368 = vadd.f32 %v1171, %v1304
        %v1369 = vadd.f32 %v1172, %v1305
        %v1370 = vadd.f32 %v1173, %v1306
        %v1371 = vadd.f32 %v1174, %v1307
        %v1372 = vadd.f32 %v1175, %v1308
        %v1373 = vadd.f32 %v1176, %v1309
        %v1374 = vadd.f32 %v1177, %v1310
        %v1375 = vadd.f32 %v1178, %v1311
        %v1376 = vadd.f32 %v1179, %v1312
        %v1377 = vadd.f32 %v1180, %v1313
        %v1378 = vadd.f32 %v1181, %v1314
        %v1379 = vadd.f32 %v1182, %v1315
        %v1380 = vadd.f32 %v1183, %v1316
        %v1381 = vadd.f32 %v1184, %v1317
        %v1382 = vadd.f32 %v1185, %v1318
        %v1383 = vadd.f32 %v1186, %v1319
        %v1384 = vadd.f32 %v1187, %v1320
        %v1385 = vadd.f32 %v1188, %v1321
        %v1386 = vadd.f32 %v1189, %v1322
        %v1387 = vadd.f32 %v1190, %v1323
        %v1388 = vadd.f32 %v1191, %v1324
        %v1389 = vadd.f32 %v1192, %v1325
        %v1390 = vadd.f32 %v1193, %v1326
        %v1391 = vadd.f32 %v1194, %v1327
        %v1392 = vadd.f32 %v1195, %v1328
        %v1393 = vadd.f32 %v1196, %v1329
        %v1394 = vadd.f32 %v1197, %v1330
        %v1395 = vadd.f32 %v1198, %v1331
        %v1396 = vadd.f32 %v1199, %v1332
        %v1397 = vadd.f32 %v1200, %v1333
        %v1398 = vadd.f32 %v1201, %v1334
        %v1399 = vadd.f32 %v1202, %v1335
        %v1400 = vadd.f32 %v1203, %v1336
        %v1401 = vadd.f32 %v1204, %v1337
        %v1402 = vadd.f32 %v1205, %v1338
        %v1403 = vadd.f32 %v1206, %v1339
        %v1404 = vadd.f32 %v1207, %v1340
        %v1405 = vadd.f32 %v1208, %v1341
        %v1406 = vadd.f32 %v1209, %v1342
        %v1407 = vadd.f32 %v1210, %v1343
        %v1408 = vadd.f32 %v1211, %v1344
        %v1409 = vadd.f32 %v1212, %v1345
        %v1410 = vadd.f32 %v1213, %v1346
        %v1411 = vld [vmem:[#allocation2 + $0x2] sm:$0xff]
        %v1412 = vld [vmem:[#allocation2 + $0xa] sm:$0xff]
        %v1413 = vld [vmem:[#allocation2 + $0x1a] sm:$0xff]
        %v1414 = vld [vmem:[#allocation2 + $0x22] sm:$0xff]
        %v1415 = vld [vmem:[#allocation2 + $0x32] sm:$0xff]
        %v1416 = vld [vmem:[#allocation2 + $0x3a] sm:$0xff]
        %v1417 = vld [vmem:[#allocation2 + $0x4a] sm:$0xff]
        %v1418 = vld [vmem:[#allocation2 + $0x52] sm:$0xff]
        %v1419 = vld [vmem:[#allocation2 + $0x62] sm:$0xff]
        %v1420 = vld [vmem:[#allocation2 + $0x6a] sm:$0xff]
        %v1421 = vld [vmem:[#allocation2 + $0x7a] sm:$0xff]
        %v1422 = vld [vmem:[#allocation2 + $0x82] sm:$0xff]
        %v1423 = vld [vmem:[#allocation2 + $0x92] sm:$0xff]
        %v1424 = vld [vmem:[#allocation2 + $0x9a] sm:$0xff]
        %v1425 = vld [vmem:[#allocation2 + $0xaa] sm:$0xff]
        %v1426 = vld [vmem:[#allocation2 + $0xb2] sm:$0xff]
        %v1427 = vld [vmem:[#allocation2 + $0xc2] sm:$0xff]
        %v1428 = vld [vmem:[#allocation2 + $0xca] sm:$0xff]
        %v1429 = vld [vmem:[#allocation2 + $0xda] sm:$0xff]
        %v1430 = vld [vmem:[#allocation2 + $0xe2] sm:$0xff]
        %v1431 = vld [vmem:[#allocation2 + $0xf2] sm:$0xff]
        %v1432 = vld [vmem:[#allocation2 + $0xfa] sm:$0xff]
        %v1433 = vld [vmem:[#allocation2 + $0x10a] sm:$0xff]
        %v1434 = vld [vmem:[#allocation2 + $0x112] sm:$0xff]
        %v1435 = vld [vmem:[#allocation2 + $0x122] sm:$0xff]
        %v1436 = vld [vmem:[#allocation2 + $0x12a] sm:$0xff]
        %v1437 = vld [vmem:[#allocation2 + $0x13a] sm:$0xff]
        %v1438 = vld [vmem:[#allocation2 + $0x142] sm:$0xff]
        %v1439 = vld [vmem:[#allocation2 + $0x152] sm:$0xff]
        %v1440 = vld [vmem:[#allocation2 + $0x15a] sm:$0xff]
        %v1441 = vld [vmem:[#allocation2 + $0x16a] sm:$0xff]
        %v1442 = vld [vmem:[#allocation2 + $0x172] sm:$0xff]
        %v1443 = vld [vmem:[#allocation2 + $0x1b2] sm:$0xff]
        %v1444 = vld [vmem:[#allocation2 + $0x1ba] sm:$0xff]
        %v1445 = vld [vmem:[#allocation2 + $0x1ca] sm:$0xff]
        %v1446 = vld [vmem:[#allocation2 + $0x1d2] sm:$0xff]
        %v1447 = vld [vmem:[#allocation2 + $0x1e2] sm:$0xff]
        %v1448 = vld [vmem:[#allocation2 + $0x1ea] sm:$0xff]
        %v1449 = vld [vmem:[#allocation2 + $0x1fa] sm:$0xff]
        %v1450 = vld [vmem:[#allocation2 + $0x202] sm:$0xff]
        %v1451 = vld [vmem:[#allocation2 + $0x212] sm:$0xff]
        %v1452 = vld [vmem:[#allocation2 + $0x21a] sm:$0xff]
        %v1453 = vld [vmem:[#allocation2 + $0x22a] sm:$0xff]
        %v1454 = vld [vmem:[#allocation2 + $0x232] sm:$0xff]
        %v1455 = vld [vmem:[#allocation2 + $0x242] sm:$0xff]
        %v1456 = vld [vmem:[#allocation2 + $0x24a] sm:$0xff]
        %v1457 = vld [vmem:[#allocation2 + $0x25a] sm:$0xff]
        %v1458 = vld [vmem:[#allocation2 + $0x262] sm:$0xff]
        %v1459 = vld [vmem:[#allocation2 + $0x272] sm:$0xff]
        %v1460 = vld [vmem:[#allocation2 + $0x27a] sm:$0xff]
        %v1461 = vld [vmem:[#allocation2 + $0x28a] sm:$0xff]
        %v1462 = vld [vmem:[#allocation2 + $0x292] sm:$0xff]
        %v1463 = vld [vmem:[#allocation2 + $0x2a2] sm:$0xff]
        %v1464 = vld [vmem:[#allocation2 + $0x2aa] sm:$0xff]
        %v1465 = vld [vmem:[#allocation2 + $0x2ba] sm:$0xff]
        %v1466 = vld [vmem:[#allocation2 + $0x2c2] sm:$0xff]
        %v1467 = vld [vmem:[#allocation2 + $0x2d2] sm:$0xff]
        %v1468 = vld [vmem:[#allocation2 + $0x2da] sm:$0xff]
        %v1469 = vld [vmem:[#allocation2 + $0x2ea] sm:$0xff]
        %v1470 = vld [vmem:[#allocation2 + $0x2f2] sm:$0xff]
        %v1471 = vld [vmem:[#allocation2 + $0x302] sm:$0xff]
        %v1472 = vld [vmem:[#allocation2 + $0x30a] sm:$0xff]
        %v1473 = vld [vmem:[#allocation2 + $0x31a] sm:$0xff]
        %v1474 = vld [vmem:[#allocation2 + $0x322] sm:$0xff]
        %v1475 = vld [vmem:[%s3 + $0x2] sm:$0x1]
        %v1476 = vlaneseq
        %v1477 = vshrl.u32 %v1476, 7
        %v1478 = vsub.s32 0, %v1477
        %v1479 = vrot.slane %v1475, %v1478
        %v1480 = vmul.f32 %v1411, %v1479
        %v1481 = vmul.f32 %v1412, %v1479
        %v1482 = vmul.f32 %v1413, %v1479
        %v1483 = vmul.f32 %v1414, %v1479
        %v1484 = vmul.f32 %v1415, %v1479
        %v1485 = vmul.f32 %v1416, %v1479
        %v1486 = vmul.f32 %v1417, %v1479
        %v1487 = vmul.f32 %v1418, %v1479
        %v1488 = vmul.f32 %v1419, %v1479
        %v1489 = vmul.f32 %v1420, %v1479
        %v1490 = vmul.f32 %v1421, %v1479
        %v1491 = vmul.f32 %v1422, %v1479
        %v1492 = vmul.f32 %v1423, %v1479
        %v1493 = vmul.f32 %v1424, %v1479
        %v1494 = vmul.f32 %v1425, %v1479
        %v1495 = vmul.f32 %v1426, %v1479
        %v1496 = vmul.f32 %v1427, %v1479
        %v1497 = vmul.f32 %v1428, %v1479
        %v1498 = vmul.f32 %v1429, %v1479
        %v1499 = vmul.f32 %v1430, %v1479
        %v1500 = vmul.f32 %v1431, %v1479
        %v1501 = vmul.f32 %v1432, %v1479
        %v1502 = vmul.f32 %v1433, %v1479
        %v1503 = vmul.f32 %v1434, %v1479
        %v1504 = vmul.f32 %v1435, %v1479
        %v1505 = vmul.f32 %v1436, %v1479
        %v1506 = vmul.f32 %v1437, %v1479
        %v1507 = vmul.f32 %v1438, %v1479
        %v1508 = vmul.f32 %v1439, %v1479
        %v1509 = vmul.f32 %v1440, %v1479
        %v1510 = vmul.f32 %v1441, %v1479
        %v1511 = vmul.f32 %v1442, %v1479
        %v1512 = vmul.f32 %v1443, %v1479
        %v1513 = vmul.f32 %v1444, %v1479
        %v1514 = vmul.f32 %v1445, %v1479
        %v1515 = vmul.f32 %v1446, %v1479
        %v1516 = vmul.f32 %v1447, %v1479
        %v1517 = vmul.f32 %v1448, %v1479
        %v1518 = vmul.f32 %v1449, %v1479
        %v1519 = vmul.f32 %v1450, %v1479
        %v1520 = vmul.f32 %v1451, %v1479
        %v1521 = vmul.f32 %v1452, %v1479
        %v1522 = vmul.f32 %v1453, %v1479
        %v1523 = vmul.f32 %v1454, %v1479
        %v1524 = vmul.f32 %v1455, %v1479
        %v1525 = vmul.f32 %v1456, %v1479
        %v1526 = vmul.f32 %v1457, %v1479
        %v1527 = vmul.f32 %v1458, %v1479
        %v1528 = vmul.f32 %v1459, %v1479
        %v1529 = vmul.f32 %v1460, %v1479
        %v1530 = vmul.f32 %v1461, %v1479
        %v1531 = vmul.f32 %v1462, %v1479
        %v1532 = vmul.f32 %v1463, %v1479
        %v1533 = vmul.f32 %v1464, %v1479
        %v1534 = vmul.f32 %v1465, %v1479
        %v1535 = vmul.f32 %v1466, %v1479
        %v1536 = vmul.f32 %v1467, %v1479
        %v1537 = vmul.f32 %v1468, %v1479
        %v1538 = vmul.f32 %v1469, %v1479
        %v1539 = vmul.f32 %v1470, %v1479
        %v1540 = vmul.f32 %v1471, %v1479
        %v1541 = vmul.f32 %v1472, %v1479
        %v1542 = vmul.f32 %v1473, %v1479
        %v1543 = vmul.f32 %v1474, %v1479
        %v1544 = vadd.f32 %v1347, %v1480
        %v1545 = vadd.f32 %v1348, %v1481
        %v1546 = vadd.f32 %v1349, %v1482
        %v1547 = vadd.f32 %v1350, %v1483
        %v1548 = vadd.f32 %v1351, %v1484
        %v1549 = vadd.f32 %v1352, %v1485
        %v1550 = vadd.f32 %v1353, %v1486
        %v1551 = vadd.f32 %v1354, %v1487
        %v1552 = vadd.f32 %v1355, %v1488
        %v1553 = vadd.f32 %v1356, %v1489
        %v1554 = vadd.f32 %v1357, %v1490
        %v1555 = vadd.f32 %v1358, %v1491
        %v1556 = vadd.f32 %v1359, %v1492
        %v1557 = vadd.f32 %v1360, %v1493
        %v1558 = vadd.f32 %v1361, %v1494
        %v1559 = vadd.f32 %v1362, %v1495
        %v1560 = vadd.f32 %v1363, %v1496
        %v1561 = vadd.f32 %v1364, %v1497
        %v1562 = vadd.f32 %v1365, %v1498
        %v1563 = vadd.f32 %v1366, %v1499
        %v1564 = vadd.f32 %v1367, %v1500
        %v1565 = vadd.f32 %v1368, %v1501
        %v1566 = vadd.f32 %v1369, %v1502
        %v1567 = vadd.f32 %v1370, %v1503
        %v1568 = vadd.f32 %v1371, %v1504
        %v1569 = vadd.f32 %v1372, %v1505
        %v1570 = vadd.f32 %v1373, %v1506
        %v1571 = vadd.f32 %v1374, %v1507
        %v1572 = vadd.f32 %v1375, %v1508
        %v1573 = vadd.f32 %v1376, %v1509
        %v1574 = vadd.f32 %v1377, %v1510
        %v1575 = vadd.f32 %v1378, %v1511
        %v1576 = vadd.f32 %v1379, %v1512
        %v1577 = vadd.f32 %v1380, %v1513
        %v1578 = vadd.f32 %v1381, %v1514
        %v1579 = vadd.f32 %v1382, %v1515
        %v1580 = vadd.f32 %v1383, %v1516
        %v1581 = vadd.f32 %v1384, %v1517
        %v1582 = vadd.f32 %v1385, %v1518
        %v1583 = vadd.f32 %v1386, %v1519
        %v1584 = vadd.f32 %v1387, %v1520
        %v1585 = vadd.f32 %v1388, %v1521
        %v1586 = vadd.f32 %v1389, %v1522
        %v1587 = vadd.f32 %v1390, %v1523
        %v1588 = vadd.f32 %v1391, %v1524
        %v1589 = vadd.f32 %v1392, %v1525
        %v1590 = vadd.f32 %v1393, %v1526
        %v1591 = vadd.f32 %v1394, %v1527
        %v1592 = vadd.f32 %v1395, %v1528
        %v1593 = vadd.f32 %v1396, %v1529
        %v1594 = vadd.f32 %v1397, %v1530
        %v1595 = vadd.f32 %v1398, %v1531
        %v1596 = vadd.f32 %v1399, %v1532
        %v1597 = vadd.f32 %v1400, %v1533
        %v1598 = vadd.f32 %v1401, %v1534
        %v1599 = vadd.f32 %v1402, %v1535
        %v1600 = vadd.f32 %v1403, %v1536
        %v1601 = vadd.f32 %v1404, %v1537
        %v1602 = vadd.f32 %v1405, %v1538
        %v1603 = vadd.f32 %v1406, %v1539
        %v1604 = vadd.f32 %v1407, %v1540
        %v1605 = vadd.f32 %v1408, %v1541
        %v1606 = vadd.f32 %v1409, %v1542
        %v1607 = vadd.f32 %v1410, %v1543
        %v1608 = vld [vmem:[%s952] sm:$0xff]
        %v1609 = vld [vmem:[%s952 + $0x8] sm:$0xff]
        %v1610 = vld [vmem:[%s952 + $0x18] sm:$0xff]
        %v1611 = vld [vmem:[%s952 + $0x20] sm:$0xff]
        %v1612 = vld [vmem:[%s952 + $0x30] sm:$0xff]
        %v1613 = vld [vmem:[%s952 + $0x38] sm:$0xff]
        %v1614 = vld [vmem:[%s952 + $0x48] sm:$0xff]
        %v1615 = vld [vmem:[%s952 + $0x50] sm:$0xff]
        %v1616 = vld [vmem:[%s952 + $0x60] sm:$0xff]
        %v1617 = vld [vmem:[%s952 + $0x68] sm:$0xff]
        %v1618 = vld [vmem:[%s952 + $0x78] sm:$0xff]
        %v1619 = vld [vmem:[%s952 + $0x80] sm:$0xff]
        %v1620 = vld [vmem:[%s952 + $0x90] sm:$0xff]
        %v1621 = vld [vmem:[%s952 + $0x98] sm:$0xff]
        %v1622 = vld [vmem:[%s952 + $0xa8] sm:$0xff]
        %v1623 = vld [vmem:[%s952 + $0xb0] sm:$0xff]
        %v1624 = vld [vmem:[%s952 + $0xc0] sm:$0xff]
        %v1625 = vld [vmem:[%s952 + $0xc8] sm:$0xff]
        %v1626 = vld [vmem:[%s952 + $0xd8] sm:$0xff]
        %v1627 = vld [vmem:[%s952 + $0xe0] sm:$0xff]
        %v1628 = vld [vmem:[%s952 + $0xf0] sm:$0xff]
        %v1629 = vld [vmem:[%s952 + $0xf8] sm:$0xff]
        %v1630 = vld [vmem:[%s952 + $0x108] sm:$0xff]
        %v1631 = vld [vmem:[%s952 + $0x110] sm:$0xff]
        %v1632 = vld [vmem:[%s952 + $0x120] sm:$0xff]
        %v1633 = vld [vmem:[%s952 + $0x128] sm:$0xff]
        %v1634 = vld [vmem:[%s952 + $0x138] sm:$0xff]
        %v1635 = vld [vmem:[%s952 + $0x140] sm:$0xff]
        %v1636 = vld [vmem:[%s952 + $0x150] sm:$0xff]
        %v1637 = vld [vmem:[%s952 + $0x158] sm:$0xff]
        %v1638 = vld [vmem:[%s952 + $0x168] sm:$0xff]
        %v1639 = vld [vmem:[%s952 + $0x170] sm:$0xff]
        %v1640 = vld [vmem:[%s952 + $0x1b0] sm:$0xff]
        %v1641 = vld [vmem:[%s952 + $0x1b8] sm:$0xff]
        %v1642 = vld [vmem:[%s952 + $0x1c8] sm:$0xff]
        %v1643 = vld [vmem:[%s952 + $0x1d0] sm:$0xff]
        %v1644 = vld [vmem:[%s952 + $0x1e0] sm:$0xff]
        %v1645 = vld [vmem:[%s952 + $0x1e8] sm:$0xff]
        %v1646 = vld [vmem:[%s952 + $0x1f8] sm:$0xff]
        %v1647 = vld [vmem:[%s952 + $0x200] sm:$0xff]
        %v1648 = vld [vmem:[%s952 + $0x210] sm:$0xff]
        %v1649 = vld [vmem:[%s952 + $0x218] sm:$0xff]
        %v1650 = vld [vmem:[%s952 + $0x228] sm:$0xff]
        %v1651 = vld [vmem:[%s952 + $0x230] sm:$0xff]
        %v1652 = vld [vmem:[%s952 + $0x240] sm:$0xff]
        %v1653 = vld [vmem:[%s952 + $0x248] sm:$0xff]
        %v1654 = vld [vmem:[%s952 + $0x258] sm:$0xff]
        %v1655 = vld [vmem:[%s952 + $0x260] sm:$0xff]
        %v1656 = vld [vmem:[%s952 + $0x270] sm:$0xff]
        %v1657 = vld [vmem:[%s952 + $0x278] sm:$0xff]
        %v1658 = vld [vmem:[%s952 + $0x288] sm:$0xff]
        %v1659 = vld [vmem:[%s952 + $0x290] sm:$0xff]
        %v1660 = vld [vmem:[%s952 + $0x2a0] sm:$0xff]
        %v1661 = vld [vmem:[%s952 + $0x2a8] sm:$0xff]
        %v1662 = vld [vmem:[%s952 + $0x2b8] sm:$0xff]
        %v1663 = vld [vmem:[%s952 + $0x2c0] sm:$0xff]
        %v1664 = vld [vmem:[%s952 + $0x2d0] sm:$0xff]
        %v1665 = vld [vmem:[%s952 + $0x2d8] sm:$0xff]
        %v1666 = vld [vmem:[%s952 + $0x2e8] sm:$0xff]
        %v1667 = vld [vmem:[%s952 + $0x2f0] sm:$0xff]
        %v1668 = vld [vmem:[%s952 + $0x300] sm:$0xff]
        %v1669 = vld [vmem:[%s952 + $0x308] sm:$0xff]
        %v1670 = vld [vmem:[%s952 + $0x318] sm:$0xff]
        %v1671 = vld [vmem:[%s952 + $0x320] sm:$0xff]
        %v1672 = vld [vmem:[%s3 + $0x3] sm:$0x1]
        %v1673 = vlaneseq
        %v1674 = vshrl.u32 %v1673, 7
        %v1675 = vsub.s32 0, %v1674
        %v1676 = vrot.slane %v1672, %v1675
        %v1677 = vmul.f32 %v1608, %v1676
        %v1678 = vmul.f32 %v1609, %v1676
        %v1679 = vmul.f32 %v1610, %v1676
        %v1680 = vmul.f32 %v1611, %v1676
        %v1681 = vmul.f32 %v1612, %v1676
        %v1682 = vmul.f32 %v1613, %v1676
        %v1683 = vmul.f32 %v1614, %v1676
        %v1684 = vmul.f32 %v1615, %v1676
        %v1685 = vmul.f32 %v1616, %v1676
        %v1686 = vmul.f32 %v1617, %v1676
        %v1687 = vmul.f32 %v1618, %v1676
        %v1688 = vmul.f32 %v1619, %v1676
        %v1689 = vmul.f32 %v1620, %v1676
        %v1690 = vmul.f32 %v1621, %v1676
        %v1691 = vmul.f32 %v1622, %v1676
        %v1692 = vmul.f32 %v1623, %v1676
        %v1693 = vmul.f32 %v1624, %v1676
        %v1694 = vmul.f32 %v1625, %v1676
        %v1695 = vmul.f32 %v1626, %v1676
        %v1696 = vmul.f32 %v1627, %v1676
        %v1697 = vmul.f32 %v1628, %v1676
        %v1698 = vmul.f32 %v1629, %v1676
        %v1699 = vmul.f32 %v1630, %v1676
        %v1700 = vmul.f32 %v1631, %v1676
        %v1701 = vmul.f32 %v1632, %v1676
        %v1702 = vmul.f32 %v1633, %v1676
        %v1703 = vmul.f32 %v1634, %v1676
        %v1704 = vmul.f32 %v1635, %v1676
        %v1705 = vmul.f32 %v1636, %v1676
        %v1706 = vmul.f32 %v1637, %v1676
        %v1707 = vmul.f32 %v1638, %v1676
        %v1708 = vmul.f32 %v1639, %v1676
        %v1709 = vmul.f32 %v1640, %v1676
        %v1710 = vmul.f32 %v1641, %v1676
        %v1711 = vmul.f32 %v1642, %v1676
        %v1712 = vmul.f32 %v1643, %v1676
        %v1713 = vmul.f32 %v1644, %v1676
        %v1714 = vmul.f32 %v1645, %v1676
        %v1715 = vmul.f32 %v1646, %v1676
        %v1716 = vmul.f32 %v1647, %v1676
        %v1717 = vmul.f32 %v1648, %v1676
        %v1718 = vmul.f32 %v1649, %v1676
        %v1719 = vmul.f32 %v1650, %v1676
        %v1720 = vmul.f32 %v1651, %v1676
        %v1721 = vmul.f32 %v1652, %v1676
        %v1722 = vmul.f32 %v1653, %v1676
        %v1723 = vmul.f32 %v1654, %v1676
        %v1724 = vmul.f32 %v1655, %v1676
        %v1725 = vmul.f32 %v1656, %v1676
        %v1726 = vmul.f32 %v1657, %v1676
        %v1727 = vmul.f32 %v1658, %v1676
        %v1728 = vmul.f32 %v1659, %v1676
        %v1729 = vmul.f32 %v1660, %v1676
        %v1730 = vmul.f32 %v1661, %v1676
        %v1731 = vmul.f32 %v1662, %v1676
        %v1732 = vmul.f32 %v1663, %v1676
        %v1733 = vmul.f32 %v1664, %v1676
        %v1734 = vmul.f32 %v1665, %v1676
        %v1735 = vmul.f32 %v1666, %v1676
        %v1736 = vmul.f32 %v1667, %v1676
        %v1737 = vmul.f32 %v1668, %v1676
        %v1738 = vmul.f32 %v1669, %v1676
        %v1739 = vmul.f32 %v1670, %v1676
        %v1740 = vmul.f32 %v1671, %v1676
        %v1741 = vadd.f32 %v1544, %v1677
        %v1742 = vadd.f32 %v1545, %v1678
        %v1743 = vadd.f32 %v1546, %v1679
        %v1744 = vadd.f32 %v1547, %v1680
        %v1745 = vadd.f32 %v1548, %v1681
        %v1746 = vadd.f32 %v1549, %v1682
        %v1747 = vadd.f32 %v1550, %v1683
        %v1748 = vadd.f32 %v1551, %v1684
        %v1749 = vadd.f32 %v1552, %v1685
        %v1750 = vadd.f32 %v1553, %v1686
        %v1751 = vadd.f32 %v1554, %v1687
        %v1752 = vadd.f32 %v1555, %v1688
        %v1753 = vadd.f32 %v1556, %v1689
        %v1754 = vadd.f32 %v1557, %v1690
        %v1755 = vadd.f32 %v1558, %v1691
        %v1756 = vadd.f32 %v1559, %v1692
        %v1757 = vadd.f32 %v1560, %v1693
        %v1758 = vadd.f32 %v1561, %v1694
        %v1759 = vadd.f32 %v1562, %v1695
        %v1760 = vadd.f32 %v1563, %v1696
        %v1761 = vadd.f32 %v1564, %v1697
        %v1762 = vadd.f32 %v1565, %v1698
        %v1763 = vadd.f32 %v1566, %v1699
        %v1764 = vadd.f32 %v1567, %v1700
        %v1765 = vadd.f32 %v1568, %v1701
        %v1766 = vadd.f32 %v1569, %v1702
        %v1767 = vadd.f32 %v1570, %v1703
        %v1768 = vadd.f32 %v1571, %v1704
        %v1769 = vadd.f32 %v1572, %v1705
        %v1770 = vadd.f32 %v1573, %v1706
        %v1771 = vadd.f32 %v1574, %v1707
        %v1772 = vadd.f32 %v1575, %v1708
        %v1773 = vadd.f32 %v1576, %v1709
        %v1774 = vadd.f32 %v1577, %v1710
        %v1775 = vadd.f32 %v1578, %v1711
        %v1776 = vadd.f32 %v1579, %v1712
        %v1777 = vadd.f32 %v1580, %v1713
        %v1778 = vadd.f32 %v1581, %v1714
        %v1779 = vadd.f32 %v1582, %v1715
        %v1780 = vadd.f32 %v1583, %v1716
        %v1781 = vadd.f32 %v1584, %v1717
        %v1782 = vadd.f32 %v1585, %v1718
        %v1783 = vadd.f32 %v1586, %v1719
        %v1784 = vadd.f32 %v1587, %v1720
        %v1785 = vadd.f32 %v1588, %v1721
        %v1786 = vadd.f32 %v1589, %v1722
        %v1787 = vadd.f32 %v1590, %v1723
        %v1788 = vadd.f32 %v1591, %v1724
        %v1789 = vadd.f32 %v1592, %v1725
        %v1790 = vadd.f32 %v1593, %v1726
        %v1791 = vadd.f32 %v1594, %v1727
        %v1792 = vadd.f32 %v1595, %v1728
        %v1793 = vadd.f32 %v1596, %v1729
        %v1794 = vadd.f32 %v1597, %v1730
        %v1795 = vadd.f32 %v1598, %v1731
        %v1796 = vadd.f32 %v1599, %v1732
        %v1797 = vadd.f32 %v1600, %v1733
        %v1798 = vadd.f32 %v1601, %v1734
        %v1799 = vadd.f32 %v1602, %v1735
        %v1800 = vadd.f32 %v1603, %v1736
        %v1801 = vadd.f32 %v1604, %v1737
        %v1802 = vadd.f32 %v1605, %v1738
        %v1803 = vadd.f32 %v1606, %v1739
        %v1804 = vadd.f32 %v1607, %v1740
        %v1805 = vld [vmem:[%s952 + $0x1] sm:$0xff]
        %v1806 = vld [vmem:[%s952 + $0x9] sm:$0xff]
        %v1807 = vld [vmem:[%s952 + $0x19] sm:$0xff]
        %v1808 = vld [vmem:[%s952 + $0x21] sm:$0xff]
        %v1809 = vld [vmem:[%s952 + $0x31] sm:$0xff]
        %v1810 = vld [vmem:[%s952 + $0x39] sm:$0xff]
        %v1811 = vld [vmem:[%s952 + $0x49] sm:$0xff]
        %v1812 = vld [vmem:[%s952 + $0x51] sm:$0xff]
        %v1813 = vld [vmem:[%s952 + $0x61] sm:$0xff]
        %v1814 = vld [vmem:[%s952 + $0x69] sm:$0xff]
        %v1815 = vld [vmem:[%s952 + $0x79] sm:$0xff]
        %v1816 = vld [vmem:[%s952 + $0x81] sm:$0xff]
        %v1817 = vld [vmem:[%s952 + $0x91] sm:$0xff]
        %v1818 = vld [vmem:[%s952 + $0x99] sm:$0xff]
        %v1819 = vld [vmem:[%s952 + $0xa9] sm:$0xff]
        %v1820 = vld [vmem:[%s952 + $0xb1] sm:$0xff]
        %v1821 = vld [vmem:[%s952 + $0xc1] sm:$0xff]
        %v1822 = vld [vmem:[%s952 + $0xc9] sm:$0xff]
        %v1823 = vld [vmem:[%s952 + $0xd9] sm:$0xff]
        %v1824 = vld [vmem:[%s952 + $0xe1] sm:$0xff]
        %v1825 = vld [vmem:[%s952 + $0xf1] sm:$0xff]
        %v1826 = vld [vmem:[%s952 + $0xf9] sm:$0xff]
        %v1827 = vld [vmem:[%s952 + $0x109] sm:$0xff]
        %v1828 = vld [vmem:[%s952 + $0x111] sm:$0xff]
        %v1829 = vld [vmem:[%s952 + $0x121] sm:$0xff]
        %v1830 = vld [vmem:[%s952 + $0x129] sm:$0xff]
        %v1831 = vld [vmem:[%s952 + $0x139] sm:$0xff]
        %v1832 = vld [vmem:[%s952 + $0x141] sm:$0xff]
        %v1833 = vld [vmem:[%s952 + $0x151] sm:$0xff]
        %v1834 = vld [vmem:[%s952 + $0x159] sm:$0xff]
        %v1835 = vld [vmem:[%s952 + $0x169] sm:$0xff]
        %v1836 = vld [vmem:[%s952 + $0x171] sm:$0xff]
        %v1837 = vld [vmem:[%s952 + $0x1b1] sm:$0xff]
        %v1838 = vld [vmem:[%s952 + $0x1b9] sm:$0xff]
        %v1839 = vld [vmem:[%s952 + $0x1c9] sm:$0xff]
        %v1840 = vld [vmem:[%s952 + $0x1d1] sm:$0xff]
        %v1841 = vld [vmem:[%s952 + $0x1e1] sm:$0xff]
        %v1842 = vld [vmem:[%s952 + $0x1e9] sm:$0xff]
        %v1843 = vld [vmem:[%s952 + $0x1f9] sm:$0xff]
        %v1844 = vld [vmem:[%s952 + $0x201] sm:$0xff]
        %v1845 = vld [vmem:[%s952 + $0x211] sm:$0xff]
        %v1846 = vld [vmem:[%s952 + $0x219] sm:$0xff]
        %v1847 = vld [vmem:[%s952 + $0x229] sm:$0xff]
        %v1848 = vld [vmem:[%s952 + $0x231] sm:$0xff]
        %v1849 = vld [vmem:[%s952 + $0x241] sm:$0xff]
        %v1850 = vld [vmem:[%s952 + $0x249] sm:$0xff]
        %v1851 = vld [vmem:[%s952 + $0x259] sm:$0xff]
        %v1852 = vld [vmem:[%s952 + $0x261] sm:$0xff]
        %v1853 = vld [vmem:[%s952 + $0x271] sm:$0xff]
        %v1854 = vld [vmem:[%s952 + $0x279] sm:$0xff]
        %v1855 = vld [vmem:[%s952 + $0x289] sm:$0xff]
        %v1856 = vld [vmem:[%s952 + $0x291] sm:$0xff]
        %v1857 = vld [vmem:[%s952 + $0x2a1] sm:$0xff]
        %v1858 = vld [vmem:[%s952 + $0x2a9] sm:$0xff]
        %v1859 = vld [vmem:[%s952 + $0x2b9] sm:$0xff]
        %v1860 = vld [vmem:[%s952 + $0x2c1] sm:$0xff]
        %v1861 = vld [vmem:[%s952 + $0x2d1] sm:$0xff]
        %v1862 = vld [vmem:[%s952 + $0x2d9] sm:$0xff]
        %v1863 = vld [vmem:[%s952 + $0x2e9] sm:$0xff]
        %v1864 = vld [vmem:[%s952 + $0x2f1] sm:$0xff]
        %v1865 = vld [vmem:[%s952 + $0x301] sm:$0xff]
        %v1866 = vld [vmem:[%s952 + $0x309] sm:$0xff]
        %v1867 = vld [vmem:[%s952 + $0x319] sm:$0xff]
        %v1868 = vld [vmem:[%s952 + $0x321] sm:$0xff]
        %v1869 = vld [vmem:[%s3 + $0x4] sm:$0x1]
        %v1870 = vlaneseq
        %v1871 = vshrl.u32 %v1870, 7
        %v1872 = vsub.s32 0, %v1871
        %v1873 = vrot.slane %v1869, %v1872
        %v1874 = vmul.f32 %v1805, %v1873
        %v1875 = vmul.f32 %v1806, %v1873
        %v1876 = vmul.f32 %v1807, %v1873
        %v1877 = vmul.f32 %v1808, %v1873
        %v1878 = vmul.f32 %v1809, %v1873
        %v1879 = vmul.f32 %v1810, %v1873
        %v1880 = vmul.f32 %v1811, %v1873
        %v1881 = vmul.f32 %v1812, %v1873
        %v1882 = vmul.f32 %v1813, %v1873
        %v1883 = vmul.f32 %v1814, %v1873
        %v1884 = vmul.f32 %v1815, %v1873
        %v1885 = vmul.f32 %v1816, %v1873
        %v1886 = vmul.f32 %v1817, %v1873
        %v1887 = vmul.f32 %v1818, %v1873
        %v1888 = vmul.f32 %v1819, %v1873
        %v1889 = vmul.f32 %v1820, %v1873
        %v1890 = vmul.f32 %v1821, %v1873
        %v1891 = vmul.f32 %v1822, %v1873
        %v1892 = vmul.f32 %v1823, %v1873
        %v1893 = vmul.f32 %v1824, %v1873
        %v1894 = vmul.f32 %v1825, %v1873
        %v1895 = vmul.f32 %v1826, %v1873
        %v1896 = vmul.f32 %v1827, %v1873
        %v1897 = vmul.f32 %v1828, %v1873
        %v1898 = vmul.f32 %v1829, %v1873
        %v1899 = vmul.f32 %v1830, %v1873
        %v1900 = vmul.f32 %v1831, %v1873
        %v1901 = vmul.f32 %v1832, %v1873
        %v1902 = vmul.f32 %v1833, %v1873
        %v1903 = vmul.f32 %v1834, %v1873
        %v1904 = vmul.f32 %v1835, %v1873
        %v1905 = vmul.f32 %v1836, %v1873
        %v1906 = vmul.f32 %v1837, %v1873
        %v1907 = vmul.f32 %v1838, %v1873
        %v1908 = vmul.f32 %v1839, %v1873
        %v1909 = vmul.f32 %v1840, %v1873
        %v1910 = vmul.f32 %v1841, %v1873
        %v1911 = vmul.f32 %v1842, %v1873
        %v1912 = vmul.f32 %v1843, %v1873
        %v1913 = vmul.f32 %v1844, %v1873
        %v1914 = vmul.f32 %v1845, %v1873
        %v1915 = vmul.f32 %v1846, %v1873
        %v1916 = vmul.f32 %v1847, %v1873
        %v1917 = vmul.f32 %v1848, %v1873
        %v1918 = vmul.f32 %v1849, %v1873
        %v1919 = vmul.f32 %v1850, %v1873
        %v1920 = vmul.f32 %v1851, %v1873
        %v1921 = vmul.f32 %v1852, %v1873
        %v1922 = vmul.f32 %v1853, %v1873
        %v1923 = vmul.f32 %v1854, %v1873
        %v1924 = vmul.f32 %v1855, %v1873
        %v1925 = vmul.f32 %v1856, %v1873
        %v1926 = vmul.f32 %v1857, %v1873
        %v1927 = vmul.f32 %v1858, %v1873
        %v1928 = vmul.f32 %v1859, %v1873
        %v1929 = vmul.f32 %v1860, %v1873
        %v1930 = vmul.f32 %v1861, %v1873
        %v1931 = vmul.f32 %v1862, %v1873
        %v1932 = vmul.f32 %v1863, %v1873
        %v1933 = vmul.f32 %v1864, %v1873
        %v1934 = vmul.f32 %v1865, %v1873
        %v1935 = vmul.f32 %v1866, %v1873
        %v1936 = vmul.f32 %v1867, %v1873
        %v1937 = vmul.f32 %v1868, %v1873
        %v1938 = vadd.f32 %v1741, %v1874
        %v1939 = vadd.f32 %v1742, %v1875
        %v1940 = vadd.f32 %v1743, %v1876
        %v1941 = vadd.f32 %v1744, %v1877
        %v1942 = vadd.f32 %v1745, %v1878
        %v1943 = vadd.f32 %v1746, %v1879
        %v1944 = vadd.f32 %v1747, %v1880
        %v1945 = vadd.f32 %v1748, %v1881
        %v1946 = vadd.f32 %v1749, %v1882
        %v1947 = vadd.f32 %v1750, %v1883
        %v1948 = vadd.f32 %v1751, %v1884
        %v1949 = vadd.f32 %v1752, %v1885
        %v1950 = vadd.f32 %v1753, %v1886
        %v1951 = vadd.f32 %v1754, %v1887
        %v1952 = vadd.f32 %v1755, %v1888
        %v1953 = vadd.f32 %v1756, %v1889
        %v1954 = vadd.f32 %v1757, %v1890
        %v1955 = vadd.f32 %v1758, %v1891
        %v1956 = vadd.f32 %v1759, %v1892
        %v1957 = vadd.f32 %v1760, %v1893
        %v1958 = vadd.f32 %v1761, %v1894
        %v1959 = vadd.f32 %v1762, %v1895
        %v1960 = vadd.f32 %v1763, %v1896
        %v1961 = vadd.f32 %v1764, %v1897
        %v1962 = vadd.f32 %v1765, %v1898
        %v1963 = vadd.f32 %v1766, %v1899
        %v1964 = vadd.f32 %v1767, %v1900
        %v1965 = vadd.f32 %v1768, %v1901
        %v1966 = vadd.f32 %v1769, %v1902
        %v1967 = vadd.f32 %v1770, %v1903
        %v1968 = vadd.f32 %v1771, %v1904
        %v1969 = vadd.f32 %v1772, %v1905
        %v1970 = vadd.f32 %v1773, %v1906
        %v1971 = vadd.f32 %v1774, %v1907
        %v1972 = vadd.f32 %v1775, %v1908
        %v1973 = vadd.f32 %v1776, %v1909
        %v1974 = vadd.f32 %v1777, %v1910
        %v1975 = vadd.f32 %v1778, %v1911
        %v1976 = vadd.f32 %v1779, %v1912
        %v1977 = vadd.f32 %v1780, %v1913
        %v1978 = vadd.f32 %v1781, %v1914
        %v1979 = vadd.f32 %v1782, %v1915
        %v1980 = vadd.f32 %v1783, %v1916
        %v1981 = vadd.f32 %v1784, %v1917
        %v1982 = vadd.f32 %v1785, %v1918
        %v1983 = vadd.f32 %v1786, %v1919
        %v1984 = vadd.f32 %v1787, %v1920
        %v1985 = vadd.f32 %v1788, %v1921
        %v1986 = vadd.f32 %v1789, %v1922
        %v1987 = vadd.f32 %v1790, %v1923
        %v1988 = vadd.f32 %v1791, %v1924
        %v1989 = vadd.f32 %v1792, %v1925
        %v1990 = vadd.f32 %v1793, %v1926
        %v1991 = vadd.f32 %v1794, %v1927
        %v1992 = vadd.f32 %v1795, %v1928
        %v1993 = vadd.f32 %v1796, %v1929
        %v1994 = vadd.f32 %v1797, %v1930
        %v1995 = vadd.f32 %v1798, %v1931
        %v1996 = vadd.f32 %v1799, %v1932
        %v1997 = vadd.f32 %v1800, %v1933
        %v1998 = vadd.f32 %v1801, %v1934
        %v1999 = vadd.f32 %v1802, %v1935
        %v2000 = vadd.f32 %v1803, %v1936
        %v2001 = vadd.f32 %v1804, %v1937
        %v2002 = vld [vmem:[%s952 + $0x2] sm:$0xff]
        %v2003 = vld [vmem:[%s952 + $0xa] sm:$0xff]
        %v2004 = vld [vmem:[%s952 + $0x1a] sm:$0xff]
        %v2005 = vld [vmem:[%s952 + $0x22] sm:$0xff]
        %v2006 = vld [vmem:[%s952 + $0x32] sm:$0xff]
        %v2007 = vld [vmem:[%s952 + $0x3a] sm:$0xff]
        %v2008 = vld [vmem:[%s952 + $0x4a] sm:$0xff]
        %v2009 = vld [vmem:[%s952 + $0x52] sm:$0xff]
        %v2010 = vld [vmem:[%s952 + $0x62] sm:$0xff]
        %v2011 = vld [vmem:[%s952 + $0x6a] sm:$0xff]
        %v2012 = vld [vmem:[%s952 + $0x7a] sm:$0xff]
        %v2013 = vld [vmem:[%s952 + $0x82] sm:$0xff]
        %v2014 = vld [vmem:[%s952 + $0x92] sm:$0xff]
        %v2015 = vld [vmem:[%s952 + $0x9a] sm:$0xff]
        %v2016 = vld [vmem:[%s952 + $0xaa] sm:$0xff]
        %v2017 = vld [vmem:[%s952 + $0xb2] sm:$0xff]
        %v2018 = vld [vmem:[%s952 + $0xc2] sm:$0xff]
        %v2019 = vld [vmem:[%s952 + $0xca] sm:$0xff]
        %v2020 = vld [vmem:[%s952 + $0xda] sm:$0xff]
        %v2021 = vld [vmem:[%s952 + $0xe2] sm:$0xff]
        %v2022 = vld [vmem:[%s952 + $0xf2] sm:$0xff]
        %v2023 = vld [vmem:[%s952 + $0xfa] sm:$0xff]
        %v2024 = vld [vmem:[%s952 + $0x10a] sm:$0xff]
        %v2025 = vld [vmem:[%s952 + $0x112] sm:$0xff]
        %v2026 = vld [vmem:[%s952 + $0x122] sm:$0xff]
        %v2027 = vld [vmem:[%s952 + $0x12a] sm:$0xff]
        %v2028 = vld [vmem:[%s952 + $0x13a] sm:$0xff]
        %v2029 = vld [vmem:[%s952 + $0x142] sm:$0xff]
        %v2030 = vld [vmem:[%s952 + $0x152] sm:$0xff]
        %v2031 = vld [vmem:[%s952 + $0x15a] sm:$0xff]
        %v2032 = vld [vmem:[%s952 + $0x16a] sm:$0xff]
        %v2033 = vld [vmem:[%s952 + $0x172] sm:$0xff]
        %v2034 = vld [vmem:[%s952 + $0x1b2] sm:$0xff]
        %v2035 = vld [vmem:[%s952 + $0x1ba] sm:$0xff]
        %v2036 = vld [vmem:[%s952 + $0x1ca] sm:$0xff]
        %v2037 = vld [vmem:[%s952 + $0x1d2] sm:$0xff]
        %v2038 = vld [vmem:[%s952 + $0x1e2] sm:$0xff]
        %v2039 = vld [vmem:[%s952 + $0x1ea] sm:$0xff]
        %v2040 = vld [vmem:[%s952 + $0x1fa] sm:$0xff]
        %v2041 = vld [vmem:[%s952 + $0x202] sm:$0xff]
        %v2042 = vld [vmem:[%s952 + $0x212] sm:$0xff]
        %v2043 = vld [vmem:[%s952 + $0x21a] sm:$0xff]
        %v2044 = vld [vmem:[%s952 + $0x22a] sm:$0xff]
        %v2045 = vld [vmem:[%s952 + $0x232] sm:$0xff]
        %v2046 = vld [vmem:[%s952 + $0x242] sm:$0xff]
        %v2047 = vld [vmem:[%s952 + $0x24a] sm:$0xff]
        %v2048 = vld [vmem:[%s952 + $0x25a] sm:$0xff]
        %v2049 = vld [vmem:[%s952 + $0x262] sm:$0xff]
        %v2050 = vld [vmem:[%s952 + $0x272] sm:$0xff]
        %v2051 = vld [vmem:[%s952 + $0x27a] sm:$0xff]
        %v2052 = vld [vmem:[%s952 + $0x28a] sm:$0xff]
        %v2053 = vld [vmem:[%s952 + $0x292] sm:$0xff]
        %v2054 = vld [vmem:[%s952 + $0x2a2] sm:$0xff]
        %v2055 = vld [vmem:[%s952 + $0x2aa] sm:$0xff]
        %v2056 = vld [vmem:[%s952 + $0x2ba] sm:$0xff]
        %v2057 = vld [vmem:[%s952 + $0x2c2] sm:$0xff]
        %v2058 = vld [vmem:[%s952 + $0x2d2] sm:$0xff]
        %v2059 = vld [vmem:[%s952 + $0x2da] sm:$0xff]
        %v2060 = vld [vmem:[%s952 + $0x2ea] sm:$0xff]
        %v2061 = vld [vmem:[%s952 + $0x2f2] sm:$0xff]
        %v2062 = vld [vmem:[%s952 + $0x302] sm:$0xff]
        %v2063 = vld [vmem:[%s952 + $0x30a] sm:$0xff]
        %v2064 = vld [vmem:[%s952 + $0x31a] sm:$0xff]
        %v2065 = vld [vmem:[%s952 + $0x322] sm:$0xff]
        %v2066 = vld [vmem:[%s3 + $0x5] sm:$0x1]
        %v2067 = vlaneseq
        %v2068 = vshrl.u32 %v2067, 7
        %v2069 = vsub.s32 0, %v2068
        %v2070 = vrot.slane %v2066, %v2069
        %v2071 = vmul.f32 %v2002, %v2070
        %v2072 = vmul.f32 %v2003, %v2070
        %v2073 = vmul.f32 %v2004, %v2070
        %v2074 = vmul.f32 %v2005, %v2070
        %v2075 = vmul.f32 %v2006, %v2070
        %v2076 = vmul.f32 %v2007, %v2070
        %v2077 = vmul.f32 %v2008, %v2070
        %v2078 = vmul.f32 %v2009, %v2070
        %v2079 = vmul.f32 %v2010, %v2070
        %v2080 = vmul.f32 %v2011, %v2070
        %v2081 = vmul.f32 %v2012, %v2070
        %v2082 = vmul.f32 %v2013, %v2070
        %v2083 = vmul.f32 %v2014, %v2070
        %v2084 = vmul.f32 %v2015, %v2070
        %v2085 = vmul.f32 %v2016, %v2070
        %v2086 = vmul.f32 %v2017, %v2070
        %v2087 = vmul.f32 %v2018, %v2070
        %v2088 = vmul.f32 %v2019, %v2070
        %v2089 = vmul.f32 %v2020, %v2070
        %v2090 = vmul.f32 %v2021, %v2070
        %v2091 = vmul.f32 %v2022, %v2070
        %v2092 = vmul.f32 %v2023, %v2070
        %v2093 = vmul.f32 %v2024, %v2070
        %v2094 = vmul.f32 %v2025, %v2070
        %v2095 = vmul.f32 %v2026, %v2070
        %v2096 = vmul.f32 %v2027, %v2070
        %v2097 = vmul.f32 %v2028, %v2070
        %v2098 = vmul.f32 %v2029, %v2070
        %v2099 = vmul.f32 %v2030, %v2070
        %v2100 = vmul.f32 %v2031, %v2070
        %v2101 = vmul.f32 %v2032, %v2070
        %v2102 = vmul.f32 %v2033, %v2070
        %v2103 = vmul.f32 %v2034, %v2070
        %v2104 = vmul.f32 %v2035, %v2070
        %v2105 = vmul.f32 %v2036, %v2070
        %v2106 = vmul.f32 %v2037, %v2070
        %v2107 = vmul.f32 %v2038, %v2070
        %v2108 = vmul.f32 %v2039, %v2070
        %v2109 = vmul.f32 %v2040, %v2070
        %v2110 = vmul.f32 %v2041, %v2070
        %v2111 = vmul.f32 %v2042, %v2070
        %v2112 = vmul.f32 %v2043, %v2070
        %v2113 = vmul.f32 %v2044, %v2070
        %v2114 = vmul.f32 %v2045, %v2070
        %v2115 = vmul.f32 %v2046, %v2070
        %v2116 = vmul.f32 %v2047, %v2070
        %v2117 = vmul.f32 %v2048, %v2070
        %v2118 = vmul.f32 %v2049, %v2070
        %v2119 = vmul.f32 %v2050, %v2070
        %v2120 = vmul.f32 %v2051, %v2070
        %v2121 = vmul.f32 %v2052, %v2070
        %v2122 = vmul.f32 %v2053, %v2070
        %v2123 = vmul.f32 %v2054, %v2070
        %v2124 = vmul.f32 %v2055, %v2070
        %v2125 = vmul.f32 %v2056, %v2070
        %v2126 = vmul.f32 %v2057, %v2070
        %v2127 = vmul.f32 %v2058, %v2070
        %v2128 = vmul.f32 %v2059, %v2070
        %v2129 = vmul.f32 %v2060, %v2070
        %v2130 = vmul.f32 %v2061, %v2070
        %v2131 = vmul.f32 %v2062, %v2070
        %v2132 = vmul.f32 %v2063, %v2070
        %v2133 = vmul.f32 %v2064, %v2070
        %v2134 = vmul.f32 %v2065, %v2070
        %v2135 = vadd.f32 %v1938, %v2071
        %v2136 = vadd.f32 %v1939, %v2072
        %v2137 = vadd.f32 %v1940, %v2073
        %v2138 = vadd.f32 %v1941, %v2074
        %v2139 = vadd.f32 %v1942, %v2075
        %v2140 = vadd.f32 %v1943, %v2076
        %v2141 = vadd.f32 %v1944, %v2077
        %v2142 = vadd.f32 %v1945, %v2078
        %v2143 = vadd.f32 %v1946, %v2079
        %v2144 = vadd.f32 %v1947, %v2080
        %v2145 = vadd.f32 %v1948, %v2081
        %v2146 = vadd.f32 %v1949, %v2082
        %v2147 = vadd.f32 %v1950, %v2083
        %v2148 = vadd.f32 %v1951, %v2084
        %v2149 = vadd.f32 %v1952, %v2085
        %v2150 = vadd.f32 %v1953, %v2086
        %v2151 = vadd.f32 %v1954, %v2087
        %v2152 = vadd.f32 %v1955, %v2088
        %v2153 = vadd.f32 %v1956, %v2089
        %v2154 = vadd.f32 %v1957, %v2090
        %v2155 = vadd.f32 %v1958, %v2091
        %v2156 = vadd.f32 %v1959, %v2092
        %v2157 = vadd.f32 %v1960, %v2093
        %v2158 = vadd.f32 %v1961, %v2094
        %v2159 = vadd.f32 %v1962, %v2095
        %v2160 = vadd.f32 %v1963, %v2096
        %v2161 = vadd.f32 %v1964, %v2097
        %v2162 = vadd.f32 %v1965, %v2098
        %v2163 = vadd.f32 %v1966, %v2099
        %v2164 = vadd.f32 %v1967, %v2100
        %v2165 = vadd.f32 %v1968, %v2101
        %v2166 = vadd.f32 %v1969, %v2102
        %v2167 = vadd.f32 %v1970, %v2103
        %v2168 = vadd.f32 %v1971, %v2104
        %v2169 = vadd.f32 %v1972, %v2105
        %v2170 = vadd.f32 %v1973, %v2106
        %v2171 = vadd.f32 %v1974, %v2107
        %v2172 = vadd.f32 %v1975, %v2108
        %v2173 = vadd.f32 %v1976, %v2109
        %v2174 = vadd.f32 %v1977, %v2110
        %v2175 = vadd.f32 %v1978, %v2111
        %v2176 = vadd.f32 %v1979, %v2112
        %v2177 = vadd.f32 %v1980, %v2113
        %v2178 = vadd.f32 %v1981, %v2114
        %v2179 = vadd.f32 %v1982, %v2115
        %v2180 = vadd.f32 %v1983, %v2116
        %v2181 = vadd.f32 %v1984, %v2117
        %v2182 = vadd.f32 %v1985, %v2118
        %v2183 = vadd.f32 %v1986, %v2119
        %v2184 = vadd.f32 %v1987, %v2120
        %v2185 = vadd.f32 %v1988, %v2121
        %v2186 = vadd.f32 %v1989, %v2122
        %v2187 = vadd.f32 %v1990, %v2123
        %v2188 = vadd.f32 %v1991, %v2124
        %v2189 = vadd.f32 %v1992, %v2125
        %v2190 = vadd.f32 %v1993, %v2126
        %v2191 = vadd.f32 %v1994, %v2127
        %v2192 = vadd.f32 %v1995, %v2128
        %v2193 = vadd.f32 %v1996, %v2129
        %v2194 = vadd.f32 %v1997, %v2130
        %v2195 = vadd.f32 %v1998, %v2131
        %v2196 = vadd.f32 %v1999, %v2132
        %v2197 = vadd.f32 %v2000, %v2133
        %v2198 = vadd.f32 %v2001, %v2134
        %s2199 = scalar_lea.vmem [#allocation2], 48
        %v2200 = vld [vmem:[%s2199] sm:$0xff]
        %v2201 = vld [vmem:[%s2199 + $0x8] sm:$0xff]
        %v2202 = vld [vmem:[%s2199 + $0x18] sm:$0xff]
        %v2203 = vld [vmem:[%s2199 + $0x20] sm:$0xff]
        %v2204 = vld [vmem:[%s2199 + $0x30] sm:$0xff]
        %v2205 = vld [vmem:[%s2199 + $0x38] sm:$0xff]
        %v2206 = vld [vmem:[%s2199 + $0x48] sm:$0xff]
        %v2207 = vld [vmem:[%s2199 + $0x50] sm:$0xff]
        %v2208 = vld [vmem:[%s2199 + $0x60] sm:$0xff]
        %v2209 = vld [vmem:[%s2199 + $0x68] sm:$0xff]
        %v2210 = vld [vmem:[%s2199 + $0x78] sm:$0xff]
        %v2211 = vld [vmem:[%s2199 + $0x80] sm:$0xff]
        %v2212 = vld [vmem:[%s2199 + $0x90] sm:$0xff]
        %v2213 = vld [vmem:[%s2199 + $0x98] sm:$0xff]
        %v2214 = vld [vmem:[%s2199 + $0xa8] sm:$0xff]
        %v2215 = vld [vmem:[%s2199 + $0xb0] sm:$0xff]
        %v2216 = vld [vmem:[%s2199 + $0xc0] sm:$0xff]
        %v2217 = vld [vmem:[%s2199 + $0xc8] sm:$0xff]
        %v2218 = vld [vmem:[%s2199 + $0xd8] sm:$0xff]
        %v2219 = vld [vmem:[%s2199 + $0xe0] sm:$0xff]
        %v2220 = vld [vmem:[%s2199 + $0xf0] sm:$0xff]
        %v2221 = vld [vmem:[%s2199 + $0xf8] sm:$0xff]
        %v2222 = vld [vmem:[%s2199 + $0x108] sm:$0xff]
        %v2223 = vld [vmem:[%s2199 + $0x110] sm:$0xff]
        %v2224 = vld [vmem:[%s2199 + $0x120] sm:$0xff]
        %v2225 = vld [vmem:[%s2199 + $0x128] sm:$0xff]
        %v2226 = vld [vmem:[%s2199 + $0x138] sm:$0xff]
        %v2227 = vld [vmem:[%s2199 + $0x140] sm:$0xff]
        %v2228 = vld [vmem:[%s2199 + $0x150] sm:$0xff]
        %v2229 = vld [vmem:[%s2199 + $0x158] sm:$0xff]
        %v2230 = vld [vmem:[%s2199 + $0x168] sm:$0xff]
        %v2231 = vld [vmem:[%s2199 + $0x170] sm:$0xff]
        %v2232 = vld [vmem:[%s2199 + $0x1b0] sm:$0xff]
        %v2233 = vld [vmem:[%s2199 + $0x1b8] sm:$0xff]
        %v2234 = vld [vmem:[%s2199 + $0x1c8] sm:$0xff]
        %v2235 = vld [vmem:[%s2199 + $0x1d0] sm:$0xff]
        %v2236 = vld [vmem:[%s2199 + $0x1e0] sm:$0xff]
        %v2237 = vld [vmem:[%s2199 + $0x1e8] sm:$0xff]
        %v2238 = vld [vmem:[%s2199 + $0x1f8] sm:$0xff]
        %v2239 = vld [vmem:[%s2199 + $0x200] sm:$0xff]
        %v2240 = vld [vmem:[%s2199 + $0x210] sm:$0xff]
        %v2241 = vld [vmem:[%s2199 + $0x218] sm:$0xff]
        %v2242 = vld [vmem:[%s2199 + $0x228] sm:$0xff]
        %v2243 = vld [vmem:[%s2199 + $0x230] sm:$0xff]
        %v2244 = vld [vmem:[%s2199 + $0x240] sm:$0xff]
        %v2245 = vld [vmem:[%s2199 + $0x248] sm:$0xff]
        %v2246 = vld [vmem:[%s2199 + $0x258] sm:$0xff]
        %v2247 = vld [vmem:[%s2199 + $0x260] sm:$0xff]
        %v2248 = vld [vmem:[%s2199 + $0x270] sm:$0xff]
        %v2249 = vld [vmem:[%s2199 + $0x278] sm:$0xff]
        %v2250 = vld [vmem:[%s2199 + $0x288] sm:$0xff]
        %v2251 = vld [vmem:[%s2199 + $0x290] sm:$0xff]
        %v2252 = vld [vmem:[%s2199 + $0x2a0] sm:$0xff]
        %v2253 = vld [vmem:[%s2199 + $0x2a8] sm:$0xff]
        %v2254 = vld [vmem:[%s2199 + $0x2b8] sm:$0xff]
        %v2255 = vld [vmem:[%s2199 + $0x2c0] sm:$0xff]
        %v2256 = vld [vmem:[%s2199 + $0x2d0] sm:$0xff]
        %v2257 = vld [vmem:[%s2199 + $0x2d8] sm:$0xff]
        %v2258 = vld [vmem:[%s2199 + $0x2e8] sm:$0xff]
        %v2259 = vld [vmem:[%s2199 + $0x2f0] sm:$0xff]
        %v2260 = vld [vmem:[%s2199 + $0x300] sm:$0xff]
        %v2261 = vld [vmem:[%s2199 + $0x308] sm:$0xff]
        %v2262 = vld [vmem:[%s2199 + $0x318] sm:$0xff]
        %v2263 = vld [vmem:[%s2199 + $0x320] sm:$0xff]
        %v2264 = vld [vmem:[%s3 + $0x6] sm:$0x1]
        %v2265 = vlaneseq
        %v2266 = vshrl.u32 %v2265, 7
        %v2267 = vsub.s32 0, %v2266
        %v2268 = vrot.slane %v2264, %v2267
        %v2269 = vmul.f32 %v2200, %v2268
        %v2270 = vmul.f32 %v2201, %v2268
        %v2271 = vmul.f32 %v2202, %v2268
        %v2272 = vmul.f32 %v2203, %v2268
        %v2273 = vmul.f32 %v2204, %v2268
        %v2274 = vmul.f32 %v2205, %v2268
        %v2275 = vmul.f32 %v2206, %v2268
        %v2276 = vmul.f32 %v2207, %v2268
        %v2277 = vmul.f32 %v2208, %v2268
        %v2278 = vmul.f32 %v2209, %v2268
        %v2279 = vmul.f32 %v2210, %v2268
        %v2280 = vmul.f32 %v2211, %v2268
        %v2281 = vmul.f32 %v2212, %v2268
        %v2282 = vmul.f32 %v2213, %v2268
        %v2283 = vmul.f32 %v2214, %v2268
        %v2284 = vmul.f32 %v2215, %v2268
        %v2285 = vmul.f32 %v2216, %v2268
        %v2286 = vmul.f32 %v2217, %v2268
        %v2287 = vmul.f32 %v2218, %v2268
        %v2288 = vmul.f32 %v2219, %v2268
        %v2289 = vmul.f32 %v2220, %v2268
        %v2290 = vmul.f32 %v2221, %v2268
        %v2291 = vmul.f32 %v2222, %v2268
        %v2292 = vmul.f32 %v2223, %v2268
        %v2293 = vmul.f32 %v2224, %v2268
        %v2294 = vmul.f32 %v2225, %v2268
        %v2295 = vmul.f32 %v2226, %v2268
        %v2296 = vmul.f32 %v2227, %v2268
        %v2297 = vmul.f32 %v2228, %v2268
        %v2298 = vmul.f32 %v2229, %v2268
        %v2299 = vmul.f32 %v2230, %v2268
        %v2300 = vmul.f32 %v2231, %v2268
        %v2301 = vmul.f32 %v2232, %v2268
        %v2302 = vmul.f32 %v2233, %v2268
        %v2303 = vmul.f32 %v2234, %v2268
        %v2304 = vmul.f32 %v2235, %v2268
        %v2305 = vmul.f32 %v2236, %v2268
        %v2306 = vmul.f32 %v2237, %v2268
        %v2307 = vmul.f32 %v2238, %v2268
        %v2308 = vmul.f32 %v2239, %v2268
        %v2309 = vmul.f32 %v2240, %v2268
        %v2310 = vmul.f32 %v2241, %v2268
        %v2311 = vmul.f32 %v2242, %v2268
        %v2312 = vmul.f32 %v2243, %v2268
        %v2313 = vmul.f32 %v2244, %v2268
        %v2314 = vmul.f32 %v2245, %v2268
        %v2315 = vmul.f32 %v2246, %v2268
        %v2316 = vmul.f32 %v2247, %v2268
        %v2317 = vmul.f32 %v2248, %v2268
        %v2318 = vmul.f32 %v2249, %v2268
        %v2319 = vmul.f32 %v2250, %v2268
        %v2320 = vmul.f32 %v2251, %v2268
        %v2321 = vmul.f32 %v2252, %v2268
        %v2322 = vmul.f32 %v2253, %v2268
        %v2323 = vmul.f32 %v2254, %v2268
        %v2324 = vmul.f32 %v2255, %v2268
        %v2325 = vmul.f32 %v2256, %v2268
        %v2326 = vmul.f32 %v2257, %v2268
        %v2327 = vmul.f32 %v2258, %v2268
        %v2328 = vmul.f32 %v2259, %v2268
        %v2329 = vmul.f32 %v2260, %v2268
        %v2330 = vmul.f32 %v2261, %v2268
        %v2331 = vmul.f32 %v2262, %v2268
        %v2332 = vmul.f32 %v2263, %v2268
        %v2333 = vadd.f32 %v2135, %v2269
        %v2334 = vadd.f32 %v2136, %v2270
        %v2335 = vadd.f32 %v2137, %v2271
        %v2336 = vadd.f32 %v2138, %v2272
        %v2337 = vadd.f32 %v2139, %v2273
        %v2338 = vadd.f32 %v2140, %v2274
        %v2339 = vadd.f32 %v2141, %v2275
        %v2340 = vadd.f32 %v2142, %v2276
        %v2341 = vadd.f32 %v2143, %v2277
        %v2342 = vadd.f32 %v2144, %v2278
        %v2343 = vadd.f32 %v2145, %v2279
        %v2344 = vadd.f32 %v2146, %v2280
        %v2345 = vadd.f32 %v2147, %v2281
        %v2346 = vadd.f32 %v2148, %v2282
        %v2347 = vadd.f32 %v2149, %v2283
        %v2348 = vadd.f32 %v2150, %v2284
        %v2349 = vadd.f32 %v2151, %v2285
        %v2350 = vadd.f32 %v2152, %v2286
        %v2351 = vadd.f32 %v2153, %v2287
        %v2352 = vadd.f32 %v2154, %v2288
        %v2353 = vadd.f32 %v2155, %v2289
        %v2354 = vadd.f32 %v2156, %v2290
        %v2355 = vadd.f32 %v2157, %v2291
        %v2356 = vadd.f32 %v2158, %v2292
        %v2357 = vadd.f32 %v2159, %v2293
        %v2358 = vadd.f32 %v2160, %v2294
        %v2359 = vadd.f32 %v2161, %v2295
        %v2360 = vadd.f32 %v2162, %v2296
        %v2361 = vadd.f32 %v2163, %v2297
        %v2362 = vadd.f32 %v2164, %v2298
        %v2363 = vadd.f32 %v2165, %v2299
        %v2364 = vadd.f32 %v2166, %v2300
        %v2365 = vadd.f32 %v2167, %v2301
        %v2366 = vadd.f32 %v2168, %v2302
        %v2367 = vadd.f32 %v2169, %v2303
        %v2368 = vadd.f32 %v2170, %v2304
        %v2369 = vadd.f32 %v2171, %v2305
        %v2370 = vadd.f32 %v2172, %v2306
        %v2371 = vadd.f32 %v2173, %v2307
        %v2372 = vadd.f32 %v2174, %v2308
        %v2373 = vadd.f32 %v2175, %v2309
        %v2374 = vadd.f32 %v2176, %v2310
        %v2375 = vadd.f32 %v2177, %v2311
        %v2376 = vadd.f32 %v2178, %v2312
        %v2377 = vadd.f32 %v2179, %v2313
        %v2378 = vadd.f32 %v2180, %v2314
        %v2379 = vadd.f32 %v2181, %v2315
        %v2380 = vadd.f32 %v2182, %v2316
        %v2381 = vadd.f32 %v2183, %v2317
        %v2382 = vadd.f32 %v2184, %v2318
        %v2383 = vadd.f32 %v2185, %v2319
        %v2384 = vadd.f32 %v2186, %v2320
        %v2385 = vadd.f32 %v2187, %v2321
        %v2386 = vadd.f32 %v2188, %v2322
        %v2387 = vadd.f32 %v2189, %v2323
        %v2388 = vadd.f32 %v2190, %v2324
        %v2389 = vadd.f32 %v2191, %v2325
        %v2390 = vadd.f32 %v2192, %v2326
        %v2391 = vadd.f32 %v2193, %v2327
        %v2392 = vadd.f32 %v2194, %v2328
        %v2393 = vadd.f32 %v2195, %v2329
        %v2394 = vadd.f32 %v2196, %v2330
        %v2395 = vadd.f32 %v2197, %v2331
        %v2396 = vadd.f32 %v2198, %v2332
        %v2397 = vld [vmem:[%s2199 + $0x1] sm:$0xff]
        %v2398 = vld [vmem:[%s2199 + $0x9] sm:$0xff]
        %v2399 = vld [vmem:[%s2199 + $0x19] sm:$0xff]
        %v2400 = vld [vmem:[%s2199 + $0x21] sm:$0xff]
        %v2401 = vld [vmem:[%s2199 + $0x31] sm:$0xff]
        %v2402 = vld [vmem:[%s2199 + $0x39] sm:$0xff]
        %v2403 = vld [vmem:[%s2199 + $0x49] sm:$0xff]
        %v2404 = vld [vmem:[%s2199 + $0x51] sm:$0xff]
        %v2405 = vld [vmem:[%s2199 + $0x61] sm:$0xff]
        %v2406 = vld [vmem:[%s2199 + $0x69] sm:$0xff]
        %v2407 = vld [vmem:[%s2199 + $0x79] sm:$0xff]
        %v2408 = vld [vmem:[%s2199 + $0x81] sm:$0xff]
        %v2409 = vld [vmem:[%s2199 + $0x91] sm:$0xff]
        %v2410 = vld [vmem:[%s2199 + $0x99] sm:$0xff]
        %v2411 = vld [vmem:[%s2199 + $0xa9] sm:$0xff]
        %v2412 = vld [vmem:[%s2199 + $0xb1] sm:$0xff]
        %v2413 = vld [vmem:[%s2199 + $0xc1] sm:$0xff]
        %v2414 = vld [vmem:[%s2199 + $0xc9] sm:$0xff]
        %v2415 = vld [vmem:[%s2199 + $0xd9] sm:$0xff]
        %v2416 = vld [vmem:[%s2199 + $0xe1] sm:$0xff]
        %v2417 = vld [vmem:[%s2199 + $0xf1] sm:$0xff]
        %v2418 = vld [vmem:[%s2199 + $0xf9] sm:$0xff]
        %v2419 = vld [vmem:[%s2199 + $0x109] sm:$0xff]
        %v2420 = vld [vmem:[%s2199 + $0x111] sm:$0xff]
        %v2421 = vld [vmem:[%s2199 + $0x121] sm:$0xff]
        %v2422 = vld [vmem:[%s2199 + $0x129] sm:$0xff]
        %v2423 = vld [vmem:[%s2199 + $0x139] sm:$0xff]
        %v2424 = vld [vmem:[%s2199 + $0x141] sm:$0xff]
        %v2425 = vld [vmem:[%s2199 + $0x151] sm:$0xff]
        %v2426 = vld [vmem:[%s2199 + $0x159] sm:$0xff]
        %v2427 = vld [vmem:[%s2199 + $0x169] sm:$0xff]
        %v2428 = vld [vmem:[%s2199 + $0x171] sm:$0xff]
        %v2429 = vld [vmem:[%s2199 + $0x1b1] sm:$0xff]
        %v2430 = vld [vmem:[%s2199 + $0x1b9] sm:$0xff]
        %v2431 = vld [vmem:[%s2199 + $0x1c9] sm:$0xff]
        %v2432 = vld [vmem:[%s2199 + $0x1d1] sm:$0xff]
        %v2433 = vld [vmem:[%s2199 + $0x1e1] sm:$0xff]
        %v2434 = vld [vmem:[%s2199 + $0x1e9] sm:$0xff]
        %v2435 = vld [vmem:[%s2199 + $0x1f9] sm:$0xff]
        %v2436 = vld [vmem:[%s2199 + $0x201] sm:$0xff]
        %v2437 = vld [vmem:[%s2199 + $0x211] sm:$0xff]
        %v2438 = vld [vmem:[%s2199 + $0x219] sm:$0xff]
        %v2439 = vld [vmem:[%s2199 + $0x229] sm:$0xff]
        %v2440 = vld [vmem:[%s2199 + $0x231] sm:$0xff]
        %v2441 = vld [vmem:[%s2199 + $0x241] sm:$0xff]
        %v2442 = vld [vmem:[%s2199 + $0x249] sm:$0xff]
        %v2443 = vld [vmem:[%s2199 + $0x259] sm:$0xff]
        %v2444 = vld [vmem:[%s2199 + $0x261] sm:$0xff]
        %v2445 = vld [vmem:[%s2199 + $0x271] sm:$0xff]
        %v2446 = vld [vmem:[%s2199 + $0x279] sm:$0xff]
        %v2447 = vld [vmem:[%s2199 + $0x289] sm:$0xff]
        %v2448 = vld [vmem:[%s2199 + $0x291] sm:$0xff]
        %v2449 = vld [vmem:[%s2199 + $0x2a1] sm:$0xff]
        %v2450 = vld [vmem:[%s2199 + $0x2a9] sm:$0xff]
        %v2451 = vld [vmem:[%s2199 + $0x2b9] sm:$0xff]
        %v2452 = vld [vmem:[%s2199 + $0x2c1] sm:$0xff]
        %v2453 = vld [vmem:[%s2199 + $0x2d1] sm:$0xff]
        %v2454 = vld [vmem:[%s2199 + $0x2d9] sm:$0xff]
        %v2455 = vld [vmem:[%s2199 + $0x2e9] sm:$0xff]
        %v2456 = vld [vmem:[%s2199 + $0x2f1] sm:$0xff]
        %v2457 = vld [vmem:[%s2199 + $0x301] sm:$0xff]
        %v2458 = vld [vmem:[%s2199 + $0x309] sm:$0xff]
        %v2459 = vld [vmem:[%s2199 + $0x319] sm:$0xff]
        %v2460 = vld [vmem:[%s2199 + $0x321] sm:$0xff]
        %v2461 = vld [vmem:[%s3 + $0x7] sm:$0x1]
        %v2462 = vlaneseq
        %v2463 = vshrl.u32 %v2462, 7
        %v2464 = vsub.s32 0, %v2463
        %v2465 = vrot.slane %v2461, %v2464
        %v2466 = vmul.f32 %v2397, %v2465
        %v2467 = vmul.f32 %v2398, %v2465
        %v2468 = vmul.f32 %v2399, %v2465
        %v2469 = vmul.f32 %v2400, %v2465
        %v2470 = vmul.f32 %v2401, %v2465
        %v2471 = vmul.f32 %v2402, %v2465
        %v2472 = vmul.f32 %v2403, %v2465
        %v2473 = vmul.f32 %v2404, %v2465
        %v2474 = vmul.f32 %v2405, %v2465
        %v2475 = vmul.f32 %v2406, %v2465
        %v2476 = vmul.f32 %v2407, %v2465
        %v2477 = vmul.f32 %v2408, %v2465
        %v2478 = vmul.f32 %v2409, %v2465
        %v2479 = vmul.f32 %v2410, %v2465
        %v2480 = vmul.f32 %v2411, %v2465
        %v2481 = vmul.f32 %v2412, %v2465
        %v2482 = vmul.f32 %v2413, %v2465
        %v2483 = vmul.f32 %v2414, %v2465
        %v2484 = vmul.f32 %v2415, %v2465
        %v2485 = vmul.f32 %v2416, %v2465
        %v2486 = vmul.f32 %v2417, %v2465
        %v2487 = vmul.f32 %v2418, %v2465
        %v2488 = vmul.f32 %v2419, %v2465
        %v2489 = vmul.f32 %v2420, %v2465
        %v2490 = vmul.f32 %v2421, %v2465
        %v2491 = vmul.f32 %v2422, %v2465
        %v2492 = vmul.f32 %v2423, %v2465
        %v2493 = vmul.f32 %v2424, %v2465
        %v2494 = vmul.f32 %v2425, %v2465
        %v2495 = vmul.f32 %v2426, %v2465
        %v2496 = vmul.f32 %v2427, %v2465
        %v2497 = vmul.f32 %v2428, %v2465
        %v2498 = vmul.f32 %v2429, %v2465
        %v2499 = vmul.f32 %v2430, %v2465
        %v2500 = vmul.f32 %v2431, %v2465
        %v2501 = vmul.f32 %v2432, %v2465
        %v2502 = vmul.f32 %v2433, %v2465
        %v2503 = vmul.f32 %v2434, %v2465
        %v2504 = vmul.f32 %v2435, %v2465
        %v2505 = vmul.f32 %v2436, %v2465
        %v2506 = vmul.f32 %v2437, %v2465
        %v2507 = vmul.f32 %v2438, %v2465
        %v2508 = vmul.f32 %v2439, %v2465
        %v2509 = vmul.f32 %v2440, %v2465
        %v2510 = vmul.f32 %v2441, %v2465
        %v2511 = vmul.f32 %v2442, %v2465
        %v2512 = vmul.f32 %v2443, %v2465
        %v2513 = vmul.f32 %v2444, %v2465
        %v2514 = vmul.f32 %v2445, %v2465
        %v2515 = vmul.f32 %v2446, %v2465
        %v2516 = vmul.f32 %v2447, %v2465
        %v2517 = vmul.f32 %v2448, %v2465
        %v2518 = vmul.f32 %v2449, %v2465
        %v2519 = vmul.f32 %v2450, %v2465
        %v2520 = vmul.f32 %v2451, %v2465
        %v2521 = vmul.f32 %v2452, %v2465
        %v2522 = vmul.f32 %v2453, %v2465
        %v2523 = vmul.f32 %v2454, %v2465
        %v2524 = vmul.f32 %v2455, %v2465
        %v2525 = vmul.f32 %v2456, %v2465
        %v2526 = vmul.f32 %v2457, %v2465
        %v2527 = vmul.f32 %v2458, %v2465
        %v2528 = vmul.f32 %v2459, %v2465
        %v2529 = vmul.f32 %v2460, %v2465
        %v2530 = vadd.f32 %v2333, %v2466
        %v2531 = vadd.f32 %v2334, %v2467
        %v2532 = vadd.f32 %v2335, %v2468
        %v2533 = vadd.f32 %v2336, %v2469
        %v2534 = vadd.f32 %v2337, %v2470
        %v2535 = vadd.f32 %v2338, %v2471
        %v2536 = vadd.f32 %v2339, %v2472
        %v2537 = vadd.f32 %v2340, %v2473
        %v2538 = vadd.f32 %v2341, %v2474
        %v2539 = vadd.f32 %v2342, %v2475
        %v2540 = vadd.f32 %v2343, %v2476
        %v2541 = vadd.f32 %v2344, %v2477
        %v2542 = vadd.f32 %v2345, %v2478
        %v2543 = vadd.f32 %v2346, %v2479
        %v2544 = vadd.f32 %v2347, %v2480
        %v2545 = vadd.f32 %v2348, %v2481
        %v2546 = vadd.f32 %v2349, %v2482
        %v2547 = vadd.f32 %v2350, %v2483
        %v2548 = vadd.f32 %v2351, %v2484
        %v2549 = vadd.f32 %v2352, %v2485
        %v2550 = vadd.f32 %v2353, %v2486
        %v2551 = vadd.f32 %v2354, %v2487
        %v2552 = vadd.f32 %v2355, %v2488
        %v2553 = vadd.f32 %v2356, %v2489
        %v2554 = vadd.f32 %v2357, %v2490
        %v2555 = vadd.f32 %v2358, %v2491
        %v2556 = vadd.f32 %v2359, %v2492
        %v2557 = vadd.f32 %v2360, %v2493
        %v2558 = vadd.f32 %v2361, %v2494
        %v2559 = vadd.f32 %v2362, %v2495
        %v2560 = vadd.f32 %v2363, %v2496
        %v2561 = vadd.f32 %v2364, %v2497
        %v2562 = vadd.f32 %v2365, %v2498
        %v2563 = vadd.f32 %v2366, %v2499
        %v2564 = vadd.f32 %v2367, %v2500
        %v2565 = vadd.f32 %v2368, %v2501
        %v2566 = vadd.f32 %v2369, %v2502
        %v2567 = vadd.f32 %v2370, %v2503
        %v2568 = vadd.f32 %v2371, %v2504
        %v2569 = vadd.f32 %v2372, %v2505
        %v2570 = vadd.f32 %v2373, %v2506
        %v2571 = vadd.f32 %v2374, %v2507
        %v2572 = vadd.f32 %v2375, %v2508
        %v2573 = vadd.f32 %v2376, %v2509
        %v2574 = vadd.f32 %v2377, %v2510
        %v2575 = vadd.f32 %v2378, %v2511
        %v2576 = vadd.f32 %v2379, %v2512
        %v2577 = vadd.f32 %v2380, %v2513
        %v2578 = vadd.f32 %v2381, %v2514
        %v2579 = vadd.f32 %v2382, %v2515
        %v2580 = vadd.f32 %v2383, %v2516
        %v2581 = vadd.f32 %v2384, %v2517
        %v2582 = vadd.f32 %v2385, %v2518
        %v2583 = vadd.f32 %v2386, %v2519
        %v2584 = vadd.f32 %v2387, %v2520
        %v2585 = vadd.f32 %v2388, %v2521
        %v2586 = vadd.f32 %v2389, %v2522
        %v2587 = vadd.f32 %v2390, %v2523
        %v2588 = vadd.f32 %v2391, %v2524
        %v2589 = vadd.f32 %v2392, %v2525
        %v2590 = vadd.f32 %v2393, %v2526
        %v2591 = vadd.f32 %v2394, %v2527
        %v2592 = vadd.f32 %v2395, %v2528
        %v2593 = vadd.f32 %v2396, %v2529
        %v2594 = vld [vmem:[%s2199 + $0x2] sm:$0xff]
        %v2595 = vld [vmem:[%s2199 + $0xa] sm:$0xff]
        %v2596 = vld [vmem:[%s2199 + $0x1a] sm:$0xff]
        %v2597 = vld [vmem:[%s2199 + $0x22] sm:$0xff]
        %v2598 = vld [vmem:[%s2199 + $0x32] sm:$0xff]
        %v2599 = vld [vmem:[%s2199 + $0x3a] sm:$0xff]
        %v2600 = vld [vmem:[%s2199 + $0x4a] sm:$0xff]
        %v2601 = vld [vmem:[%s2199 + $0x52] sm:$0xff]
        %v2602 = vld [vmem:[%s2199 + $0x62] sm:$0xff]
        %v2603 = vld [vmem:[%s2199 + $0x6a] sm:$0xff]
        %v2604 = vld [vmem:[%s2199 + $0x7a] sm:$0xff]
        %v2605 = vld [vmem:[%s2199 + $0x82] sm:$0xff]
        %v2606 = vld [vmem:[%s2199 + $0x92] sm:$0xff]
        %v2607 = vld [vmem:[%s2199 + $0x9a] sm:$0xff]
        %v2608 = vld [vmem:[%s2199 + $0xaa] sm:$0xff]
        %v2609 = vld [vmem:[%s2199 + $0xb2] sm:$0xff]
        %v2610 = vld [vmem:[%s2199 + $0xc2] sm:$0xff]
        %v2611 = vld [vmem:[%s2199 + $0xca] sm:$0xff]
        %v2612 = vld [vmem:[%s2199 + $0xda] sm:$0xff]
        %v2613 = vld [vmem:[%s2199 + $0xe2] sm:$0xff]
        %v2614 = vld [vmem:[%s2199 + $0xf2] sm:$0xff]
        %v2615 = vld [vmem:[%s2199 + $0xfa] sm:$0xff]
        %v2616 = vld [vmem:[%s2199 + $0x10a] sm:$0xff]
        %v2617 = vld [vmem:[%s2199 + $0x112] sm:$0xff]
        %v2618 = vld [vmem:[%s2199 + $0x122] sm:$0xff]
        %v2619 = vld [vmem:[%s2199 + $0x12a] sm:$0xff]
        %v2620 = vld [vmem:[%s2199 + $0x13a] sm:$0xff]
        %v2621 = vld [vmem:[%s2199 + $0x142] sm:$0xff]
        %v2622 = vld [vmem:[%s2199 + $0x152] sm:$0xff]
        %v2623 = vld [vmem:[%s2199 + $0x15a] sm:$0xff]
        %v2624 = vld [vmem:[%s2199 + $0x16a] sm:$0xff]
        %v2625 = vld [vmem:[%s2199 + $0x172] sm:$0xff]
        %v2626 = vld [vmem:[%s2199 + $0x1b2] sm:$0xff]
        %v2627 = vld [vmem:[%s2199 + $0x1ba] sm:$0xff]
        %v2628 = vld [vmem:[%s2199 + $0x1ca] sm:$0xff]
        %v2629 = vld [vmem:[%s2199 + $0x1d2] sm:$0xff]
        %v2630 = vld [vmem:[%s2199 + $0x1e2] sm:$0xff]
        %v2631 = vld [vmem:[%s2199 + $0x1ea] sm:$0xff]
        %v2632 = vld [vmem:[%s2199 + $0x1fa] sm:$0xff]
        %v2633 = vld [vmem:[%s2199 + $0x202] sm:$0xff]
        %v2634 = vld [vmem:[%s2199 + $0x212] sm:$0xff]
        %v2635 = vld [vmem:[%s2199 + $0x21a] sm:$0xff]
        %v2636 = vld [vmem:[%s2199 + $0x22a] sm:$0xff]
        %v2637 = vld [vmem:[%s2199 + $0x232] sm:$0xff]
        %v2638 = vld [vmem:[%s2199 + $0x242] sm:$0xff]
        %v2639 = vld [vmem:[%s2199 + $0x24a] sm:$0xff]
        %v2640 = vld [vmem:[%s2199 + $0x25a] sm:$0xff]
        %v2641 = vld [vmem:[%s2199 + $0x262] sm:$0xff]
        %v2642 = vld [vmem:[%s2199 + $0x272] sm:$0xff]
        %v2643 = vld [vmem:[%s2199 + $0x27a] sm:$0xff]
        %v2644 = vld [vmem:[%s2199 + $0x28a] sm:$0xff]
        %v2645 = vld [vmem:[%s2199 + $0x292] sm:$0xff]
        %v2646 = vld [vmem:[%s2199 + $0x2a2] sm:$0xff]
        %v2647 = vld [vmem:[%s2199 + $0x2aa] sm:$0xff]
        %v2648 = vld [vmem:[%s2199 + $0x2ba] sm:$0xff]
        %v2649 = vld [vmem:[%s2199 + $0x2c2] sm:$0xff]
        %v2650 = vld [vmem:[%s2199 + $0x2d2] sm:$0xff]
        %v2651 = vld [vmem:[%s2199 + $0x2da] sm:$0xff]
        %v2652 = vld [vmem:[%s2199 + $0x2ea] sm:$0xff]
        %v2653 = vld [vmem:[%s2199 + $0x2f2] sm:$0xff]
        %v2654 = vld [vmem:[%s2199 + $0x302] sm:$0xff]
        %v2655 = vld [vmem:[%s2199 + $0x30a] sm:$0xff]
        %v2656 = vld [vmem:[%s2199 + $0x31a] sm:$0xff]
        %v2657 = vld [vmem:[%s2199 + $0x322] sm:$0xff]
        %v2658 = vld [vmem:[%s3 + $0x8] sm:$0x1]
        %v2659 = vlaneseq
        %v2660 = vshrl.u32 %v2659, 7
        %v2661 = vsub.s32 0, %v2660
        %v2662 = vrot.slane %v2658, %v2661
        %v2663 = vmul.f32 %v2594, %v2662
        %v2664 = vmul.f32 %v2595, %v2662
        %v2665 = vmul.f32 %v2596, %v2662
        %v2666 = vmul.f32 %v2597, %v2662
        %v2667 = vmul.f32 %v2598, %v2662
        %v2668 = vmul.f32 %v2599, %v2662
        %v2669 = vmul.f32 %v2600, %v2662
        %v2670 = vmul.f32 %v2601, %v2662
        %v2671 = vmul.f32 %v2602, %v2662
        %v2672 = vmul.f32 %v2603, %v2662
        %v2673 = vmul.f32 %v2604, %v2662
        %v2674 = vmul.f32 %v2605, %v2662
        %v2675 = vmul.f32 %v2606, %v2662
        %v2676 = vmul.f32 %v2607, %v2662
        %v2677 = vmul.f32 %v2608, %v2662
        %v2678 = vmul.f32 %v2609, %v2662
        %v2679 = vmul.f32 %v2610, %v2662
        %v2680 = vmul.f32 %v2611, %v2662
        %v2681 = vmul.f32 %v2612, %v2662
        %v2682 = vmul.f32 %v2613, %v2662
        %v2683 = vmul.f32 %v2614, %v2662
        %v2684 = vmul.f32 %v2615, %v2662
        %v2685 = vmul.f32 %v2616, %v2662
        %v2686 = vmul.f32 %v2617, %v2662
        %v2687 = vmul.f32 %v2618, %v2662
        %v2688 = vmul.f32 %v2619, %v2662
        %v2689 = vmul.f32 %v2620, %v2662
        %v2690 = vmul.f32 %v2621, %v2662
        %v2691 = vmul.f32 %v2622, %v2662
        %v2692 = vmul.f32 %v2623, %v2662
        %v2693 = vmul.f32 %v2624, %v2662
        %v2694 = vmul.f32 %v2625, %v2662
        %v2695 = vmul.f32 %v2626, %v2662
        %v2696 = vmul.f32 %v2627, %v2662
        %v2697 = vmul.f32 %v2628, %v2662
        %v2698 = vmul.f32 %v2629, %v2662
        %v2699 = vmul.f32 %v2630, %v2662
        %v2700 = vmul.f32 %v2631, %v2662
        %v2701 = vmul.f32 %v2632, %v2662
        %v2702 = vmul.f32 %v2633, %v2662
        %v2703 = vmul.f32 %v2634, %v2662
        %v2704 = vmul.f32 %v2635, %v2662
        %v2705 = vmul.f32 %v2636, %v2662
        %v2706 = vmul.f32 %v2637, %v2662
        %v2707 = vmul.f32 %v2638, %v2662
        %v2708 = vmul.f32 %v2639, %v2662
        %v2709 = vmul.f32 %v2640, %v2662
        %v2710 = vmul.f32 %v2641, %v2662
        %v2711 = vmul.f32 %v2642, %v2662
        %v2712 = vmul.f32 %v2643, %v2662
        %v2713 = vmul.f32 %v2644, %v2662
        %v2714 = vmul.f32 %v2645, %v2662
        %v2715 = vmul.f32 %v2646, %v2662
        %v2716 = vmul.f32 %v2647, %v2662
        %v2717 = vmul.f32 %v2648, %v2662
        %v2718 = vmul.f32 %v2649, %v2662
        %v2719 = vmul.f32 %v2650, %v2662
        %v2720 = vmul.f32 %v2651, %v2662
        %v2721 = vmul.f32 %v2652, %v2662
        %v2722 = vmul.f32 %v2653, %v2662
        %v2723 = vmul.f32 %v2654, %v2662
        %v2724 = vmul.f32 %v2655, %v2662
        %v2725 = vmul.f32 %v2656, %v2662
        %v2726 = vmul.f32 %v2657, %v2662
        %v2727 = vadd.f32 %v2530, %v2663
        %v2728 = vadd.f32 %v2531, %v2664
        %v2729 = vadd.f32 %v2532, %v2665
        %v2730 = vadd.f32 %v2533, %v2666
        %v2731 = vadd.f32 %v2534, %v2667
        %v2732 = vadd.f32 %v2535, %v2668
        %v2733 = vadd.f32 %v2536, %v2669
        %v2734 = vadd.f32 %v2537, %v2670
        %v2735 = vadd.f32 %v2538, %v2671
        %v2736 = vadd.f32 %v2539, %v2672
        %v2737 = vadd.f32 %v2540, %v2673
        %v2738 = vadd.f32 %v2541, %v2674
        %v2739 = vadd.f32 %v2542, %v2675
        %v2740 = vadd.f32 %v2543, %v2676
        %v2741 = vadd.f32 %v2544, %v2677
        %v2742 = vadd.f32 %v2545, %v2678
        %v2743 = vadd.f32 %v2546, %v2679
        %v2744 = vadd.f32 %v2547, %v2680
        %v2745 = vadd.f32 %v2548, %v2681
        %v2746 = vadd.f32 %v2549, %v2682
        %v2747 = vadd.f32 %v2550, %v2683
        %v2748 = vadd.f32 %v2551, %v2684
        %v2749 = vadd.f32 %v2552, %v2685
        %v2750 = vadd.f32 %v2553, %v2686
        %v2751 = vadd.f32 %v2554, %v2687
        %v2752 = vadd.f32 %v2555, %v2688
        %v2753 = vadd.f32 %v2556, %v2689
        %v2754 = vadd.f32 %v2557, %v2690
        %v2755 = vadd.f32 %v2558, %v2691
        %v2756 = vadd.f32 %v2559, %v2692
        %v2757 = vadd.f32 %v2560, %v2693
        %v2758 = vadd.f32 %v2561, %v2694
        %v2759 = vadd.f32 %v2562, %v2695
        %v2760 = vadd.f32 %v2563, %v2696
        %v2761 = vadd.f32 %v2564, %v2697
        %v2762 = vadd.f32 %v2565, %v2698
        %v2763 = vadd.f32 %v2566, %v2699
        %v2764 = vadd.f32 %v2567, %v2700
        %v2765 = vadd.f32 %v2568, %v2701
        %v2766 = vadd.f32 %v2569, %v2702
        %v2767 = vadd.f32 %v2570, %v2703
        %v2768 = vadd.f32 %v2571, %v2704
        %v2769 = vadd.f32 %v2572, %v2705
        %v2770 = vadd.f32 %v2573, %v2706
        %v2771 = vadd.f32 %v2574, %v2707
        %v2772 = vadd.f32 %v2575, %v2708
        %v2773 = vadd.f32 %v2576, %v2709
        %v2774 = vadd.f32 %v2577, %v2710
        %v2775 = vadd.f32 %v2578, %v2711
        %v2776 = vadd.f32 %v2579, %v2712
        %v2777 = vadd.f32 %v2580, %v2713
        %v2778 = vadd.f32 %v2581, %v2714
        %v2779 = vadd.f32 %v2582, %v2715
        %v2780 = vadd.f32 %v2583, %v2716
        %v2781 = vadd.f32 %v2584, %v2717
        %v2782 = vadd.f32 %v2585, %v2718
        %v2783 = vadd.f32 %v2586, %v2719
        %v2784 = vadd.f32 %v2587, %v2720
        %v2785 = vadd.f32 %v2588, %v2721
        %v2786 = vadd.f32 %v2589, %v2722
        %v2787 = vadd.f32 %v2590, %v2723
        %v2788 = vadd.f32 %v2591, %v2724
        %v2789 = vadd.f32 %v2592, %v2725
        %v2790 = vadd.f32 %v2593, %v2726
        %v2791 = vld [vmem:[%s4] sm:$0x1]
        %v2793 = vlaneseq
        %v2794 = vshrl.u32 %v2793, 7
        %v2795 = vsub.s32 0, %v2794
        %v2796 = vrot.slane %v2791, %v2795
        %v2798 = vadd.f32 %v2727, %v2796
        %v2799 = vadd.f32 %v2728, %v2796
        %v2800 = vadd.f32 %v2729, %v2796
        %v2801 = vadd.f32 %v2730, %v2796
        %v2802 = vadd.f32 %v2731, %v2796
        %v2803 = vadd.f32 %v2732, %v2796
        %v2804 = vadd.f32 %v2733, %v2796
        %v2805 = vadd.f32 %v2734, %v2796
        %v2806 = vadd.f32 %v2735, %v2796
        %v2807 = vadd.f32 %v2736, %v2796
        %v2808 = vadd.f32 %v2737, %v2796
        %v2809 = vadd.f32 %v2738, %v2796
        %v2810 = vadd.f32 %v2739, %v2796
        %v2811 = vadd.f32 %v2740, %v2796
        %v2812 = vadd.f32 %v2741, %v2796
        %v2813 = vadd.f32 %v2742, %v2796
        %v2814 = vadd.f32 %v2743, %v2796
        %v2815 = vadd.f32 %v2744, %v2796
        %v2816 = vadd.f32 %v2745, %v2796
        %v2817 = vadd.f32 %v2746, %v2796
        %v2818 = vadd.f32 %v2747, %v2796
        %v2819 = vadd.f32 %v2748, %v2796
        %v2820 = vadd.f32 %v2749, %v2796
        %v2821 = vadd.f32 %v2750, %v2796
        %v2822 = vadd.f32 %v2751, %v2796
        %v2823 = vadd.f32 %v2752, %v2796
        %v2824 = vadd.f32 %v2753, %v2796
        %v2825 = vadd.f32 %v2754, %v2796
        %v2826 = vadd.f32 %v2755, %v2796
        %v2827 = vadd.f32 %v2756, %v2796
        %v2828 = vadd.f32 %v2757, %v2796
        %v2829 = vadd.f32 %v2758, %v2796
        %v2830 = vadd.f32 %v2759, %v2796
        %v2831 = vadd.f32 %v2760, %v2796
        %v2832 = vadd.f32 %v2761, %v2796
        %v2833 = vadd.f32 %v2762, %v2796
        %v2834 = vadd.f32 %v2763, %v2796
        %v2835 = vadd.f32 %v2764, %v2796
        %v2836 = vadd.f32 %v2765, %v2796
        %v2837 = vadd.f32 %v2766, %v2796
        %v2838 = vadd.f32 %v2767, %v2796
        %v2839 = vadd.f32 %v2768, %v2796
        %v2840 = vadd.f32 %v2769, %v2796
        %v2841 = vadd.f32 %v2770, %v2796
        %v2842 = vadd.f32 %v2771, %v2796
        %v2843 = vadd.f32 %v2772, %v2796
        %v2844 = vadd.f32 %v2773, %v2796
        %v2845 = vadd.f32 %v2774, %v2796
        %v2846 = vadd.f32 %v2775, %v2796
        %v2847 = vadd.f32 %v2776, %v2796
        %v2848 = vadd.f32 %v2777, %v2796
        %v2849 = vadd.f32 %v2778, %v2796
        %v2850 = vadd.f32 %v2779, %v2796
        %v2851 = vadd.f32 %v2780, %v2796
        %v2852 = vadd.f32 %v2781, %v2796
        %v2853 = vadd.f32 %v2782, %v2796
        %v2854 = vadd.f32 %v2783, %v2796
        %v2855 = vadd.f32 %v2784, %v2796
        %v2856 = vadd.f32 %v2785, %v2796
        %v2857 = vadd.f32 %v2786, %v2796
        %v2858 = vadd.f32 %v2787, %v2796
        %v2859 = vadd.f32 %v2788, %v2796
        %v2860 = vadd.f32 %v2789, %v2796
        %v2861 = vadd.f32 %v2790, %v2796
        %v2862 = vmax.f32 %v2798, 0.0
        %v2863 = vmax.f32 %v2799, 0.0
        %v2864 = vmax.f32 %v2800, 0.0
        %v2865 = vmax.f32 %v2801, 0.0
        %v2866 = vmax.f32 %v2802, 0.0
        %v2867 = vmax.f32 %v2803, 0.0
        %v2868 = vmax.f32 %v2804, 0.0
        %v2869 = vmax.f32 %v2805, 0.0
        %v2870 = vmax.f32 %v2806, 0.0
        %v2871 = vmax.f32 %v2807, 0.0
        %v2872 = vmax.f32 %v2808, 0.0
        %v2873 = vmax.f32 %v2809, 0.0
        %v2874 = vmax.f32 %v2810, 0.0
        %v2875 = vmax.f32 %v2811, 0.0
        %v2876 = vmax.f32 %v2812, 0.0
        %v2877 = vmax.f32 %v2813, 0.0
        %v2878 = vmax.f32 %v2814, 0.0
        %v2879 = vmax.f32 %v2815, 0.0
        %v2880 = vmax.f32 %v2816, 0.0
        %v2881 = vmax.f32 %v2817, 0.0
        %v2882 = vmax.f32 %v2818, 0.0
        %v2883 = vmax.f32 %v2819, 0.0
        %v2884 = vmax.f32 %v2820, 0.0
        %v2885 = vmax.f32 %v2821, 0.0
        %v2886 = vmax.f32 %v2822, 0.0
        %v2887 = vmax.f32 %v2823, 0.0
        %v2888 = vmax.f32 %v2824, 0.0
        %v2889 = vmax.f32 %v2825, 0.0
        %v2890 = vmax.f32 %v2826, 0.0
        %v2891 = vmax.f32 %v2827, 0.0
        %v2892 = vmax.f32 %v2828, 0.0
        %v2893 = vmax.f32 %v2829, 0.0
        %v2894 = vmax.f32 %v2830, 0.0
        %v2895 = vmax.f32 %v2831, 0.0
        %v2896 = vmax.f32 %v2832, 0.0
        %v2897 = vmax.f32 %v2833, 0.0
        %v2898 = vmax.f32 %v2834, 0.0
        %v2899 = vmax.f32 %v2835, 0.0
        %v2900 = vmax.f32 %v2836, 0.0
        %v2901 = vmax.f32 %v2837, 0.0
        %v2902 = vmax.f32 %v2838, 0.0
        %v2903 = vmax.f32 %v2839, 0.0
        %v2904 = vmax.f32 %v2840, 0.0
        %v2905 = vmax.f32 %v2841, 0.0
        %v2906 = vmax.f32 %v2842, 0.0
        %v2907 = vmax.f32 %v2843, 0.0
        %v2908 = vmax.f32 %v2844, 0.0
        %v2909 = vmax.f32 %v2845, 0.0
        %v2910 = vmax.f32 %v2846, 0.0
        %v2911 = vmax.f32 %v2847, 0.0
        %v2912 = vmax.f32 %v2848, 0.0
        %v2913 = vmax.f32 %v2849, 0.0
        %v2914 = vmax.f32 %v2850, 0.0
        %v2915 = vmax.f32 %v2851, 0.0
        %v2916 = vmax.f32 %v2852, 0.0
        %v2917 = vmax.f32 %v2853, 0.0
        %v2918 = vmax.f32 %v2854, 0.0
        %v2919 = vmax.f32 %v2855, 0.0
        %v2920 = vmax.f32 %v2856, 0.0
        %v2921 = vmax.f32 %v2857, 0.0
        %v2922 = vmax.f32 %v2858, 0.0
        %v2923 = vmax.f32 %v2859, 0.0
        %v2924 = vmax.f32 %v2860, 0.0
        %v2925 = vmax.f32 %v2861, 0.0
        %v2926 = vpack.c.bf16 %v2863, %v2862
        %v2927 = vpack.c.bf16 %v2865, %v2864
        %v2928 = vpack.c.bf16 %v2867, %v2866
        %v2929 = vpack.c.bf16 %v2869, %v2868
        %v2930 = vpack.c.bf16 %v2871, %v2870
        %v2931 = vpack.c.bf16 %v2873, %v2872
        %v2932 = vpack.c.bf16 %v2875, %v2874
        %v2933 = vpack.c.bf16 %v2877, %v2876
        %v2934 = vpack.c.bf16 %v2879, %v2878
        %v2935 = vpack.c.bf16 %v2881, %v2880
        %v2936 = vpack.c.bf16 %v2883, %v2882
        %v2937 = vpack.c.bf16 %v2885, %v2884
        %v2938 = vpack.c.bf16 %v2887, %v2886
        %v2939 = vpack.c.bf16 %v2889, %v2888
        %v2940 = vpack.c.bf16 %v2891, %v2890
        %v2941 = vpack.c.bf16 %v2893, %v2892
        %v2942 = vpack.c.bf16 %v2895, %v2894
        %v2943 = vpack.c.bf16 %v2897, %v2896
        %v2944 = vpack.c.bf16 %v2899, %v2898
        %v2945 = vpack.c.bf16 %v2901, %v2900
        %v2946 = vpack.c.bf16 %v2903, %v2902
        %v2947 = vpack.c.bf16 %v2905, %v2904
        %v2948 = vpack.c.bf16 %v2907, %v2906
        %v2949 = vpack.c.bf16 %v2909, %v2908
        %v2950 = vpack.c.bf16 %v2911, %v2910
        %v2951 = vpack.c.bf16 %v2913, %v2912
        %v2952 = vpack.c.bf16 %v2915, %v2914
        %v2953 = vpack.c.bf16 %v2917, %v2916
        %v2954 = vpack.c.bf16 %v2919, %v2918
        %v2955 = vpack.c.bf16 %v2921, %v2920
        %v2956 = vpack.c.bf16 %v2923, %v2922
        %v2957 = vpack.c.bf16 %v2925, %v2924
        %v2958 = vld [vmem:[%s5] sm:$0xf]
        %v2959 = vld [vmem:[%s5 + $0x4] sm:$0xf]
        %v2960 = vld [vmem:[%s5 + $0x8] sm:$0xf]
        %v2961 = vld [vmem:[%s5 + $0xc] sm:$0xf]
        %v2962 = vld [vmem:[%s5 + $0x10] sm:$0xf]
        %v2963 = vld [vmem:[%s5 + $0x14] sm:$0xf]
        %v2964 = vld [vmem:[%s5 + $0x18] sm:$0xf]
        %v2965 = vld [vmem:[%s5 + $0x1c] sm:$0xf]
        %v2966 = vld [vmem:[%s6] sm:$0x1]
        %v2968 = vlaneseq
        %v2969 = vshrl.u32 %v2968, 7
        %v2970 = vsub.s32 0, %v2969
        %v2971 = vrot.slane %v2966, %v2970
        %v2981 = vunpack.c.l.b16 %v2958
        %v2982 = vunpack.c.l.b16 %v2959
        %v2983 = vunpack.c.l.b16 %v2960
        %v2984 = vunpack.c.l.b16 %v2961
        %v2985 = vunpack.c.l.b16 %v2962
        %v2986 = vunpack.c.l.b16 %v2963
        %v2987 = vunpack.c.l.b16 %v2964
        %v2988 = vunpack.c.l.b16 %v2965
        %v2989 = vpack.c.b16 %v2982, %v2981
        %v2990 = vpack.c.b16 %v2984, %v2983
        %v2991 = vpack.c.b16 %v2986, %v2985
        %v2992 = vpack.c.b16 %v2988, %v2987
        %v2998 = vsel %vm864, %v2926, 0
        %v3001 = vsel %vm864, %v2927, 0
        %v3004 = vsel %vm864, %v2928, 0
        %v3007 = vsel %vm864, %v2929, 0
        %v3010 = vsel %vm864, %v2930, 0
        %v3013 = vsel %vm864, %v2931, 0
        %v3016 = vsel %vm864, %v2932, 0
        %v3019 = vsel %vm864, %v2933, 0
        %v3022 = vsel %vm864, %v2934, 0
        %v3025 = vsel %vm864, %v2935, 0
        %v3028 = vsel %vm864, %v2936, 0
        %v3031 = vsel %vm864, %v2937, 0
        %v3034 = vsel %vm864, %v2938, 0
        %v3037 = vsel %vm864, %v2939, 0
        %v3040 = vsel %vm864, %v2940, 0
        %v3043 = vsel %vm864, %v2941, 0
        %v3046 = vsel %vm864, %v2942, 0
        %v3049 = vsel %vm864, %v2943, 0
        %v3052 = vsel %vm864, %v2944, 0
        %v3055 = vsel %vm864, %v2945, 0
        %v3058 = vsel %vm864, %v2946, 0
        %v3061 = vsel %vm864, %v2947, 0
        %v3064 = vsel %vm864, %v2948, 0
        %v3067 = vsel %vm864, %v2949, 0
        %v3070 = vsel %vm864, %v2950, 0
        %v3073 = vsel %vm864, %v2951, 0
        %v3076 = vsel %vm864, %v2952, 0
        %v3079 = vsel %vm864, %v2953, 0
        %v3082 = vsel %vm864, %v2954, 0
        %v3085 = vsel %vm864, %v2955, 0
        %v3088 = vsel %vm864, %v2956, 0
        %v3091 = vsel %vm864, %v2957, 0
        %3093 = vmatprep.subr.bf16.mxu0 0
        %3094 = vmatpush1.bf16.msra.mxu0 %v2989
        %3095 = vmatprep.subr.bf16.mxu0 0
        %3096 = vmatpush1.bf16.msra.mxu0 %v2990
        %3097 = vmatprep.subr.bf16.mxu0 0
        %3098 = vmatpush1.bf16.msra.mxu0 %v2991
        %3099 = vmatprep.subr.bf16.mxu0 0
        %3100 = vmatpush1.bf16.msra.mxu0 %v2992
        %3101 = vmatprep.subr.bf16.mxu0 0
        %3102 = vmatpush1.bf16.msra.mxu0 0
        %3103 = vmatprep.subr.bf16.mxu0 0
        %3104 = vmatpush1.bf16.msra.mxu0 0
        %3105 = vmatprep.subr.bf16.mxu0 0
        %3106 = vmatpush1.bf16.msra.mxu0 0
        %3107 = vmatprep.subr.bf16.mxu0 0
        %3108 = vmatpush1.bf16.msra.mxu0 0
        %3109 = vmatprep.subr.bf16.mxu0 0
        %3110 = vmatpush1.bf16.msra.mxu0 0
        %3111 = vmatprep.subr.bf16.mxu0 0
        %3112 = vmatpush1.bf16.msra.mxu0 0
        %3113 = vmatprep.subr.bf16.mxu0 0
        %3114 = vmatpush1.bf16.msra.mxu0 0
        %3115 = vmatprep.subr.bf16.mxu0 0
        %3116 = vmatpush1.bf16.msra.mxu0 0
        %3117 = vmatprep.subr.bf16.mxu0 0
        %3118 = vmatpush1.bf16.msra.mxu0 0
        %3119 = vmatprep.subr.bf16.mxu0 0
        %3120 = vmatpush1.bf16.msra.mxu0 0
        %3121 = vmatprep.subr.bf16.mxu0 0
        %3122 = vmatpush1.bf16.msra.mxu0 0
        %3123 = vmatprep.subr.bf16.mxu0 0
        %3124 = vmatpush1.bf16.msra.mxu0 0
        %3125 = vmatprep.mubr.bf16.mxu0 0
        %3126 = vmatmul.mubr.bf16.gmra.mrb[0].mxu0 %v2998
        %v3127 = vpop.f32.mrb[0].mxu0
        %v3128 = vadd.f32 %v2971, %v3127
        %v3129 = vpop.f32.mrb[0].mxu0
        %v3130 = vpop.f32.mrb[0].mxu0
        %v3131 = vadd.f32 %v2971, %v3130
        %v3132 = vpop.f32.mrb[0].mxu0
        %3133 = vmatprep.mubr.bf16.mxu0 0
        %3134 = vmatmul.mubr.bf16.gmra.mrb[0].mxu0 %v3001
        %v3135 = vpop.f32.mrb[0].mxu0
        %v3136 = vadd.f32 %v2971, %v3135
        %v3137 = vpop.f32.mrb[0].mxu0
        %v3138 = vpop.f32.mrb[0].mxu0
        %v3139 = vadd.f32 %v2971, %v3138
        %v3140 = vpop.f32.mrb[0].mxu0
        %3141 = vmatprep.mubr.bf16.mxu0 0
        %3142 = vmatmul.mubr.bf16.gmra.mrb[0].mxu0 %v3004
        %v3143 = vpop.f32.mrb[0].mxu0
        %v3144 = vadd.f32 %v2971, %v3143
        %v3145 = vpop.f32.mrb[0].mxu0
        %v3146 = vpop.f32.mrb[0].mxu0
        %v3147 = vadd.f32 %v2971, %v3146
        %v3148 = vpop.f32.mrb[0].mxu0
        %3149 = vmatprep.mubr.bf16.mxu0 0
        %3150 = vmatmul.mubr.bf16.gmra.mrb[0].mxu0 %v3007
        %v3151 = vpop.f32.mrb[0].mxu0
        %v3152 = vadd.f32 %v2971, %v3151
        %v3153 = vpop.f32.mrb[0].mxu0
        %v3154 = vpop.f32.mrb[0].mxu0
        %v3155 = vadd.f32 %v2971, %v3154
        %v3156 = vpop.f32.mrb[0].mxu0
        %3157 = vmatprep.mubr.bf16.mxu0 0
        %3158 = vmatmul.mubr.bf16.gmra.mrb[0].mxu0 %v3010
        %v3159 = vpop.f32.mrb[0].mxu0
        %v3160 = vadd.f32 %v2971, %v3159
        %v3161 = vpop.f32.mrb[0].mxu0
        %v3162 = vpop.f32.mrb[0].mxu0
        %v3163 = vadd.f32 %v2971, %v3162
        %v3164 = vpop.f32.mrb[0].mxu0
        %3165 = vmatprep.mubr.bf16.mxu0 0
        %3166 = vmatmul.mubr.bf16.gmra.mrb[0].mxu0 %v3013
        %v3167 = vpop.f32.mrb[0].mxu0
        %v3168 = vadd.f32 %v2971, %v3167
        %v3169 = vpop.f32.mrb[0].mxu0
        %v3170 = vpop.f32.mrb[0].mxu0
        %v3171 = vadd.f32 %v2971, %v3170
        %v3172 = vpop.f32.mrb[0].mxu0
        %3173 = vmatprep.mubr.bf16.mxu0 0
        %3174 = vmatmul.mubr.bf16.gmra.mrb[0].mxu0 %v3016
        %v3175 = vpop.f32.mrb[0].mxu0
        %v3176 = vadd.f32 %v2971, %v3175
        %v3177 = vpop.f32.mrb[0].mxu0
        %v3178 = vpop.f32.mrb[0].mxu0
        %v3179 = vadd.f32 %v2971, %v3178
        %v3180 = vpop.f32.mrb[0].mxu0
        %3181 = vmatprep.mubr.bf16.mxu0 0
        %3182 = vmatmul.mubr.bf16.gmra.mrb[0].mxu0 %v3019
        %v3183 = vpop.f32.mrb[0].mxu0
        %v3184 = vadd.f32 %v2971, %v3183
        %v3185 = vpop.f32.mrb[0].mxu0
        %v3186 = vpop.f32.mrb[0].mxu0
        %v3187 = vadd.f32 %v2971, %v3186
        %v3188 = vpop.f32.mrb[0].mxu0
        %3189 = vmatprep.mubr.bf16.mxu0 0
        %3190 = vmatmul.mubr.bf16.gmra.mrb[0].mxu0 %v3022
        %v3191 = vpop.f32.mrb[0].mxu0
        %v3192 = vadd.f32 %v2971, %v3191
        %v3193 = vpop.f32.mrb[0].mxu0
        %v3194 = vpop.f32.mrb[0].mxu0
        %v3195 = vadd.f32 %v2971, %v3194
        %v3196 = vpop.f32.mrb[0].mxu0
        %3197 = vmatprep.mubr.bf16.mxu0 0
        %3198 = vmatmul.mubr.bf16.gmra.mrb[0].mxu0 %v3025
        %v3199 = vpop.f32.mrb[0].mxu0
        %v3200 = vadd.f32 %v2971, %v3199
        %v3201 = vpop.f32.mrb[0].mxu0
        %v3202 = vpop.f32.mrb[0].mxu0
        %v3203 = vadd.f32 %v2971, %v3202
        %v3204 = vpop.f32.mrb[0].mxu0
        %3205 = vmatprep.mubr.bf16.mxu0 0
        %3206 = vmatmul.mubr.bf16.gmra.mrb[0].mxu0 %v3028
        %v3207 = vpop.f32.mrb[0].mxu0
        %v3208 = vadd.f32 %v2971, %v3207
        %v3209 = vpop.f32.mrb[0].mxu0
        %v3210 = vpop.f32.mrb[0].mxu0
        %v3211 = vadd.f32 %v2971, %v3210
        %v3212 = vpop.f32.mrb[0].mxu0
        %3213 = vmatprep.mubr.bf16.mxu0 0
        %3214 = vmatmul.mubr.bf16.gmra.mrb[0].mxu0 %v3031
        %v3215 = vpop.f32.mrb[0].mxu0
        %v3216 = vadd.f32 %v2971, %v3215
        %v3217 = vpop.f32.mrb[0].mxu0
        %v3218 = vpop.f32.mrb[0].mxu0
        %v3219 = vadd.f32 %v2971, %v3218
        %v3220 = vpop.f32.mrb[0].mxu0
        %3221 = vmatprep.mubr.bf16.mxu0 0
        %3222 = vmatmul.mubr.bf16.gmra.mrb[0].mxu0 %v3034
        %v3223 = vpop.f32.mrb[0].mxu0
        %v3224 = vadd.f32 %v2971, %v3223
        %v3225 = vpop.f32.mrb[0].mxu0
        %v3226 = vpop.f32.mrb[0].mxu0
        %v3227 = vadd.f32 %v2971, %v3226
        %v3228 = vpop.f32.mrb[0].mxu0
        %3229 = vmatprep.mubr.bf16.mxu0 0
        %3230 = vmatmul.mubr.bf16.gmra.mrb[0].mxu0 %v3037
        %v3231 = vpop.f32.mrb[0].mxu0
        %v3232 = vadd.f32 %v2971, %v3231
        %v3233 = vpop.f32.mrb[0].mxu0
        %v3234 = vpop.f32.mrb[0].mxu0
        %v3235 = vadd.f32 %v2971, %v3234
        %v3236 = vpop.f32.mrb[0].mxu0
        %3237 = vmatprep.mubr.bf16.mxu0 0
        %3238 = vmatmul.mubr.bf16.gmra.mrb[0].mxu0 %v3040
        %v3239 = vpop.f32.mrb[0].mxu0
        %v3240 = vadd.f32 %v2971, %v3239
        %v3241 = vpop.f32.mrb[0].mxu0
        %v3242 = vpop.f32.mrb[0].mxu0
        %v3243 = vadd.f32 %v2971, %v3242
        %v3244 = vpop.f32.mrb[0].mxu0
        %3245 = vmatprep.mubr.bf16.mxu0 0
        %3246 = vmatmul.mubr.bf16.gmra.mrb[0].mxu0 %v3043
        %v3247 = vpop.f32.mrb[0].mxu0
        %v3248 = vadd.f32 %v2971, %v3247
        %v3249 = vpop.f32.mrb[0].mxu0
        %v3250 = vpop.f32.mrb[0].mxu0
        %v3251 = vadd.f32 %v2971, %v3250
        %v3252 = vpop.f32.mrb[0].mxu0
        %3253 = vmatprep.mubr.bf16.mxu0 0
        %3254 = vmatmul.mubr.bf16.gmra.mrb[0].mxu0 %v3046
        %v3255 = vpop.f32.mrb[0].mxu0
        %v3256 = vadd.f32 %v2971, %v3255
        %v3257 = vpop.f32.mrb[0].mxu0
        %v3258 = vpop.f32.mrb[0].mxu0
        %v3259 = vadd.f32 %v2971, %v3258
        %v3260 = vpop.f32.mrb[0].mxu0
        %3261 = vmatprep.mubr.bf16.mxu0 0
        %3262 = vmatmul.mubr.bf16.gmra.mrb[0].mxu0 %v3049
        %v3263 = vpop.f32.mrb[0].mxu0
        %v3264 = vadd.f32 %v2971, %v3263
        %v3265 = vpop.f32.mrb[0].mxu0
        %v3266 = vpop.f32.mrb[0].mxu0
        %v3267 = vadd.f32 %v2971, %v3266
        %v3268 = vpop.f32.mrb[0].mxu0
        %3269 = vmatprep.mubr.bf16.mxu0 0
        %3270 = vmatmul.mubr.bf16.gmra.mrb[0].mxu0 %v3052
        %v3271 = vpop.f32.mrb[0].mxu0
        %v3272 = vadd.f32 %v2971, %v3271
        %v3273 = vpop.f32.mrb[0].mxu0
        %v3274 = vpop.f32.mrb[0].mxu0
        %v3275 = vadd.f32 %v2971, %v3274
        %v3276 = vpop.f32.mrb[0].mxu0
        %3277 = vmatprep.mubr.bf16.mxu0 0
        %3278 = vmatmul.mubr.bf16.gmra.mrb[0].mxu0 %v3055
        %v3279 = vpop.f32.mrb[0].mxu0
        %v3280 = vadd.f32 %v2971, %v3279
        %v3281 = vpop.f32.mrb[0].mxu0
        %v3282 = vpop.f32.mrb[0].mxu0
        %v3283 = vadd.f32 %v2971, %v3282
        %v3284 = vpop.f32.mrb[0].mxu0
        %3285 = vmatprep.mubr.bf16.mxu0 0
        %3286 = vmatmul.mubr.bf16.gmra.mrb[0].mxu0 %v3058
        %v3287 = vpop.f32.mrb[0].mxu0
        %v3288 = vadd.f32 %v2971, %v3287
        %v3289 = vpop.f32.mrb[0].mxu0
        %v3290 = vpop.f32.mrb[0].mxu0
        %v3291 = vadd.f32 %v2971, %v3290
        %v3292 = vpop.f32.mrb[0].mxu0
        %3293 = vmatprep.mubr.bf16.mxu0 0
        %3294 = vmatmul.mubr.bf16.gmra.mrb[0].mxu0 %v3061
        %v3295 = vpop.f32.mrb[0].mxu0
        %v3296 = vadd.f32 %v2971, %v3295
        %v3297 = vpop.f32.mrb[0].mxu0
        %v3298 = vpop.f32.mrb[0].mxu0
        %v3299 = vadd.f32 %v2971, %v3298
        %v3300 = vpop.f32.mrb[0].mxu0
        %3301 = vmatprep.mubr.bf16.mxu0 0
        %3302 = vmatmul.mubr.bf16.gmra.mrb[0].mxu0 %v3064
        %v3303 = vpop.f32.mrb[0].mxu0
        %v3304 = vadd.f32 %v2971, %v3303
        %v3305 = vpop.f32.mrb[0].mxu0
        %v3306 = vpop.f32.mrb[0].mxu0
        %v3307 = vadd.f32 %v2971, %v3306
        %v3308 = vpop.f32.mrb[0].mxu0
        %3309 = vmatprep.mubr.bf16.mxu0 0
        %3310 = vmatmul.mubr.bf16.gmra.mrb[0].mxu0 %v3067
        %v3311 = vpop.f32.mrb[0].mxu0
        %v3312 = vadd.f32 %v2971, %v3311
        %v3313 = vpop.f32.mrb[0].mxu0
        %v3314 = vpop.f32.mrb[0].mxu0
        %v3315 = vadd.f32 %v2971, %v3314
        %v3316 = vpop.f32.mrb[0].mxu0
        %3317 = vmatprep.mubr.bf16.mxu0 0
        %3318 = vmatmul.mubr.bf16.gmra.mrb[0].mxu0 %v3070
        %v3319 = vpop.f32.mrb[0].mxu0
        %v3320 = vadd.f32 %v2971, %v3319
        %v3321 = vpop.f32.mrb[0].mxu0
        %v3322 = vpop.f32.mrb[0].mxu0
        %v3323 = vadd.f32 %v2971, %v3322
        %v3324 = vpop.f32.mrb[0].mxu0
        %3325 = vmatprep.mubr.bf16.mxu0 0
        %3326 = vmatmul.mubr.bf16.gmra.mrb[0].mxu0 %v3073
        %v3327 = vpop.f32.mrb[0].mxu0
        %v3328 = vadd.f32 %v2971, %v3327
        %v3329 = vpop.f32.mrb[0].mxu0
        %v3330 = vpop.f32.mrb[0].mxu0
        %v3331 = vadd.f32 %v2971, %v3330
        %v3332 = vpop.f32.mrb[0].mxu0
        %3333 = vmatprep.mubr.bf16.mxu0 0
        %3334 = vmatmul.mubr.bf16.gmra.mrb[0].mxu0 %v3076
        %v3335 = vpop.f32.mrb[0].mxu0
        %v3336 = vadd.f32 %v2971, %v3335
        %v3337 = vpop.f32.mrb[0].mxu0
        %v3338 = vpop.f32.mrb[0].mxu0
        %v3339 = vadd.f32 %v2971, %v3338
        %v3340 = vpop.f32.mrb[0].mxu0
        %3341 = vmatprep.mubr.bf16.mxu0 0
        %3342 = vmatmul.mubr.bf16.gmra.mrb[0].mxu0 %v3079
        %v3343 = vpop.f32.mrb[0].mxu0
        %v3344 = vadd.f32 %v2971, %v3343
        %v3345 = vpop.f32.mrb[0].mxu0
        %v3346 = vpop.f32.mrb[0].mxu0
        %v3347 = vadd.f32 %v2971, %v3346
        %v3348 = vpop.f32.mrb[0].mxu0
        %3349 = vmatprep.mubr.bf16.mxu0 0
        %3350 = vmatmul.mubr.bf16.gmra.mrb[0].mxu0 %v3082
        %v3351 = vpop.f32.mrb[0].mxu0
        %v3352 = vadd.f32 %v2971, %v3351
        %v3353 = vpop.f32.mrb[0].mxu0
        %v3354 = vpop.f32.mrb[0].mxu0
        %v3355 = vadd.f32 %v2971, %v3354
        %v3356 = vpop.f32.mrb[0].mxu0
        %3357 = vmatprep.mubr.bf16.mxu0 0
        %3358 = vmatmul.mubr.bf16.gmra.mrb[0].mxu0 %v3085
        %v3359 = vpop.f32.mrb[0].mxu0
        %v3360 = vadd.f32 %v2971, %v3359
        %v3361 = vpop.f32.mrb[0].mxu0
        %v3362 = vpop.f32.mrb[0].mxu0
        %v3363 = vadd.f32 %v2971, %v3362
        %v3364 = vpop.f32.mrb[0].mxu0
        %3365 = vmatprep.mubr.bf16.mxu0 0
        %3366 = vmatmul.mubr.bf16.gmra.mrb[0].mxu0 %v3088
        %v3367 = vpop.f32.mrb[0].mxu0
        %v3368 = vadd.f32 %v2971, %v3367
        %v3369 = vpop.f32.mrb[0].mxu0
        %v3370 = vpop.f32.mrb[0].mxu0
        %v3371 = vadd.f32 %v2971, %v3370
        %v3372 = vpop.f32.mrb[0].mxu0
        %3373 = vmatprep.mubr.bf16.mxu0 0
        %3374 = vmatmul.mubr.bf16.gmra.mrb[0].mxu0 %v3091
        %v3375 = vpop.f32.mrb[0].mxu0
        %v3376 = vadd.f32 %v2971, %v3375
        %v3377 = vpop.f32.mrb[0].mxu0
        %v3378 = vpop.f32.mrb[0].mxu0
        %v3379 = vadd.f32 %v2971, %v3378
        %v3380 = vpop.f32.mrb[0].mxu0
        %3381 = vdwg.mxu0
        %v3382 = vadd.f32 %v3128, %v303
        %v3383 = vadd.f32 %v3131, %v304
        %v3384 = vadd.f32 %v3136, %v305
        %v3385 = vadd.f32 %v3139, %v306
        %v3386 = vadd.f32 %v3144, %v307
        %v3387 = vadd.f32 %v3147, %v308
        %v3388 = vadd.f32 %v3152, %v309
        %v3389 = vadd.f32 %v3155, %v310
        %v3390 = vadd.f32 %v3160, %v311
        %v3391 = vadd.f32 %v3163, %v312
        %v3392 = vadd.f32 %v3168, %v313
        %v3393 = vadd.f32 %v3171, %v314
        %v3394 = vadd.f32 %v3176, %v315
        %v3395 = vadd.f32 %v3179, %v316
        %v3396 = vadd.f32 %v3184, %v317
        %v3397 = vadd.f32 %v3187, %v318
        %v3398 = vadd.f32 %v3192, %v319
        %v3399 = vadd.f32 %v3195, %v320
        %v3400 = vadd.f32 %v3200, %v321
        %v3401 = vadd.f32 %v3203, %v322
        %v3402 = vadd.f32 %v3208, %v323
        %v3403 = vadd.f32 %v3211, %v324
        %v3404 = vadd.f32 %v3216, %v325
        %v3405 = vadd.f32 %v3219, %v326
        %v3406 = vadd.f32 %v3224, %v327
        %v3407 = vadd.f32 %v3227, %v328
        %v3408 = vadd.f32 %v3232, %v329
        %v3409 = vadd.f32 %v3235, %v330
        %v3410 = vadd.f32 %v3240, %v331
        %v3411 = vadd.f32 %v3243, %v332
        %v3412 = vadd.f32 %v3248, %v333
        %v3413 = vadd.f32 %v3251, %v334
        %v3414 = vadd.f32 %v3256, %v335
        %v3415 = vadd.f32 %v3259, %v336
        %v3416 = vadd.f32 %v3264, %v337
        %v3417 = vadd.f32 %v3267, %v338
        %v3418 = vadd.f32 %v3272, %v339
        %v3419 = vadd.f32 %v3275, %v340
        %v3420 = vadd.f32 %v3280, %v341
        %v3421 = vadd.f32 %v3283, %v342
        %v3422 = vadd.f32 %v3288, %v343
        %v3423 = vadd.f32 %v3291, %v344
        %v3424 = vadd.f32 %v3296, %v345
        %v3425 = vadd.f32 %v3299, %v346
        %v3426 = vadd.f32 %v3304, %v347
        %v3427 = vadd.f32 %v3307, %v348
        %v3428 = vadd.f32 %v3312, %v349
        %v3429 = vadd.f32 %v3315, %v350
        %v3430 = vadd.f32 %v3320, %v351
        %v3431 = vadd.f32 %v3323, %v352
        %v3432 = vadd.f32 %v3328, %v353
        %v3433 = vadd.f32 %v3331, %v354
        %v3434 = vadd.f32 %v3336, %v355
        %v3435 = vadd.f32 %v3339, %v356
        %v3436 = vadd.f32 %v3344, %v357
        %v3437 = vadd.f32 %v3347, %v358
        %v3438 = vadd.f32 %v3352, %v359
        %v3439 = vadd.f32 %v3355, %v360
        %v3440 = vadd.f32 %v3360, %v361
        %v3441 = vadd.f32 %v3363, %v362
        %v3442 = vadd.f32 %v3368, %v363
        %v3443 = vadd.f32 %v3371, %v364
        %v3444 = vadd.f32 %v3376, %v365
        %v3445 = vadd.f32 %v3379, %v366
        %3446 = vst.msk [vmem:[%s300] sm:$0xff] %vm414, %v3382
        %3447 = vst.msk [vmem:[%s300 + $0x8] sm:$0xff] %vm414, %v3383
        %3448 = vst.msk [vmem:[%s300 + $0x10] sm:$0xff] %vm414, %v3384
        %3449 = vst.msk [vmem:[%s300 + $0x18] sm:$0xff] %vm414, %v3385
        %3450 = vst.msk [vmem:[%s300 + $0x20] sm:$0xff] %vm414, %v3386
        %3451 = vst.msk [vmem:[%s300 + $0x28] sm:$0xff] %vm414, %v3387
        %3452 = vst.msk [vmem:[%s300 + $0x30] sm:$0xff] %vm414, %v3388
        %3453 = vst.msk [vmem:[%s300 + $0x38] sm:$0xff] %vm414, %v3389
        %3454 = vst.msk [vmem:[%s300 + $0x40] sm:$0xff] %vm414, %v3390
        %3455 = vst.msk [vmem:[%s300 + $0x48] sm:$0xff] %vm414, %v3391
        %3456 = vst.msk [vmem:[%s300 + $0x50] sm:$0xff] %vm414, %v3392
        %3457 = vst.msk [vmem:[%s300 + $0x58] sm:$0xff] %vm414, %v3393
        %3458 = vst.msk [vmem:[%s300 + $0x60] sm:$0xff] %vm414, %v3394
        %3459 = vst.msk [vmem:[%s300 + $0x68] sm:$0xff] %vm414, %v3395
        %3460 = vst.msk [vmem:[%s300 + $0x70] sm:$0xff] %vm414, %v3396
        %3461 = vst.msk [vmem:[%s300 + $0x78] sm:$0xff] %vm414, %v3397
        %3462 = vst.msk [vmem:[%s300 + $0x80] sm:$0xff] %vm414, %v3398
        %3463 = vst.msk [vmem:[%s300 + $0x88] sm:$0xff] %vm414, %v3399
        %3464 = vst.msk [vmem:[%s300 + $0x90] sm:$0xff] %vm414, %v3400
        %3465 = vst.msk [vmem:[%s300 + $0x98] sm:$0xff] %vm414, %v3401
        %3466 = vst.msk [vmem:[%s300 + $0xa0] sm:$0xff] %vm414, %v3402
        %3467 = vst.msk [vmem:[%s300 + $0xa8] sm:$0xff] %vm414, %v3403
        %3468 = vst.msk [vmem:[%s300 + $0xb0] sm:$0xff] %vm414, %v3404
        %3469 = vst.msk [vmem:[%s300 + $0xb8] sm:$0xff] %vm414, %v3405
        %3470 = vst.msk [vmem:[%s300 + $0xc0] sm:$0xff] %vm414, %v3406
        %3471 = vst.msk [vmem:[%s300 + $0xc8] sm:$0xff] %vm414, %v3407
        %3472 = vst.msk [vmem:[%s300 + $0xd0] sm:$0xff] %vm414, %v3408
        %3473 = vst.msk [vmem:[%s300 + $0xd8] sm:$0xff] %vm414, %v3409
        %3474 = vst.msk [vmem:[%s300 + $0xe0] sm:$0xff] %vm414, %v3410
        %3475 = vst.msk [vmem:[%s300 + $0xe8] sm:$0xff] %vm414, %v3411
        %3476 = vst.msk [vmem:[%s300 + $0xf0] sm:$0xff] %vm414, %v3412
        %3477 = vst.msk [vmem:[%s300 + $0xf8] sm:$0xff] %vm414, %v3413
        %3478 = vst.msk [vmem:[%s300 + $0x100] sm:$0xff] %vm414, %v3414
        %3479 = vst.msk [vmem:[%s300 + $0x108] sm:$0xff] %vm414, %v3415
        %3480 = vst.msk [vmem:[%s300 + $0x110] sm:$0xff] %vm414, %v3416
        %3481 = vst.msk [vmem:[%s300 + $0x118] sm:$0xff] %vm414, %v3417
        %3482 = vst.msk [vmem:[%s300 + $0x120] sm:$0xff] %vm414, %v3418
        %3483 = vst.msk [vmem:[%s300 + $0x128] sm:$0xff] %vm414, %v3419
        %3484 = vst.msk [vmem:[%s300 + $0x130] sm:$0xff] %vm414, %v3420
        %3485 = vst.msk [vmem:[%s300 + $0x138] sm:$0xff] %vm414, %v3421
        %3486 = vst.msk [vmem:[%s300 + $0x140] sm:$0xff] %vm414, %v3422
        %3487 = vst.msk [vmem:[%s300 + $0x148] sm:$0xff] %vm414, %v3423
        %3488 = vst.msk [vmem:[%s300 + $0x150] sm:$0xff] %vm414, %v3424
        %3489 = vst.msk [vmem:[%s300 + $0x158] sm:$0xff] %vm414, %v3425
        %3490 = vst.msk [vmem:[%s300 + $0x160] sm:$0xff] %vm414, %v3426
        %3491 = vst.msk [vmem:[%s300 + $0x168] sm:$0xff] %vm414, %v3427
        %3492 = vst.msk [vmem:[%s300 + $0x170] sm:$0xff] %vm414, %v3428
        %3493 = vst.msk [vmem:[%s300 + $0x178] sm:$0xff] %vm414, %v3429
        %3494 = vst.msk [vmem:[%s300 + $0x180] sm:$0xff] %vm414, %v3430
        %3495 = vst.msk [vmem:[%s300 + $0x188] sm:$0xff] %vm414, %v3431
        %3496 = vst.msk [vmem:[%s300 + $0x190] sm:$0xff] %vm414, %v3432
        %3497 = vst.msk [vmem:[%s300 + $0x198] sm:$0xff] %vm414, %v3433
        %3498 = vst.msk [vmem:[%s300 + $0x1a0] sm:$0xff] %vm414, %v3434
        %3499 = vst.msk [vmem:[%s300 + $0x1a8] sm:$0xff] %vm414, %v3435
        %3500 = vst.msk [vmem:[%s300 + $0x1b0] sm:$0xff] %vm414, %v3436
        %3501 = vst.msk [vmem:[%s300 + $0x1b8] sm:$0xff] %vm414, %v3437
        %3502 = vst.msk [vmem:[%s300 + $0x1c0] sm:$0xff] %vm414, %v3438
        %3503 = vst.msk [vmem:[%s300 + $0x1c8] sm:$0xff] %vm414, %v3439
        %3504 = vst.msk [vmem:[%s300 + $0x1d0] sm:$0xff] %vm414, %v3440
        %3505 = vst.msk [vmem:[%s300 + $0x1d8] sm:$0xff] %vm414, %v3441
        %3506 = vst.msk [vmem:[%s300 + $0x1e0] sm:$0xff] %vm414, %v3442
        %3507 = vst.msk [vmem:[%s300 + $0x1e8] sm:$0xff] %vm414, %v3443
        %3508 = vst.msk [vmem:[%s300 + $0x1f0] sm:$0xff] %vm414, %v3444
        %3509 = vst.msk [vmem:[%s300 + $0x1f8] sm:$0xff] %vm414, %v3445
        %s3510 = smul.u32 64, %s21
        %p3511 = scmp.lt.s32.totalorder %s3510, 127
        %s3512 = scalar_select %p3511, %s3510, 127
        %s3513 = smul.addr %s3512, 8
        %s3514 = scalar_lea.vmem %s7, %s3513
        // Predicated region
        $region53: #{tpu_custom_call.1} parent=47 // pred_check
          %p3515 = pneg %p191
        $region54: #{tpu_custom_call.1} parent=47 // pred_check_branch
          %3517 = sbr.rel (%p3515) target = $region56
        $region55: #{tpu_custom_call.1} parent=47 // pred_region
          %s3518 = smul.u32 64, %s21
        $region56: #{tpu_custom_call.1} parent=47 // pred_fallthru
          _
      $region48: #{tpu_custom_call.1} parent=5 // pred_fallthru
        _
      %p3519 = scmp.le.s32.totalorder 2, %s16
      // Predicated region
      $region57: #{tpu_custom_call.1} parent=5 // pred_check
        %p3520 = pneg %p3519
      $region58: #{tpu_custom_call.1} parent=5 // pred_check_branch
        %3522 = sbr.rel (%p3520) target = $region60
      $region59: #{tpu_custom_call.1} parent=5 // pred_region
        %s3523 = ssub.s32 %s16, 2
        // Predicated region
        $region61: #{tpu_custom_call.1} parent=59 // pred_check
          %p3524 = pneg %p197
        $region62: #{tpu_custom_call.1} parent=59 // pred_check_branch
          %3526 = sbr.rel (%p3524) target = $region64
        $region63: #{tpu_custom_call.1} parent=59 // pred_region
          %s3527 = smul.u32 64, %s22
          %p3528 = scmp.lt.s32.totalorder %s3527, 127
          %s3529 = scalar_select %p3528, %s3527, 127
          %s3530 = smul.addr %s3529, 8
          %s3531 = scalar_lea.vmem %s7, %s3530
        $region64: #{tpu_custom_call.1} parent=59 // pred_fallthru
          _
      $region60: #{tpu_custom_call.1} parent=5 // pred_fallthru
        _
    $region6: #{tpu_custom_call.1} parent=1 // loop_footer
      %s20 = sadd.s32 1, %s16
    $region7: #{tpu_custom_call.1} parent=1 // loop_footer_branch
      %15 = sbr.rel target = $region3
    $region8: #{tpu_custom_call.1} parent=1 // loop_exit
      _
    %3532 = vsyncpa [#allocation4], 1
    %s3533 = scalar_lea.sflag [#allocation4], 1
    %3534 = vsyncpa %s3533, 1

</llo_original>
